<compile_context>
chip_gen: v7x
topology: tpu7x:2x2x1
jax: 0.10.0
libtpu: 0.0.40
codegen_flags: <defaults>
</compile_context>

<pallas_src>
import functools
import math

import jax
import jax.numpy as jnp
from jax.experimental import pallas as pl
from jax.experimental.pallas import tpu as pltpu


# ------------------------------ fused kernel --------------------------------

def _encoder_layer_kernel(*refs, num_heads, use_mask):
    if use_mask:
        (x_ref, mask_ref,
         ln1_g_ref, ln1_b_ref,
         wqkv_ref, bqkv_ref, wo_ref, bo_ref,
         ln2_g_ref, ln2_b_ref,
         w1_ref, b1_ref, w2_ref, b2_ref,
         o_ref) = refs
    else:
        (x_ref,
         ln1_g_ref, ln1_b_ref,
         wqkv_ref, bqkv_ref, wo_ref, bo_ref,
         ln2_g_ref, ln2_b_ref,
         w1_ref, b1_ref, w2_ref, b2_ref,
         o_ref) = refs
        mask_ref = None

    S, D = x_ref.shape[1], x_ref.shape[2]
    H = num_heads
    Dh = D // H
    inv_sqrt_dh = 1.0 / math.sqrt(Dh)

    def layer_norm(v, g_ref, b_ref):
        # f32 LayerNorm (nn.LayerNorm default eps = 1e-5)
        mu = jnp.mean(v, axis=-1, keepdims=True)
        var = jnp.mean((v - mu) ** 2, axis=-1, keepdims=True)
        return (v - mu) * jax.lax.rsqrt(var + 1e-5) * g_ref[...] + b_ref[...]

    x = x_ref[0].astype(jnp.float32)                              # (S, D)

    # ---- sub-layer 1: LN1 -> fused QKV -> attention -> out-proj -> residual
    x2 = layer_norm(x, ln1_g_ref, ln1_b_ref)
    qkv = jnp.dot(x2.astype(jnp.bfloat16), wqkv_ref[...],
                  preferred_element_type=jnp.float32) + bqkv_ref[...]   # (S, 3D)

    w_o = wo_ref[...]                                             # (D, D) f32
    if use_mask:
        neg_fill = float(jnp.finfo(jnp.float32).min)
        mask = mask_ref[0]                                        # (S, S)

    attn_out = jnp.zeros((S, D), jnp.float32)
    for h in range(H):                                            # static unroll
        q_h = qkv[:, h * Dh:(h + 1) * Dh] * inv_sqrt_dh           # (S, Dh) f32
        k_h = qkv[:, D + h * Dh:D + (h + 1) * Dh]
        v_h = qkv[:, 2 * D + h * Dh:2 * D + (h + 1) * Dh]

        s = jnp.einsum('qd,kd->qk',
                       q_h.astype(jnp.bfloat16), k_h.astype(jnp.bfloat16),
                       preferred_element_type=jnp.float32)        # (S, S) f32
        if use_mask:
            s = jnp.where(mask == 0.0, neg_fill, s)
        mx = jnp.max(s, axis=-1, keepdims=True)
        e = jnp.exp(s - mx)
        p = e * pl.reciprocal(jnp.sum(e, axis=-1, keepdims=True), approx=True)

        o_h = jnp.dot(p.astype(jnp.bfloat16), v_h.astype(jnp.bfloat16),
                      preferred_element_type=jnp.float32)         # (S, Dh)
        # concat_h(o_h) @ Wo  ==  sum_h o_h @ Wo[h*Dh:(h+1)*Dh, :]
        attn_out = attn_out + jnp.dot(
            o_h.astype(jnp.bfloat16),
            w_o[h * Dh:(h + 1) * Dh, :].astype(jnp.bfloat16),
            preferred_element_type=jnp.float32)

    x = x + attn_out + bo_ref[...]                                # residual 1

    # ---- sub-layer 2: LN2 -> FFN (Linear -> ReLU -> Linear) -> residual
    x2 = layer_norm(x, ln2_g_ref, ln2_b_ref)
    # TODO(synk): for production sizes (large D, F) tile w1/w2 over a K/M grid
    # with a VMEM accumulator instead of whole-weight blocks (v7x 64 MiB VMEM).
    hdn = jnp.dot(x2.astype(jnp.bfloat16), w1_ref[...],
                  preferred_element_type=jnp.float32) + b1_ref[...]     # (S, F)
    hdn = jnp.maximum(hdn, 0.0)                                   # ReLU
    y = jnp.dot(hdn.astype(jnp.bfloat16), w2_ref[...],
                preferred_element_type=jnp.float32) + b2_ref[...]       # (S, D)

    o_ref[0] = (x + y).astype(o_ref.dtype)                        # residual 2


# ------------------------------- wrapper -------------------------------------

def encoder_layer_forward(params, x, attention_mask, num_heads):
    """x: (B, S, D) f32; attention_mask: (B, S, S) (1 keep / 0 mask) or None."""
    B, S, D = x.shape
    use_mask = attention_mask is not None

    kernel = functools.partial(
        _encoder_layer_kernel, num_heads=num_heads, use_mask=use_mask)

    full2d = lambda b: (0, 0)
    in_specs = [pl.BlockSpec((1, S, D), lambda b: (b, 0, 0))]
    args = [x]
    if use_mask:
        in_specs.append(pl.BlockSpec((1, S, S), lambda b: (b, 0, 0)))
        args.append(attention_mask.astype(jnp.float32))

    weights = [
        params["ln1_g"], params["ln1_b"],
        params["wqkv"], params["bqkv"], params["wo"], params["bo"],
        params["ln2_g"], params["ln2_b"],
        params["w1"], params["b1"], params["w2"], params["b2"],
    ]
    for w in weights:
        in_specs.append(pl.BlockSpec(w.shape, full2d))
        args.append(w)

    return pl.pallas_call(
        kernel,
        out_shape=jax.ShapeDtypeStruct((B, S, D), x.dtype),
        grid=(B,),
        in_specs=in_specs,
        out_specs=pl.BlockSpec((1, S, D), lambda b: (b, 0, 0)),
        compiler_params=pltpu.CompilerParams(
            dimension_semantics=("parallel",)),   # megacore sharding on v7x
    )(*args)


# ----------------------------- initialization --------------------------------

def init_encoder_layer_params(key, D, F, scale=0.05):
    ks = jax.random.split(key, 16)

    def w(k, shape):
        return scale * jax.random.normal(k, shape, jnp.float32)

    wq, wk, wv = w(ks[0], (D, D)), w(ks[1], (D, D)), w(ks[2], (D, D))
    bq, bk, bv = w(ks[3], (D,)), w(ks[4], (D,)), w(ks[5], (D,))

    return {
        "ln1_g": (1.0 + 0.01 * jax.random.normal(ks[6], (D,), jnp.float32)).reshape(1, D),
        "ln1_b": (0.01 * jax.random.normal(ks[7], (D,), jnp.float32)).reshape(1, D),
        "ln2_g": (1.0 + 0.01 * jax.random.normal(ks[8], (D,), jnp.float32)).reshape(1, D),
        "ln2_b": (0.01 * jax.random.normal(ks[9], (D,), jnp.float32)).reshape(1, D),
        # fused QKV projection (bf16 weights for the MXU; f32 biases)
        "wqkv": jnp.concatenate([wq, wk, wv], axis=1).astype(jnp.bfloat16),   # (D, 3D)
        "bqkv": jnp.concatenate([bq, bk, bv]).reshape(1, 3 * D),
        "wo": w(ks[10], (D, D)),                       # f32; sliced per head in-kernel
        "bo": w(ks[11], (D,)).reshape(1, D),
        # FFN
        "w1": w(ks[12], (D, F)).astype(jnp.bfloat16),
        "b1": w(ks[13], (F,)).reshape(1, F),
        "w2": w(ks[14], (F, D)).astype(jnp.bfloat16),
        "b2": w(ks[15], (D,)).reshape(1, D),
    }


# --------------------------------- main ---------------------------------------

if __name__ == "__main__":
    EMBED_DIM = 32
    NUM_HEADS = 4
    FF_DIM = 2048          # EncoderLayer default
    B, S = 2, 8

    root = jax.random.PRNGKey(0)
    k_param, k_x = jax.random.split(root)

    params = init_encoder_layer_params(k_param, EMBED_DIM, FF_DIM)
    x = jax.random.normal(k_x, (B, S, EMBED_DIM), jnp.float32)

    # padding-style mask, (B, Sq, Sk): 1 = attend, 0 = masked
    lengths = jnp.array([S, S - 2])
    key_valid = (jnp.arange(S)[None, :] < lengths[:, None]).astype(jnp.float32)  # (B, S)
    attention_mask = jnp.broadcast_to(key_valid[:, None, :], (B, S, S))

    fwd = jax.jit(encoder_layer_forward, static_argnums=(3,))
    out = fwd(params, x, attention_mask, NUM_HEADS)
    out = jax.block_until_ready(out)

    assert out.shape == (B, S, EMBED_DIM)
    assert bool(jnp.all(jnp.isfinite(out)))
    print("KERNEL_OK")
</pallas_src>

<mosaic_0001>
module attributes {stable_mosaic.version = 11 : i64} {
  func.func @_encoder_layer_kernel(%arg0: i32, %arg1: memref<1x8x32xf32, #tpu.memory_space<vmem>>, %arg2: memref<1x8x8xf32, #tpu.memory_space<vmem>>, %arg3: memref<1x32xf32, #tpu.memory_space<vmem>>, %arg4: memref<1x32xf32, #tpu.memory_space<vmem>>, %arg5: memref<32x96xbf16, #tpu.memory_space<vmem>>, %arg6: memref<1x96xf32, #tpu.memory_space<vmem>>, %arg7: memref<32x32xf32, #tpu.memory_space<vmem>>, %arg8: memref<1x32xf32, #tpu.memory_space<vmem>>, %arg9: memref<1x32xf32, #tpu.memory_space<vmem>>, %arg10: memref<1x32xf32, #tpu.memory_space<vmem>>, %arg11: memref<32x2048xbf16, #tpu.memory_space<vmem>>, %arg12: memref<1x2048xf32, #tpu.memory_space<vmem>>, %arg13: memref<2048x32xbf16, #tpu.memory_space<vmem>>, %arg14: memref<1x32xf32, #tpu.memory_space<vmem>>, %arg15: memref<1x8x32xf32, #tpu.memory_space<vmem>>) attributes {dimension_semantics = [#tpu.dimension_semantics<parallel>], iteration_bounds = array<i64: 2>, scalar_prefetch = 0 : i64, scratch_operands = 0 : i64, tpu.core_type = #tpu.core_type<tc>, window_params = [{transform_indices = @transform_0, window_bounds = array<i64: 1, 8, 32>}, {transform_indices = @transform_1, window_bounds = array<i64: 1, 8, 8>}, {pipeline_mode = #tpu.pipeline_mode<synchronous>, transform_indices = @transform_2, window_bounds = array<i64: 1, 32>}, {pipeline_mode = #tpu.pipeline_mode<synchronous>, transform_indices = @transform_3, window_bounds = array<i64: 1, 32>}, {pipeline_mode = #tpu.pipeline_mode<synchronous>, transform_indices = @transform_4, window_bounds = array<i64: 32, 96>}, {pipeline_mode = #tpu.pipeline_mode<synchronous>, transform_indices = @transform_5, window_bounds = array<i64: 1, 96>}, {pipeline_mode = #tpu.pipeline_mode<synchronous>, transform_indices = @transform_6, window_bounds = array<i64: 32, 32>}, {pipeline_mode = #tpu.pipeline_mode<synchronous>, transform_indices = @transform_7, window_bounds = array<i64: 1, 32>}, {pipeline_mode = #tpu.pipeline_mode<synchronous>, transform_indices = @transform_8, window_bounds = array<i64: 1, 32>}, {pipeline_mode = #tpu.pipeline_mode<synchronous>, transform_indices = @transform_9, window_bounds = array<i64: 1, 32>}, {pipeline_mode = #tpu.pipeline_mode<synchronous>, transform_indices = @transform_10, window_bounds = array<i64: 32, 2048>}, {pipeline_mode = #tpu.pipeline_mode<synchronous>, transform_indices = @transform_11, window_bounds = array<i64: 1, 2048>}, {pipeline_mode = #tpu.pipeline_mode<synchronous>, transform_indices = @transform_12, window_bounds = array<i64: 2048, 32>}, {pipeline_mode = #tpu.pipeline_mode<synchronous>, transform_indices = @transform_13, window_bounds = array<i64: 1, 32>}, {transform_indices = @transform_14, window_bounds = array<i64: 1, 8, 32>}]} {
    %c0 = arith.constant 0 : index
    %c0_0 = arith.constant 0 : index
    %c0_1 = arith.constant 0 : index
    %0 = vector.load %arg1[%c0, %c0_0, %c0_1] : memref<1x8x32xf32, #tpu.memory_space<vmem>>, vector<1x8x32xf32>
    %1 = vector.shape_cast %0 : vector<1x8x32xf32> to vector<8x32xf32>
    %cst = arith.constant dense<0.000000e+00> : vector<8xf32>
    %2 = vector.multi_reduction <add>, %1, %cst [1] : vector<8x32xf32> to vector<8xf32>
    %3 = vector.shape_cast %2 : vector<8xf32> to vector<8x1xf32>
    %cst_2 = arith.constant 3.200000e+01 : f32
    %4 = vector.broadcast %cst_2 : f32 to vector<8x1xf32>
    %5 = arith.divf %3, %4 : vector<8x1xf32>
    %6 = vector.broadcast %5 : vector<8x1xf32> to vector<8x32xf32>
    %7 = arith.subf %1, %6 : vector<8x32xf32>
    %8 = arith.mulf %7, %7 : vector<8x32xf32>
    %cst_3 = arith.constant dense<0.000000e+00> : vector<8xf32>
    %9 = vector.multi_reduction <add>, %8, %cst_3 [1] : vector<8x32xf32> to vector<8xf32>
    %10 = vector.shape_cast %9 : vector<8xf32> to vector<8x1xf32>
    %cst_4 = arith.constant 3.200000e+01 : f32
    %11 = vector.broadcast %cst_4 : f32 to vector<8x1xf32>
    %12 = arith.divf %10, %11 : vector<8x1xf32>
    %13 = vector.broadcast %5 : vector<8x1xf32> to vector<8x32xf32>
    %14 = arith.subf %1, %13 : vector<8x32xf32>
    %cst_5 = arith.constant 9.99999974E-6 : f32
    %15 = vector.broadcast %cst_5 : f32 to vector<8x1xf32>
    %16 = arith.addf %12, %15 : vector<8x1xf32>
    %17 = math.rsqrt %16 : vector<8x1xf32>
    %18 = vector.broadcast %17 : vector<8x1xf32> to vector<8x32xf32>
    %19 = arith.mulf %14, %18 : vector<8x32xf32>
    %c0_6 = arith.constant 0 : index
    %c0_7 = arith.constant 0 : index
    %20 = vector.load %arg3[%c0_6, %c0_7] : memref<1x32xf32, #tpu.memory_space<vmem>>, vector<1x32xf32>
    %21 = vector.broadcast %20 : vector<1x32xf32> to vector<8x32xf32>
    %22 = arith.mulf %19, %21 : vector<8x32xf32>
    %c0_8 = arith.constant 0 : index
    %c0_9 = arith.constant 0 : index
    %23 = vector.load %arg4[%c0_8, %c0_9] : memref<1x32xf32, #tpu.memory_space<vmem>>, vector<1x32xf32>
    %24 = vector.broadcast %23 : vector<1x32xf32> to vector<8x32xf32>
    %25 = arith.addf %22, %24 : vector<8x32xf32>
    %26 = arith.truncf %25 : vector<8x32xf32> to vector<8x32xbf16>
    %c0_10 = arith.constant 0 : index
    %c0_11 = arith.constant 0 : index
    %27 = vector.load %arg5[%c0_10, %c0_11] : memref<32x96xbf16, #tpu.memory_space<vmem>>, vector<32x96xbf16>
    %cst_12 = arith.constant dense<0.000000e+00> : vector<8x96xf32>
    %28 = tpu.matmul %26, %27, %cst_12 {dimension_numbers = #tpu.dot_dimension_numbers<[1], [0], [0], [1], [0, 0, 1, 1], [], []>} : vector<8x32xbf16>, vector<32x96xbf16>, vector<8x96xf32> -> vector<8x96xf32>
    %c0_13 = arith.constant 0 : index
    %c0_14 = arith.constant 0 : index
    %29 = vector.load %arg6[%c0_13, %c0_14] : memref<1x96xf32, #tpu.memory_space<vmem>>, vector<1x96xf32>
    %30 = vector.broadcast %29 : vector<1x96xf32> to vector<8x96xf32>
    %31 = arith.addf %28, %30 : vector<8x96xf32>
    %c0_15 = arith.constant 0 : index
    %c0_16 = arith.constant 0 : index
    %32 = vector.load %arg7[%c0_15, %c0_16] : memref<32x32xf32, #tpu.memory_space<vmem>>, vector<32x32xf32>
    %c0_17 = arith.constant 0 : index
    %c0_18 = arith.constant 0 : index
    %c0_19 = arith.constant 0 : index
    %33 = vector.load %arg2[%c0_17, %c0_18, %c0_19] : memref<1x8x8xf32, #tpu.memory_space<vmem>>, vector<1x8x8xf32>
    %34 = vector.shape_cast %33 : vector<1x8x8xf32> to vector<8x8xf32>
    %cst_20 = arith.constant 0.000000e+00 : f32
    %35 = vector.broadcast %cst_20 : f32 to vector<8x32xf32>
    %36 = vector.extract_strided_slice %31 {offsets = [0, 0], sizes = [8, 8], strides = [1, 1]} : vector<8x96xf32> to vector<8x8xf32>
    %cst_21 = arith.constant 0.353553385 : f32
    %37 = vector.broadcast %cst_21 : f32 to vector<8x8xf32>
    %38 = arith.mulf %36, %37 : vector<8x8xf32>
    %39 = vector.extract_strided_slice %31 {offsets = [0, 32], sizes = [8, 8], strides = [1, 1]} : vector<8x96xf32> to vector<8x8xf32>
    %40 = vector.extract_strided_slice %31 {offsets = [0, 64], sizes = [8, 8], strides = [1, 1]} : vector<8x96xf32> to vector<8x8xf32>
    %41 = arith.truncf %38 : vector<8x8xf32> to vector<8x8xbf16>
    %42 = arith.truncf %39 : vector<8x8xf32> to vector<8x8xbf16>
    "tpu.trace_start"() <{level = 10 : i32, message = "qd,kd->qk"}> : () -> ()
    %cst_22 = arith.constant dense<0.000000e+00> : vector<8x8xf32>
    %43 = tpu.matmul %41, %42, %cst_22 {dimension_numbers = #tpu.dot_dimension_numbers<[1], [1], [0], [0], [0, 0, 1, 0], [], []>} : vector<8x8xbf16>, vector<8x8xbf16>, vector<8x8xf32> -> vector<8x8xf32>
    %cst_23 = arith.constant 0.000000e+00 : f32
    "tpu.trace_stop"() : () -> ()
    %44 = vector.broadcast %cst_23 : f32 to vector<8x8xf32>
    %45 = arith.cmpf oeq, %34, %44 : vector<8x8xf32>
    %cst_24 = arith.constant -3.40282347E+38 : f32
    %46 = vector.broadcast %cst_24 : f32 to vector<8x8xf32>
    %47 = arith.select %45, %46, %43 : vector<8x8xi1>, vector<8x8xf32>
    %cst_25 = arith.constant dense<0xFF800000> : vector<8xf32>
    %48 = vector.multi_reduction <maximumf>, %47, %cst_25 [1] : vector<8x8xf32> to vector<8xf32>
    %49 = vector.shape_cast %48 : vector<8xf32> to vector<8x1xf32>
    %50 = vector.broadcast %49 : vector<8x1xf32> to vector<8x8xf32>
    %51 = arith.subf %47, %50 : vector<8x8xf32>
    %52 = math.exp %51 : vector<8x8xf32>
    %cst_26 = arith.constant dense<0.000000e+00> : vector<8xf32>
    %53 = vector.multi_reduction <add>, %52, %cst_26 [1] : vector<8x8xf32> to vector<8xf32>
    %54 = vector.shape_cast %53 : vector<8xf32> to vector<8x1xf32>
    %55 = tpu.reciprocal %54 {approx = true} : vector<8x1xf32> -> vector<8x1xf32>
    %56 = vector.broadcast %55 : vector<8x1xf32> to vector<8x8xf32>
    %57 = arith.mulf %52, %56 : vector<8x8xf32>
    %58 = arith.truncf %57 : vector<8x8xf32> to vector<8x8xbf16>
    %59 = arith.truncf %40 : vector<8x8xf32> to vector<8x8xbf16>
    %cst_27 = arith.constant dense<0.000000e+00> : vector<8x8xf32>
    %60 = tpu.matmul %58, %59, %cst_27 {dimension_numbers = #tpu.dot_dimension_numbers<[1], [0], [0], [1], [0, 0, 1, 1], [], []>} : vector<8x8xbf16>, vector<8x8xbf16>, vector<8x8xf32> -> vector<8x8xf32>
    %61 = arith.truncf %60 : vector<8x8xf32> to vector<8x8xbf16>
    %62 = vector.extract_strided_slice %32 {offsets = [0, 0], sizes = [8, 32], strides = [1, 1]} : vector<32x32xf32> to vector<8x32xf32>
    %63 = arith.truncf %62 : vector<8x32xf32> to vector<8x32xbf16>
    %cst_28 = arith.constant dense<0.000000e+00> : vector<8x32xf32>
    %64 = tpu.matmul %61, %63, %cst_28 {dimension_numbers = #tpu.dot_dimension_numbers<[1], [0], [0], [1], [0, 0, 1, 1], [], []>} : vector<8x8xbf16>, vector<8x32xbf16>, vector<8x32xf32> -> vector<8x32xf32>
    %65 = arith.addf %35, %64 : vector<8x32xf32>
    %66 = vector.extract_strided_slice %31 {offsets = [0, 8], sizes = [8, 8], strides = [1, 1]} : vector<8x96xf32> to vector<8x8xf32>
    %cst_29 = arith.constant 0.353553385 : f32
    %67 = vector.broadcast %cst_29 : f32 to vector<8x8xf32>
    %68 = arith.mulf %66, %67 : vector<8x8xf32>
    %69 = vector.extract_strided_slice %31 {offsets = [0, 40], sizes = [8, 8], strides = [1, 1]} : vector<8x96xf32> to vector<8x8xf32>
    %70 = vector.extract_strided_slice %31 {offsets = [0, 72], sizes = [8, 8], strides = [1, 1]} : vector<8x96xf32> to vector<8x8xf32>
    %71 = arith.truncf %68 : vector<8x8xf32> to vector<8x8xbf16>
    %72 = arith.truncf %69 : vector<8x8xf32> to vector<8x8xbf16>
    "tpu.trace_start"() <{level = 10 : i32, message = "qd,kd->qk"}> : () -> ()
    %cst_30 = arith.constant dense<0.000000e+00> : vector<8x8xf32>
    %73 = tpu.matmul %71, %72, %cst_30 {dimension_numbers = #tpu.dot_dimension_numbers<[1], [1], [0], [0], [0, 0, 1, 0], [], []>} : vector<8x8xbf16>, vector<8x8xbf16>, vector<8x8xf32> -> vector<8x8xf32>
    %cst_31 = arith.constant 0.000000e+00 : f32
    "tpu.trace_stop"() : () -> ()
    %74 = vector.broadcast %cst_31 : f32 to vector<8x8xf32>
    %75 = arith.cmpf oeq, %34, %74 : vector<8x8xf32>
    %cst_32 = arith.constant -3.40282347E+38 : f32
    %76 = vector.broadcast %cst_32 : f32 to vector<8x8xf32>
    %77 = arith.select %75, %76, %73 : vector<8x8xi1>, vector<8x8xf32>
    %cst_33 = arith.constant dense<0xFF800000> : vector<8xf32>
    %78 = vector.multi_reduction <maximumf>, %77, %cst_33 [1] : vector<8x8xf32> to vector<8xf32>
    %79 = vector.shape_cast %78 : vector<8xf32> to vector<8x1xf32>
    %80 = vector.broadcast %79 : vector<8x1xf32> to vector<8x8xf32>
    %81 = arith.subf %77, %80 : vector<8x8xf32>
    %82 = math.exp %81 : vector<8x8xf32>
    %cst_34 = arith.constant dense<0.000000e+00> : vector<8xf32>
    %83 = vector.multi_reduction <add>, %82, %cst_34 [1] : vector<8x8xf32> to vector<8xf32>
    %84 = vector.shape_cast %83 : vector<8xf32> to vector<8x1xf32>
    %85 = tpu.reciprocal %84 {approx = true} : vector<8x1xf32> -> vector<8x1xf32>
    %86 = vector.broadcast %85 : vector<8x1xf32> to vector<8x8xf32>
    %87 = arith.mulf %82, %86 : vector<8x8xf32>
    %88 = arith.truncf %87 : vector<8x8xf32> to vector<8x8xbf16>
    %89 = arith.truncf %70 : vector<8x8xf32> to vector<8x8xbf16>
    %cst_35 = arith.constant dense<0.000000e+00> : vector<8x8xf32>
    %90 = tpu.matmul %88, %89, %cst_35 {dimension_numbers = #tpu.dot_dimension_numbers<[1], [0], [0], [1], [0, 0, 1, 1], [], []>} : vector<8x8xbf16>, vector<8x8xbf16>, vector<8x8xf32> -> vector<8x8xf32>
    %91 = arith.truncf %90 : vector<8x8xf32> to vector<8x8xbf16>
    %92 = vector.extract_strided_slice %32 {offsets = [8, 0], sizes = [8, 32], strides = [1, 1]} : vector<32x32xf32> to vector<8x32xf32>
    %93 = arith.truncf %92 : vector<8x32xf32> to vector<8x32xbf16>
    %cst_36 = arith.constant dense<0.000000e+00> : vector<8x32xf32>
    %94 = tpu.matmul %91, %93, %cst_36 {dimension_numbers = #tpu.dot_dimension_numbers<[1], [0], [0], [1], [0, 0, 1, 1], [], []>} : vector<8x8xbf16>, vector<8x32xbf16>, vector<8x32xf32> -> vector<8x32xf32>
    %95 = arith.addf %65, %94 : vector<8x32xf32>
    %96 = vector.extract_strided_slice %31 {offsets = [0, 16], sizes = [8, 8], strides = [1, 1]} : vector<8x96xf32> to vector<8x8xf32>
    %cst_37 = arith.constant 0.353553385 : f32
    %97 = vector.broadcast %cst_37 : f32 to vector<8x8xf32>
    %98 = arith.mulf %96, %97 : vector<8x8xf32>
    %99 = vector.extract_strided_slice %31 {offsets = [0, 48], sizes = [8, 8], strides = [1, 1]} : vector<8x96xf32> to vector<8x8xf32>
    %100 = vector.extract_strided_slice %31 {offsets = [0, 80], sizes = [8, 8], strides = [1, 1]} : vector<8x96xf32> to vector<8x8xf32>
    %101 = arith.truncf %98 : vector<8x8xf32> to vector<8x8xbf16>
    %102 = arith.truncf %99 : vector<8x8xf32> to vector<8x8xbf16>
    "tpu.trace_start"() <{level = 10 : i32, message = "qd,kd->qk"}> : () -> ()
    %cst_38 = arith.constant dense<0.000000e+00> : vector<8x8xf32>
    %103 = tpu.matmul %101, %102, %cst_38 {dimension_numbers = #tpu.dot_dimension_numbers<[1], [1], [0], [0], [0, 0, 1, 0], [], []>} : vector<8x8xbf16>, vector<8x8xbf16>, vector<8x8xf32> -> vector<8x8xf32>
    %cst_39 = arith.constant 0.000000e+00 : f32
    "tpu.trace_stop"() : () -> ()
    %104 = vector.broadcast %cst_39 : f32 to vector<8x8xf32>
    %105 = arith.cmpf oeq, %34, %104 : vector<8x8xf32>
    %cst_40 = arith.constant -3.40282347E+38 : f32
    %106 = vector.broadcast %cst_40 : f32 to vector<8x8xf32>
    %107 = arith.select %105, %106, %103 : vector<8x8xi1>, vector<8x8xf32>
    %cst_41 = arith.constant dense<0xFF800000> : vector<8xf32>
    %108 = vector.multi_reduction <maximumf>, %107, %cst_41 [1] : vector<8x8xf32> to vector<8xf32>
    %109 = vector.shape_cast %108 : vector<8xf32> to vector<8x1xf32>
    %110 = vector.broadcast %109 : vector<8x1xf32> to vector<8x8xf32>
    %111 = arith.subf %107, %110 : vector<8x8xf32>
    %112 = math.exp %111 : vector<8x8xf32>
    %cst_42 = arith.constant dense<0.000000e+00> : vector<8xf32>
    %113 = vector.multi_reduction <add>, %112, %cst_42 [1] : vector<8x8xf32> to vector<8xf32>
    %114 = vector.shape_cast %113 : vector<8xf32> to vector<8x1xf32>
    %115 = tpu.reciprocal %114 {approx = true} : vector<8x1xf32> -> vector<8x1xf32>
    %116 = vector.broadcast %115 : vector<8x1xf32> to vector<8x8xf32>
    %117 = arith.mulf %112, %116 : vector<8x8xf32>
    %118 = arith.truncf %117 : vector<8x8xf32> to vector<8x8xbf16>
    %119 = arith.truncf %100 : vector<8x8xf32> to vector<8x8xbf16>
    %cst_43 = arith.constant dense<0.000000e+00> : vector<8x8xf32>
    %120 = tpu.matmul %118, %119, %cst_43 {dimension_numbers = #tpu.dot_dimension_numbers<[1], [0], [0], [1], [0, 0, 1, 1], [], []>} : vector<8x8xbf16>, vector<8x8xbf16>, vector<8x8xf32> -> vector<8x8xf32>
    %121 = arith.truncf %120 : vector<8x8xf32> to vector<8x8xbf16>
    %122 = vector.extract_strided_slice %32 {offsets = [16, 0], sizes = [8, 32], strides = [1, 1]} : vector<32x32xf32> to vector<8x32xf32>
    %123 = arith.truncf %122 : vector<8x32xf32> to vector<8x32xbf16>
    %cst_44 = arith.constant dense<0.000000e+00> : vector<8x32xf32>
    %124 = tpu.matmul %121, %123, %cst_44 {dimension_numbers = #tpu.dot_dimension_numbers<[1], [0], [0], [1], [0, 0, 1, 1], [], []>} : vector<8x8xbf16>, vector<8x32xbf16>, vector<8x32xf32> -> vector<8x32xf32>
    %125 = arith.addf %95, %124 : vector<8x32xf32>
    %126 = vector.extract_strided_slice %31 {offsets = [0, 24], sizes = [8, 8], strides = [1, 1]} : vector<8x96xf32> to vector<8x8xf32>
    %cst_45 = arith.constant 0.353553385 : f32
    %127 = vector.broadcast %cst_45 : f32 to vector<8x8xf32>
    %128 = arith.mulf %126, %127 : vector<8x8xf32>
    %129 = vector.extract_strided_slice %31 {offsets = [0, 56], sizes = [8, 8], strides = [1, 1]} : vector<8x96xf32> to vector<8x8xf32>
    %130 = vector.extract_strided_slice %31 {offsets = [0, 88], sizes = [8, 8], strides = [1, 1]} : vector<8x96xf32> to vector<8x8xf32>
    %131 = arith.truncf %128 : vector<8x8xf32> to vector<8x8xbf16>
    %132 = arith.truncf %129 : vector<8x8xf32> to vector<8x8xbf16>
    "tpu.trace_start"() <{level = 10 : i32, message = "qd,kd->qk"}> : () -> ()
    %cst_46 = arith.constant dense<0.000000e+00> : vector<8x8xf32>
    %133 = tpu.matmul %131, %132, %cst_46 {dimension_numbers = #tpu.dot_dimension_numbers<[1], [1], [0], [0], [0, 0, 1, 0], [], []>} : vector<8x8xbf16>, vector<8x8xbf16>, vector<8x8xf32> -> vector<8x8xf32>
    %cst_47 = arith.constant 0.000000e+00 : f32
    "tpu.trace_stop"() : () -> ()
    %134 = vector.broadcast %cst_47 : f32 to vector<8x8xf32>
    %135 = arith.cmpf oeq, %34, %134 : vector<8x8xf32>
    %cst_48 = arith.constant -3.40282347E+38 : f32
    %136 = vector.broadcast %cst_48 : f32 to vector<8x8xf32>
    %137 = arith.select %135, %136, %133 : vector<8x8xi1>, vector<8x8xf32>
    %cst_49 = arith.constant dense<0xFF800000> : vector<8xf32>
    %138 = vector.multi_reduction <maximumf>, %137, %cst_49 [1] : vector<8x8xf32> to vector<8xf32>
    %139 = vector.shape_cast %138 : vector<8xf32> to vector<8x1xf32>
    %140 = vector.broadcast %139 : vector<8x1xf32> to vector<8x8xf32>
    %141 = arith.subf %137, %140 : vector<8x8xf32>
    %142 = math.exp %141 : vector<8x8xf32>
    %cst_50 = arith.constant dense<0.000000e+00> : vector<8xf32>
    %143 = vector.multi_reduction <add>, %142, %cst_50 [1] : vector<8x8xf32> to vector<8xf32>
    %144 = vector.shape_cast %143 : vector<8xf32> to vector<8x1xf32>
    %145 = tpu.reciprocal %144 {approx = true} : vector<8x1xf32> -> vector<8x1xf32>
    %146 = vector.broadcast %145 : vector<8x1xf32> to vector<8x8xf32>
    %147 = arith.mulf %142, %146 : vector<8x8xf32>
    %148 = arith.truncf %147 : vector<8x8xf32> to vector<8x8xbf16>
    %149 = arith.truncf %130 : vector<8x8xf32> to vector<8x8xbf16>
    %cst_51 = arith.constant dense<0.000000e+00> : vector<8x8xf32>
    %150 = tpu.matmul %148, %149, %cst_51 {dimension_numbers = #tpu.dot_dimension_numbers<[1], [0], [0], [1], [0, 0, 1, 1], [], []>} : vector<8x8xbf16>, vector<8x8xbf16>, vector<8x8xf32> -> vector<8x8xf32>
    %151 = arith.truncf %150 : vector<8x8xf32> to vector<8x8xbf16>
    %152 = vector.extract_strided_slice %32 {offsets = [24, 0], sizes = [8, 32], strides = [1, 1]} : vector<32x32xf32> to vector<8x32xf32>
    %153 = arith.truncf %152 : vector<8x32xf32> to vector<8x32xbf16>
    %cst_52 = arith.constant dense<0.000000e+00> : vector<8x32xf32>
    %154 = tpu.matmul %151, %153, %cst_52 {dimension_numbers = #tpu.dot_dimension_numbers<[1], [0], [0], [1], [0, 0, 1, 1], [], []>} : vector<8x8xbf16>, vector<8x32xbf16>, vector<8x32xf32> -> vector<8x32xf32>
    %155 = arith.addf %125, %154 : vector<8x32xf32>
    %156 = arith.addf %1, %155 : vector<8x32xf32>
    %c0_53 = arith.constant 0 : index
    %c0_54 = arith.constant 0 : index
    %157 = vector.load %arg8[%c0_53, %c0_54] : memref<1x32xf32, #tpu.memory_space<vmem>>, vector<1x32xf32>
    %158 = vector.broadcast %157 : vector<1x32xf32> to vector<8x32xf32>
    %159 = arith.addf %156, %158 : vector<8x32xf32>
    %cst_55 = arith.constant dense<0.000000e+00> : vector<8xf32>
    %160 = vector.multi_reduction <add>, %159, %cst_55 [1] : vector<8x32xf32> to vector<8xf32>
    %161 = vector.shape_cast %160 : vector<8xf32> to vector<8x1xf32>
    %cst_56 = arith.constant 3.200000e+01 : f32
    %162 = vector.broadcast %cst_56 : f32 to vector<8x1xf32>
    %163 = arith.divf %161, %162 : vector<8x1xf32>
    %164 = vector.broadcast %163 : vector<8x1xf32> to vector<8x32xf32>
    %165 = arith.subf %159, %164 : vector<8x32xf32>
    %166 = arith.mulf %165, %165 : vector<8x32xf32>
    %cst_57 = arith.constant dense<0.000000e+00> : vector<8xf32>
    %167 = vector.multi_reduction <add>, %166, %cst_57 [1] : vector<8x32xf32> to vector<8xf32>
    %168 = vector.shape_cast %167 : vector<8xf32> to vector<8x1xf32>
    %cst_58 = arith.constant 3.200000e+01 : f32
    %169 = vector.broadcast %cst_58 : f32 to vector<8x1xf32>
    %170 = arith.divf %168, %169 : vector<8x1xf32>
    %171 = vector.broadcast %163 : vector<8x1xf32> to vector<8x32xf32>
    %172 = arith.subf %159, %171 : vector<8x32xf32>
    %cst_59 = arith.constant 9.99999974E-6 : f32
    %173 = vector.broadcast %cst_59 : f32 to vector<8x1xf32>
    %174 = arith.addf %170, %173 : vector<8x1xf32>
    %175 = math.rsqrt %174 : vector<8x1xf32>
    %176 = vector.broadcast %175 : vector<8x1xf32> to vector<8x32xf32>
    %177 = arith.mulf %172, %176 : vector<8x32xf32>
    %c0_60 = arith.constant 0 : index
    %c0_61 = arith.constant 0 : index
    %178 = vector.load %arg9[%c0_60, %c0_61] : memref<1x32xf32, #tpu.memory_space<vmem>>, vector<1x32xf32>
    %179 = vector.broadcast %178 : vector<1x32xf32> to vector<8x32xf32>
    %180 = arith.mulf %177, %179 : vector<8x32xf32>
    %c0_62 = arith.constant 0 : index
    %c0_63 = arith.constant 0 : index
    %181 = vector.load %arg10[%c0_62, %c0_63] : memref<1x32xf32, #tpu.memory_space<vmem>>, vector<1x32xf32>
    %182 = vector.broadcast %181 : vector<1x32xf32> to vector<8x32xf32>
    %183 = arith.addf %180, %182 : vector<8x32xf32>
    %184 = arith.truncf %183 : vector<8x32xf32> to vector<8x32xbf16>
    %c0_64 = arith.constant 0 : index
    %c0_65 = arith.constant 0 : index
    %185 = vector.load %arg11[%c0_64, %c0_65] : memref<32x2048xbf16, #tpu.memory_space<vmem>>, vector<32x2048xbf16>
    %cst_66 = arith.constant dense<0.000000e+00> : vector<8x2048xf32>
    %186 = tpu.matmul %184, %185, %cst_66 {dimension_numbers = #tpu.dot_dimension_numbers<[1], [0], [0], [1], [0, 0, 1, 1], [], []>} : vector<8x32xbf16>, vector<32x2048xbf16>, vector<8x2048xf32> -> vector<8x2048xf32>
    %c0_67 = arith.constant 0 : index
    %c0_68 = arith.constant 0 : index
    %187 = vector.load %arg12[%c0_67, %c0_68] : memref<1x2048xf32, #tpu.memory_space<vmem>>, vector<1x2048xf32>
    %188 = vector.broadcast %187 : vector<1x2048xf32> to vector<8x2048xf32>
    %189 = arith.addf %186, %188 : vector<8x2048xf32>
    %cst_69 = arith.constant 0.000000e+00 : f32
    %190 = vector.broadcast %cst_69 : f32 to vector<8x2048xf32>
    %191 = arith.maximumf %189, %190 : vector<8x2048xf32>
    %192 = arith.truncf %191 : vector<8x2048xf32> to vector<8x2048xbf16>
    %c0_70 = arith.constant 0 : index
    %c0_71 = arith.constant 0 : index
    %193 = vector.load %arg13[%c0_70, %c0_71] : memref<2048x32xbf16, #tpu.memory_space<vmem>>, vector<2048x32xbf16>
    %cst_72 = arith.constant dense<0.000000e+00> : vector<8x32xf32>
    %194 = tpu.matmul %192, %193, %cst_72 {dimension_numbers = #tpu.dot_dimension_numbers<[1], [0], [0], [1], [0, 0, 1, 1], [], []>} : vector<8x2048xbf16>, vector<2048x32xbf16>, vector<8x32xf32> -> vector<8x32xf32>
    %c0_73 = arith.constant 0 : index
    %c0_74 = arith.constant 0 : index
    %195 = vector.load %arg14[%c0_73, %c0_74] : memref<1x32xf32, #tpu.memory_space<vmem>>, vector<1x32xf32>
    %196 = vector.broadcast %195 : vector<1x32xf32> to vector<8x32xf32>
    %197 = arith.addf %194, %196 : vector<8x32xf32>
    %198 = arith.addf %159, %197 : vector<8x32xf32>
    %c0_75 = arith.constant 0 : index
    %c0_76 = arith.constant 0 : index
    %c0_77 = arith.constant 0 : index
    %199 = vector.load %arg15[%c0_75, %c0_76, %c0_77] : memref<1x8x32xf32, #tpu.memory_space<vmem>>, vector<1x8x32xf32>
    %200 = vector.shape_cast %199 : vector<1x8x32xf32> to vector<8x32xf32>
    %201 = vector.shape_cast %198 : vector<8x32xf32> to vector<1x8x32xf32>
    tpu.vector_store %arg15[%c0_75, %c0_76, %c0_77], %201 {strides = array<i32>} : memref<1x8x32xf32, #tpu.memory_space<vmem>>, vector<1x8x32xf32>,
    return
  }
  func.func @transform_0(%arg0: i32) -> (i32, i32, i32) {
    %c0_i32 = arith.constant 0 : i32
    %c0_i32_0 = arith.constant 0 : i32
    %c0_i32_1 = arith.constant 0 : i32
    return %arg0, %c0_i32, %c0_i32_0 : i32, i32, i32
  }
  func.func @transform_1(%arg0: i32) -> (i32, i32, i32) {
    %c0_i32 = arith.constant 0 : i32
    %c0_i32_0 = arith.constant 0 : i32
    %c0_i32_1 = arith.constant 0 : i32
    return %arg0, %c0_i32, %c0_i32_0 : i32, i32, i32
  }
  func.func @transform_2(%arg0: i32) -> (i32, i32) {
    %c0_i32 = arith.constant 0 : i32
    %c0_i32_0 = arith.constant 0 : i32
    %c0_i32_1 = arith.constant 0 : i32
    return %c0_i32, %c0_i32_0 : i32, i32
  }
  func.func @transform_3(%arg0: i32) -> (i32, i32) {
    %c0_i32 = arith.constant 0 : i32
    %c0_i32_0 = arith.constant 0 : i32
    %c0_i32_1 = arith.constant 0 : i32
    return %c0_i32, %c0_i32_0 : i32, i32
  }
  func.func @transform_4(%arg0: i32) -> (i32, i32) {
    %c0_i32 = arith.constant 0 : i32
    %c0_i32_0 = arith.constant 0 : i32
    %c0_i32_1 = arith.constant 0 : i32
    return %c0_i32, %c0_i32_0 : i32, i32
  }
  func.func @transform_5(%arg0: i32) -> (i32, i32) {
    %c0_i32 = arith.constant 0 : i32
    %c0_i32_0 = arith.constant 0 : i32
    %c0_i32_1 = arith.constant 0 : i32
    return %c0_i32, %c0_i32_0 : i32, i32
  }
  func.func @transform_6(%arg0: i32) -> (i32, i32) {
    %c0_i32 = arith.constant 0 : i32
    %c0_i32_0 = arith.constant 0 : i32
    %c0_i32_1 = arith.constant 0 : i32
    return %c0_i32, %c0_i32_0 : i32, i32
  }
  func.func @transform_7(%arg0: i32) -> (i32, i32) {
    %c0_i32 = arith.constant 0 : i32
    %c0_i32_0 = arith.constant 0 : i32
    %c0_i32_1 = arith.constant 0 : i32
    return %c0_i32, %c0_i32_0 : i32, i32
  }
  func.func @transform_8(%arg0: i32) -> (i32, i32) {
    %c0_i32 = arith.constant 0 : i32
    %c0_i32_0 = arith.constant 0 : i32
    %c0_i32_1 = arith.constant 0 : i32
    return %c0_i32, %c0_i32_0 : i32, i32
  }
  func.func @transform_9(%arg0: i32) -> (i32, i32) {
    %c0_i32 = arith.constant 0 : i32
    %c0_i32_0 = arith.constant 0 : i32
    %c0_i32_1 = arith.constant 0 : i32
    return %c0_i32, %c0_i32_0 : i32, i32
  }
  func.func @transform_10(%arg0: i32) -> (i32, i32) {
    %c0_i32 = arith.constant 0 : i32
    %c0_i32_0 = arith.constant 0 : i32
    %c0_i32_1 = arith.constant 0 : i32
    return %c0_i32, %c0_i32_0 : i32, i32
  }
  func.func @transform_11(%arg0: i32) -> (i32, i32) {
    %c0_i32 = arith.constant 0 : i32
    %c0_i32_0 = arith.constant 0 : i32
    %c0_i32_1 = arith.constant 0 : i32
    return %c0_i32, %c0_i32_0 : i32, i32
  }
  func.func @transform_12(%arg0: i32) -> (i32, i32) {
    %c0_i32 = arith.constant 0 : i32
    %c0_i32_0 = arith.constant 0 : i32
    %c0_i32_1 = arith.constant 0 : i32
    return %c0_i32, %c0_i32_0 : i32, i32
  }
  func.func @transform_13(%arg0: i32) -> (i32, i32) {
    %c0_i32 = arith.constant 0 : i32
    %c0_i32_0 = arith.constant 0 : i32
    %c0_i32_1 = arith.constant 0 : i32
    return %c0_i32, %c0_i32_0 : i32, i32
  }
  func.func @transform_14(%arg0: i32) -> (i32, i32, i32) {
    %c0_i32 = arith.constant 0 : i32
    %c0_i32_0 = arith.constant 0 : i32
    %c0_i32_1 = arith.constant 0 : i32
    return %arg0, %c0_i32, %c0_i32_0 : i32, i32, i32
  }
}

</mosaic_0001>

<llo_original>
// kernel: encoder_layer_forward.1
$region0: #{encoder_layer_forward.1}
  #allocation0 [shape = 'u32[]', space=smem, size = 0x4, offset = 0x4, fixed_abs, tag = 'smem constant byte address 0x4 - core index']
  #allocation1 [shape = 'u32[144,128]{1,0:T(1,128)}', space=vmem, size = 0x12000, scoped, tag = 'internal scratch']
  %s0 = inlined_call_operand.vmem [shape: f32[2,8,32], index: 0, kind: input, shape index: {}]
  %s1 = inlined_call_operand.vmem [shape: f32[2,8,8], index: 1, kind: input, shape index: {}]
  %s2 = inlined_call_operand.vmem [shape: f32[1,32], index: 2, kind: input, shape index: {}]
  %s3 = inlined_call_operand.vmem [shape: f32[1,32], index: 3, kind: input, shape index: {}]
  %s4 = inlined_call_operand.vmem [shape: bf16[32,96], index: 4, kind: input, shape index: {}]
  %s5 = inlined_call_operand.vmem [shape: f32[1,96], index: 5, kind: input, shape index: {}]
  %s6 = inlined_call_operand.vmem [shape: f32[32,32], index: 6, kind: input, shape index: {}]
  %s7 = inlined_call_operand.vmem [shape: f32[1,32], index: 7, kind: input, shape index: {}]
  %s8 = inlined_call_operand.vmem [shape: f32[1,32], index: 8, kind: input, shape index: {}]
  %s9 = inlined_call_operand.vmem [shape: f32[1,32], index: 9, kind: input, shape index: {}]
  %s10 = inlined_call_operand.vmem [shape: bf16[32,2048], index: 10, kind: input, shape index: {}]
  %s11 = inlined_call_operand.vmem [shape: f32[1,2048], index: 11, kind: input, shape index: {}]
  %s12 = inlined_call_operand.vmem [shape: bf16[2048,32], index: 12, kind: input, shape index: {}]
  %s13 = inlined_call_operand.vmem [shape: f32[1,32], index: 13, kind: input, shape index: {}]
  %s14 = inlined_call_operand.hbm [shape: f32[2,8,32], index: 14, kind: output, shape index: {}]
  %s15 = sld [smem:[#allocation0]]
  $region89: #{encoder_layer_forward.1} parent=0
    _
  %s17 = ssub.s32 1, %s15
  %s18 = scalar_select 0, %s17, %s15
  $region1: #{encoder_layer_forward.1} parent=0
    #allocation2 [shape = 'u8[8192]{0}', space=vmem, size = 0x2000, scoped, tag = 'output window, operand 0']
    #allocation3 [shape = 's32[2]{0}', space=sflag, size = 0x8, scoped, tag = 'scoped memory for encoder_layer_forward.1']
    %19 = vsyncpa [#allocation3], 0
    %s20 = scalar_lea.sflag [#allocation3], 1
    %21 = vsyncpa %s20, 0
    loop: start=0, step=1, limit=4
    $region2: #{encoder_layer_forward.1} parent=1 // loop_pre_header
      _
    $region3: #{encoder_layer_forward.1} parent=1 // loop_header
      %s23 = sphi 0, %s27
      %p24 = scmp.ge.s32.totalorder %s23, 4
      %s33 = sphi 0, %s35
      %s36 = sphi 0, %s33
      %s37 = sphi 0, %s36
      %s53 = sphi 0, %s37
      %s59 = sphi 0, %s61
      %s62 = sphi 0, %s59
      %s63 = sphi 0, %s62
      %s79 = sphi 0, %s63
      %s83 = sphi 0, %s83
      %s85 = sphi 0, %s83
      %s86 = sphi 0, %s85
      %s100 = sphi 0, %s86
      %s104 = sphi 0, %s104
      %s106 = sphi 0, %s104
      %s107 = sphi 0, %s106
      %s121 = sphi 0, %s107
      %s125 = sphi 0, %s125
      %s127 = sphi 0, %s125
      %s128 = sphi 0, %s127
      %s142 = sphi 0, %s128
      %s146 = sphi 0, %s146
      %s148 = sphi 0, %s146
      %s149 = sphi 0, %s148
      %s163 = sphi 0, %s149
      %s167 = sphi 0, %s167
      %s169 = sphi 0, %s167
      %s170 = sphi 0, %s169
      %s184 = sphi 0, %s170
      %s188 = sphi 0, %s188
      %s190 = sphi 0, %s188
      %s191 = sphi 0, %s190
      %s205 = sphi 0, %s191
      %s209 = sphi 0, %s209
      %s211 = sphi 0, %s209
      %s212 = sphi 0, %s211
      %s226 = sphi 0, %s212
      %s230 = sphi 0, %s230
      %s232 = sphi 0, %s230
      %s233 = sphi 0, %s232
      %s247 = sphi 0, %s233
      %s251 = sphi 0, %s251
      %s253 = sphi 0, %s251
      %s254 = sphi 0, %s253
      %s268 = sphi 0, %s254
      %s272 = sphi 0, %s272
      %s274 = sphi 0, %s272
      %s275 = sphi 0, %s274
      %s289 = sphi 0, %s275
      %s293 = sphi 0, %s293
      %s295 = sphi 0, %s293
      %s296 = sphi 0, %s295
      %s310 = sphi 0, %s296
      %s314 = sphi 0, %s314
      %s316 = sphi 0, %s314
      %s317 = sphi 0, %s316
      %s331 = sphi 0, %s317
      %s337 = sphi 0, %s339
      %s340 = sphi 0, %s337
      %s341 = sphi 0, %s340
      %s357 = sphi 0, %s341
    $region4: #{encoder_layer_forward.1} parent=1 // loop_header_branch
      %26 = sbr.rel (%p24) target = $region8
    $region5: #{encoder_layer_forward.1} parent=1 // loop_body
      %s28 = ssub.s32 %s23, 1
      %s29 = ssub.s32 %s23, 2
      %s30 = sadd.s32 %s23, 1
      %s31 = ssub.s32 %s23, %s30
      %p32 = scmp.eq.s32.totalorder %s31, 0
      %s34 = sadd.s32 %s33, 1
      %s35 = scalar_select %p32, %s33, %s34
      %p38 = pneg %p32
      %p39 = scmp.eq.s32.totalorder %s23, 1
      %p40 = por %p38, %p39
      %p41 = scmp.ne.s32.totalorder %s33, %s36
      %p42 = scmp.eq.s32.totalorder %s23, 0
      %p43 = por %p41, %p42
      %p44 = scmp.ne.s32.totalorder %s33, %s36
      %p45 = scmp.eq.s32.totalorder %s28, 1
      %p46 = por %p44, %p45
      %p47 = scmp.ne.s32.totalorder %s36, %s37
      %p48 = scmp.eq.s32.totalorder %s28, 0
      %p49 = por %p47, %p48
      %p50 = scmp.ne.s32.totalorder %s36, %s37
      %p51 = scmp.eq.s32.totalorder %s29, 1
      %p52 = por %p50, %p51
      %p54 = scmp.ne.s32.totalorder %s37, %s53
      %p55 = scmp.eq.s32.totalorder %s29, 0
      %p56 = por %p54, %p55
      %s57 = ssub.s32 %s23, %s30
      %p58 = scmp.eq.s32.totalorder %s57, 0
      %s60 = sadd.s32 %s59, 1
      %s61 = scalar_select %p58, %s59, %s60
      %p64 = pneg %p58
      %p65 = scmp.eq.s32.totalorder %s23, 1
      %p66 = por %p64, %p65
      %p67 = scmp.ne.s32.totalorder %s59, %s62
      %p68 = scmp.eq.s32.totalorder %s23, 0
      %p69 = por %p67, %p68
      %p70 = scmp.ne.s32.totalorder %s59, %s62
      %p71 = scmp.eq.s32.totalorder %s28, 1
      %p72 = por %p70, %p71
      %p73 = scmp.ne.s32.totalorder %s62, %s63
      %p74 = scmp.eq.s32.totalorder %s28, 0
      %p75 = por %p73, %p74
      %p76 = scmp.ne.s32.totalorder %s62, %s63
      %p77 = scmp.eq.s32.totalorder %s29, 1
      %p78 = por %p76, %p77
      %p80 = scmp.ne.s32.totalorder %s63, %s79
      %p81 = scmp.eq.s32.totalorder %s29, 0
      %p82 = por %p80, %p81
      %s84 = sadd.s32 %s83, 1
      %p87 = scmp.eq.s32.totalorder %s23, 1
      %p88 = scmp.ne.s32.totalorder %s83, %s85
      %p89 = scmp.eq.s32.totalorder %s23, 0
      %p90 = por %p88, %p89
      %p91 = scmp.ne.s32.totalorder %s83, %s85
      %p92 = scmp.eq.s32.totalorder %s28, 1
      %p93 = por %p91, %p92
      %p94 = scmp.ne.s32.totalorder %s85, %s86
      %p95 = scmp.eq.s32.totalorder %s28, 0
      %p96 = por %p94, %p95
      %p97 = scmp.ne.s32.totalorder %s85, %s86
      %p98 = scmp.eq.s32.totalorder %s29, 1
      %p99 = por %p97, %p98
      %p101 = scmp.ne.s32.totalorder %s86, %s100
      %p102 = scmp.eq.s32.totalorder %s29, 0
      %p103 = por %p101, %p102
      %s105 = sadd.s32 %s104, 1
      %p108 = scmp.eq.s32.totalorder %s23, 1
      %p109 = scmp.ne.s32.totalorder %s104, %s106
      %p110 = scmp.eq.s32.totalorder %s23, 0
      %p111 = por %p109, %p110
      %p112 = scmp.ne.s32.totalorder %s104, %s106
      %p113 = scmp.eq.s32.totalorder %s28, 1
      %p114 = por %p112, %p113
      %p115 = scmp.ne.s32.totalorder %s106, %s107
      %p116 = scmp.eq.s32.totalorder %s28, 0
      %p117 = por %p115, %p116
      %p118 = scmp.ne.s32.totalorder %s106, %s107
      %p119 = scmp.eq.s32.totalorder %s29, 1
      %p120 = por %p118, %p119
      %p122 = scmp.ne.s32.totalorder %s107, %s121
      %p123 = scmp.eq.s32.totalorder %s29, 0
      %p124 = por %p122, %p123
      %s126 = sadd.s32 %s125, 1
      %p129 = scmp.eq.s32.totalorder %s23, 1
      %p130 = scmp.ne.s32.totalorder %s125, %s127
      %p131 = scmp.eq.s32.totalorder %s23, 0
      %p132 = por %p130, %p131
      %p133 = scmp.ne.s32.totalorder %s125, %s127
      %p134 = scmp.eq.s32.totalorder %s28, 1
      %p135 = por %p133, %p134
      %p136 = scmp.ne.s32.totalorder %s127, %s128
      %p137 = scmp.eq.s32.totalorder %s28, 0
      %p138 = por %p136, %p137
      %p139 = scmp.ne.s32.totalorder %s127, %s128
      %p140 = scmp.eq.s32.totalorder %s29, 1
      %p141 = por %p139, %p140
      %p143 = scmp.ne.s32.totalorder %s128, %s142
      %p144 = scmp.eq.s32.totalorder %s29, 0
      %p145 = por %p143, %p144
      %s147 = sadd.s32 %s146, 1
      %p150 = scmp.eq.s32.totalorder %s23, 1
      %p151 = scmp.ne.s32.totalorder %s146, %s148
      %p152 = scmp.eq.s32.totalorder %s23, 0
      %p153 = por %p151, %p152
      %p154 = scmp.ne.s32.totalorder %s146, %s148
      %p155 = scmp.eq.s32.totalorder %s28, 1
      %p156 = por %p154, %p155
      %p157 = scmp.ne.s32.totalorder %s148, %s149
      %p158 = scmp.eq.s32.totalorder %s28, 0
      %p159 = por %p157, %p158
      %p160 = scmp.ne.s32.totalorder %s148, %s149
      %p161 = scmp.eq.s32.totalorder %s29, 1
      %p162 = por %p160, %p161
      %p164 = scmp.ne.s32.totalorder %s149, %s163
      %p165 = scmp.eq.s32.totalorder %s29, 0
      %p166 = por %p164, %p165
      %s168 = sadd.s32 %s167, 1
      %p171 = scmp.eq.s32.totalorder %s23, 1
      %p172 = scmp.ne.s32.totalorder %s167, %s169
      %p173 = scmp.eq.s32.totalorder %s23, 0
      %p174 = por %p172, %p173
      %p175 = scmp.ne.s32.totalorder %s167, %s169
      %p176 = scmp.eq.s32.totalorder %s28, 1
      %p177 = por %p175, %p176
      %p178 = scmp.ne.s32.totalorder %s169, %s170
      %p179 = scmp.eq.s32.totalorder %s28, 0
      %p180 = por %p178, %p179
      %p181 = scmp.ne.s32.totalorder %s169, %s170
      %p182 = scmp.eq.s32.totalorder %s29, 1
      %p183 = por %p181, %p182
      %p185 = scmp.ne.s32.totalorder %s170, %s184
      %p186 = scmp.eq.s32.totalorder %s29, 0
      %p187 = por %p185, %p186
      %s189 = sadd.s32 %s188, 1
      %p192 = scmp.eq.s32.totalorder %s23, 1
      %p193 = scmp.ne.s32.totalorder %s188, %s190
      %p194 = scmp.eq.s32.totalorder %s23, 0
      %p195 = por %p193, %p194
      %p196 = scmp.ne.s32.totalorder %s188, %s190
      %p197 = scmp.eq.s32.totalorder %s28, 1
      %p198 = por %p196, %p197
      %p199 = scmp.ne.s32.totalorder %s190, %s191
      %p200 = scmp.eq.s32.totalorder %s28, 0
      %p201 = por %p199, %p200
      %p202 = scmp.ne.s32.totalorder %s190, %s191
      %p203 = scmp.eq.s32.totalorder %s29, 1
      %p204 = por %p202, %p203
      %p206 = scmp.ne.s32.totalorder %s191, %s205
      %p207 = scmp.eq.s32.totalorder %s29, 0
      %p208 = por %p206, %p207
      %s210 = sadd.s32 %s209, 1
      %p213 = scmp.eq.s32.totalorder %s23, 1
      %p214 = scmp.ne.s32.totalorder %s209, %s211
      %p215 = scmp.eq.s32.totalorder %s23, 0
      %p216 = por %p214, %p215
      %p217 = scmp.ne.s32.totalorder %s209, %s211
      %p218 = scmp.eq.s32.totalorder %s28, 1
      %p219 = por %p217, %p218
      %p220 = scmp.ne.s32.totalorder %s211, %s212
      %p221 = scmp.eq.s32.totalorder %s28, 0
      %p222 = por %p220, %p221
      %p223 = scmp.ne.s32.totalorder %s211, %s212
      %p224 = scmp.eq.s32.totalorder %s29, 1
      %p225 = por %p223, %p224
      %p227 = scmp.ne.s32.totalorder %s212, %s226
      %p228 = scmp.eq.s32.totalorder %s29, 0
      %p229 = por %p227, %p228
      %s231 = sadd.s32 %s230, 1
      %p234 = scmp.eq.s32.totalorder %s23, 1
      %p235 = scmp.ne.s32.totalorder %s230, %s232
      %p236 = scmp.eq.s32.totalorder %s23, 0
      %p237 = por %p235, %p236
      %p238 = scmp.ne.s32.totalorder %s230, %s232
      %p239 = scmp.eq.s32.totalorder %s28, 1
      %p240 = por %p238, %p239
      %p241 = scmp.ne.s32.totalorder %s232, %s233
      %p242 = scmp.eq.s32.totalorder %s28, 0
      %p243 = por %p241, %p242
      %p244 = scmp.ne.s32.totalorder %s232, %s233
      %p245 = scmp.eq.s32.totalorder %s29, 1
      %p246 = por %p244, %p245
      %p248 = scmp.ne.s32.totalorder %s233, %s247
      %p249 = scmp.eq.s32.totalorder %s29, 0
      %p250 = por %p248, %p249
      %s252 = sadd.s32 %s251, 1
      %p255 = scmp.eq.s32.totalorder %s23, 1
      %p256 = scmp.ne.s32.totalorder %s251, %s253
      %p257 = scmp.eq.s32.totalorder %s23, 0
      %p258 = por %p256, %p257
      %p259 = scmp.ne.s32.totalorder %s251, %s253
      %p260 = scmp.eq.s32.totalorder %s28, 1
      %p261 = por %p259, %p260
      %p262 = scmp.ne.s32.totalorder %s253, %s254
      %p263 = scmp.eq.s32.totalorder %s28, 0
      %p264 = por %p262, %p263
      %p265 = scmp.ne.s32.totalorder %s253, %s254
      %p266 = scmp.eq.s32.totalorder %s29, 1
      %p267 = por %p265, %p266
      %p269 = scmp.ne.s32.totalorder %s254, %s268
      %p270 = scmp.eq.s32.totalorder %s29, 0
      %p271 = por %p269, %p270
      %s273 = sadd.s32 %s272, 1
      %p276 = scmp.eq.s32.totalorder %s23, 1
      %p277 = scmp.ne.s32.totalorder %s272, %s274
      %p278 = scmp.eq.s32.totalorder %s23, 0
      %p279 = por %p277, %p278
      %p280 = scmp.ne.s32.totalorder %s272, %s274
      %p281 = scmp.eq.s32.totalorder %s28, 1
      %p282 = por %p280, %p281
      %p283 = scmp.ne.s32.totalorder %s274, %s275
      %p284 = scmp.eq.s32.totalorder %s28, 0
      %p285 = por %p283, %p284
      %p286 = scmp.ne.s32.totalorder %s274, %s275
      %p287 = scmp.eq.s32.totalorder %s29, 1
      %p288 = por %p286, %p287
      %p290 = scmp.ne.s32.totalorder %s275, %s289
      %p291 = scmp.eq.s32.totalorder %s29, 0
      %p292 = por %p290, %p291
      %s294 = sadd.s32 %s293, 1
      %p297 = scmp.eq.s32.totalorder %s23, 1
      %p298 = scmp.ne.s32.totalorder %s293, %s295
      %p299 = scmp.eq.s32.totalorder %s23, 0
      %p300 = por %p298, %p299
      %p301 = scmp.ne.s32.totalorder %s293, %s295
      %p302 = scmp.eq.s32.totalorder %s28, 1
      %p303 = por %p301, %p302
      %p304 = scmp.ne.s32.totalorder %s295, %s296
      %p305 = scmp.eq.s32.totalorder %s28, 0
      %p306 = por %p304, %p305
      %p307 = scmp.ne.s32.totalorder %s295, %s296
      %p308 = scmp.eq.s32.totalorder %s29, 1
      %p309 = por %p307, %p308
      %p311 = scmp.ne.s32.totalorder %s296, %s310
      %p312 = scmp.eq.s32.totalorder %s29, 0
      %p313 = por %p311, %p312
      %s315 = sadd.s32 %s314, 1
      %p318 = scmp.eq.s32.totalorder %s23, 1
      %p319 = scmp.ne.s32.totalorder %s314, %s316
      %p320 = scmp.eq.s32.totalorder %s23, 0
      %p321 = por %p319, %p320
      %p322 = scmp.ne.s32.totalorder %s314, %s316
      %p323 = scmp.eq.s32.totalorder %s28, 1
      %p324 = por %p322, %p323
      %p325 = scmp.ne.s32.totalorder %s316, %s317
      %p326 = scmp.eq.s32.totalorder %s28, 0
      %p327 = por %p325, %p326
      %p328 = scmp.ne.s32.totalorder %s316, %s317
      %p329 = scmp.eq.s32.totalorder %s29, 1
      %p330 = por %p328, %p329
      %p332 = scmp.ne.s32.totalorder %s317, %s331
      %p333 = scmp.eq.s32.totalorder %s29, 0
      %p334 = por %p332, %p333
      %s335 = ssub.s32 %s23, %s30
      %p336 = scmp.eq.s32.totalorder %s335, 0
      %s338 = sadd.s32 %s337, 1
      %s339 = scalar_select %p336, %s337, %s338
      %p342 = pneg %p336
      %p343 = scmp.eq.s32.totalorder %s23, 1
      %p344 = por %p342, %p343
      %p345 = scmp.ne.s32.totalorder %s337, %s340
      %p346 = scmp.eq.s32.totalorder %s23, 0
      %p347 = por %p345, %p346
      %p348 = scmp.ne.s32.totalorder %s337, %s340
      %p349 = scmp.eq.s32.totalorder %s28, 1
      %p350 = por %p348, %p349
      %p351 = scmp.ne.s32.totalorder %s340, %s341
      %p352 = scmp.eq.s32.totalorder %s28, 0
      %p353 = por %p351, %p352
      %p354 = scmp.ne.s32.totalorder %s340, %s341
      %p355 = scmp.eq.s32.totalorder %s29, 1
      %p356 = por %p354, %p355
      %p358 = scmp.ne.s32.totalorder %s341, %s357
      %p359 = scmp.eq.s32.totalorder %s29, 0
      %p360 = por %p358, %p359
      %p361 = scmp.le.s32.totalorder 1, %s23
      %p362 = scmp.lt.s32.totalorder %s23, 3
      %p363 = pnand %p361, %p362
      %p364 = pneg %p363
      // Predicated region
      $region9: #{encoder_layer_forward.1} parent=5 // pred_check
        _
      $region10: #{encoder_layer_forward.1} parent=5 // pred_check_branch
        %366 = sbr.rel (%p363) target = $region12
      $region11: #{encoder_layer_forward.1} parent=5 // pred_region
        %s367 = ssub.s32 %s23, 1
        // Predicated region
        $region13: #{encoder_layer_forward.1} parent=11 // pred_check
          %p368 = pneg %p96
        $region14: #{encoder_layer_forward.1} parent=11 // pred_check_branch
          %370 = sbr.rel (%p368) target = $region16
        $region15: #{encoder_layer_forward.1} parent=11 // pred_region
          _
        $region16: #{encoder_layer_forward.1} parent=11 // pred_fallthru
          _
        // Predicated region
        $region17: #{encoder_layer_forward.1} parent=11 // pred_check
          %p371 = pneg %p117
        $region18: #{encoder_layer_forward.1} parent=11 // pred_check_branch
          %373 = sbr.rel (%p371) target = $region20
        $region19: #{encoder_layer_forward.1} parent=11 // pred_region
          _
        $region20: #{encoder_layer_forward.1} parent=11 // pred_fallthru
          _
        // Predicated region
        $region21: #{encoder_layer_forward.1} parent=11 // pred_check
          %p374 = pneg %p138
        $region22: #{encoder_layer_forward.1} parent=11 // pred_check_branch
          %376 = sbr.rel (%p374) target = $region24
        $region23: #{encoder_layer_forward.1} parent=11 // pred_region
          _
        $region24: #{encoder_layer_forward.1} parent=11 // pred_fallthru
          _
        // Predicated region
        $region25: #{encoder_layer_forward.1} parent=11 // pred_check
          %p377 = pneg %p159
        $region26: #{encoder_layer_forward.1} parent=11 // pred_check_branch
          %379 = sbr.rel (%p377) target = $region28
        $region27: #{encoder_layer_forward.1} parent=11 // pred_region
          _
        $region28: #{encoder_layer_forward.1} parent=11 // pred_fallthru
          _
        // Predicated region
        $region29: #{encoder_layer_forward.1} parent=11 // pred_check
          %p380 = pneg %p180
        $region30: #{encoder_layer_forward.1} parent=11 // pred_check_branch
          %382 = sbr.rel (%p380) target = $region32
        $region31: #{encoder_layer_forward.1} parent=11 // pred_region
          _
        $region32: #{encoder_layer_forward.1} parent=11 // pred_fallthru
          _
        // Predicated region
        $region33: #{encoder_layer_forward.1} parent=11 // pred_check
          %p383 = pneg %p201
        $region34: #{encoder_layer_forward.1} parent=11 // pred_check_branch
          %385 = sbr.rel (%p383) target = $region36
        $region35: #{encoder_layer_forward.1} parent=11 // pred_region
          _
        $region36: #{encoder_layer_forward.1} parent=11 // pred_fallthru
          _
        // Predicated region
        $region37: #{encoder_layer_forward.1} parent=11 // pred_check
          %p386 = pneg %p222
        $region38: #{encoder_layer_forward.1} parent=11 // pred_check_branch
          %388 = sbr.rel (%p386) target = $region40
        $region39: #{encoder_layer_forward.1} parent=11 // pred_region
          _
        $region40: #{encoder_layer_forward.1} parent=11 // pred_fallthru
          _
        // Predicated region
        $region41: #{encoder_layer_forward.1} parent=11 // pred_check
          %p389 = pneg %p243
        $region42: #{encoder_layer_forward.1} parent=11 // pred_check_branch
          %391 = sbr.rel (%p389) target = $region44
        $region43: #{encoder_layer_forward.1} parent=11 // pred_region
          _
        $region44: #{encoder_layer_forward.1} parent=11 // pred_fallthru
          _
        // Predicated region
        $region45: #{encoder_layer_forward.1} parent=11 // pred_check
          %p392 = pneg %p264
        $region46: #{encoder_layer_forward.1} parent=11 // pred_check_branch
          %394 = sbr.rel (%p392) target = $region48
        $region47: #{encoder_layer_forward.1} parent=11 // pred_region
          _
        $region48: #{encoder_layer_forward.1} parent=11 // pred_fallthru
          _
        // Predicated region
        $region49: #{encoder_layer_forward.1} parent=11 // pred_check
          %p395 = pneg %p285
        $region50: #{encoder_layer_forward.1} parent=11 // pred_check_branch
          %397 = sbr.rel (%p395) target = $region52
        $region51: #{encoder_layer_forward.1} parent=11 // pred_region
          _
        $region52: #{encoder_layer_forward.1} parent=11 // pred_fallthru
          _
        // Predicated region
        $region53: #{encoder_layer_forward.1} parent=11 // pred_check
          %p398 = pneg %p306
        $region54: #{encoder_layer_forward.1} parent=11 // pred_check_branch
          %400 = sbr.rel (%p398) target = $region56
        $region55: #{encoder_layer_forward.1} parent=11 // pred_region
          _
        $region56: #{encoder_layer_forward.1} parent=11 // pred_fallthru
          _
        // Predicated region
        $region57: #{encoder_layer_forward.1} parent=11 // pred_check
          %p401 = pneg %p327
        $region58: #{encoder_layer_forward.1} parent=11 // pred_check_branch
          %403 = sbr.rel (%p401) target = $region60
        $region59: #{encoder_layer_forward.1} parent=11 // pred_region
          _
        $region60: #{encoder_layer_forward.1} parent=11 // pred_fallthru
          _
      $region12: #{encoder_layer_forward.1} parent=5 // pred_fallthru
        _
      %p404 = scmp.lt.s32.totalorder %s23, 2
      // Predicated region
      $region61: #{encoder_layer_forward.1} parent=5 // pred_check
        %p405 = pneg %p404
      $region62: #{encoder_layer_forward.1} parent=5 // pred_check_branch
        %407 = sbr.rel (%p405) target = $region64
      $region63: #{encoder_layer_forward.1} parent=5 // pred_region
        // Predicated region
        $region65: #{encoder_layer_forward.1} parent=63 // pred_check
          %p408 = pneg %p43
        $region66: #{encoder_layer_forward.1} parent=63 // pred_check_branch
          %410 = sbr.rel (%p408) target = $region68
        $region67: #{encoder_layer_forward.1} parent=63 // pred_region
          %p411 = scmp.lt.s32.totalorder %s23, 1
          %s412 = scalar_select %p411, %s23, 1
          %s413 = smul.addr %s412, 8
          %s414 = scalar_lea.vmem %s0, %s413
        $region68: #{encoder_layer_forward.1} parent=63 // pred_fallthru
          _
        // Predicated region
        $region69: #{encoder_layer_forward.1} parent=63 // pred_check
          %p415 = pneg %p69
        $region70: #{encoder_layer_forward.1} parent=63 // pred_check_branch
          %417 = sbr.rel (%p415) target = $region72
        $region71: #{encoder_layer_forward.1} parent=63 // pred_region
          %p418 = scmp.lt.s32.totalorder %s23, 1
          %s419 = scalar_select %p418, %s23, 1
          %s420 = smul.addr %s419, 8
          %s421 = scalar_lea.vmem %s1, %s420
        $region72: #{encoder_layer_forward.1} parent=63 // pred_fallthru
          _
      $region64: #{encoder_layer_forward.1} parent=5 // pred_fallthru
        _
      %p422 = scmp.le.s32.totalorder 1, %s23
      %p423 = scmp.lt.s32.totalorder %s23, 3
      %p424 = pnand %p422, %p423
      %p425 = pneg %p424
      // Predicated region
      $region73: #{encoder_layer_forward.1} parent=5 // pred_check
        _
      $region74: #{encoder_layer_forward.1} parent=5 // pred_check_branch
        %427 = sbr.rel (%p424) target = $region76
      $region75: #{encoder_layer_forward.1} parent=5 // pred_region
        %s428 = ssub.s32 %s23, 1
        %p429 = scmp.lt.s32.totalorder %s28, 1
        %s430 = scalar_select %p429, %s28, 1
        %s431 = smul.addr %s430, 8
        %s432 = scalar_lea.vmem %s0, %s431
        %p433 = pneg %p49
        %p434 = pneg %p46
        %p435 = scmp.lt.s32.totalorder %s28, 1
        %s436 = scalar_select %p435, %s28, 1
        %s437 = smul.addr %s436, 8
        %s438 = scalar_lea.vmem %s1, %s437
        %p439 = pneg %p75
        %p440 = pneg %p72
        %p441 = pneg %p96
        %p442 = pneg %p93
        %p443 = pneg %p117
        %p444 = pneg %p114
        %p445 = pneg %p138
        %p446 = pneg %p135
        %p447 = pneg %p159
        %p448 = pneg %p156
        %p449 = pneg %p180
        %p450 = pneg %p177
        %p451 = pneg %p201
        %p452 = pneg %p198
        %p453 = pneg %p222
        %p454 = pneg %p219
        %p455 = pneg %p243
        %p456 = pneg %p240
        %p457 = pneg %p264
        %p458 = pneg %p261
        %p459 = pneg %p285
        %p460 = pneg %p282
        %p461 = pneg %p306
        %p462 = pneg %p303
        %p463 = pneg %p327
        %p464 = pneg %p324
        %p465 = pneg %p353
        %p466 = pneg %p350
        %s467 = sand.u32 %s340, 1
        %s468 = scalar_lea.sflag [#allocation3], %s467
        %s469 = sand.u32 %s340, 1
        %s470 = smul.addr %s469, 8
        %s471 = scalar_lea.vmem [#allocation2], %s470
        %p472 = scmp.lt.s32.totalorder %s28, 1
        %s473 = scalar_select %p472, %s28, 1
        %s474 = smul.addr %s473, 8
        %s475 = scalar_lea.vmem %s0, %s474
        %p476 = scmp.lt.s32.totalorder %s28, 1
        %s477 = scalar_select %p476, %s28, 1
        %s478 = smul.addr %s477, 8
        %s479 = scalar_lea.vmem %s1, %s478
        %v481 = vld [vmem:[%s475] sm:$0xff]
        %vm482 = vcmask 261120
        %v483 = vsel %vm482, %v481, 0.0
        %484 = vadd.xlane.f32.xlu0 %v483
        %v485 = vpop.xlane.xlu0 %484
        %v486 = vrcp.pop 32.0
        %v487 = vmul.f32 %v485, %v486
        %v488 = vsub.f32 %v481, %v487
        %v489 = vmul.f32 %v488, %v488
        %v490 = vsel %vm482, %v489, 0.0
        %491 = vadd.xlane.f32.xlu0 %v490
        %v492 = vpop.xlane.xlu0 %491
        %v493 = vmul.f32 %v492, %v486
        %v494 = vadd.f32 %v493, 1e-05
        %v495 = vrsqrt.pop %v494
        %v496 = vmul.f32 %v488, %v495
        %v497 = vld [vmem:[%s2] sm:$0x1]
        %v499 = vlaneseq
        %v500 = vshrl.u32 %v499, 7
        %v501 = vsub.s32 0, %v500
        %v502 = vrot.slane %v497, %v501
        %v504 = vmul.f32 %v496, %v502
        %v505 = vld [vmem:[%s3] sm:$0x1]
        %v507 = vlaneseq
        %v508 = vshrl.u32 %v507, 7
        %v509 = vsub.s32 0, %v508
        %v510 = vrot.slane %v505, %v509
        %v512 = vadd.f32 %v504, %v510
        %v513 = vpack.c.bf16 %v512, %v512
        %v514 = vld [vmem:[%s4] sm:$0xf]
        %v515 = vld [vmem:[%s4 + $0x4] sm:$0xf]
        %v516 = vld [vmem:[%s4 + $0x8] sm:$0xf]
        %v517 = vld [vmem:[%s4 + $0xc] sm:$0xf]
        %v518 = vld [vmem:[%s5] sm:$0x1]
        %v520 = vlaneseq
        %v521 = vshrl.u32 %v520, 7
        %v522 = vsub.s32 0, %v521
        %v523 = vrot.slane %v518, %v522
        %v529 = vunpack.c.l.b16 %v514
        %v530 = vunpack.c.l.b16 %v515
        %v531 = vunpack.c.l.b16 %v516
        %v532 = vunpack.c.l.b16 %v517
        %v533 = vpack.c.b16 %v530, %v529
        %v534 = vpack.c.b16 %v532, %v531
        %v538 = vsel %vm482, %v513, 0
        %540 = vmatprep.subr.bf16.mxu0 0
        %541 = vmatpush1.bf16.msra.mxu0 %v533
        %542 = vmatprep.subr.bf16.mxu0 0
        %543 = vmatpush1.bf16.msra.mxu0 %v534
        %544 = vmatprep.subr.bf16.mxu0 0
        %545 = vmatpush1.bf16.msra.mxu0 0
        %546 = vmatprep.subr.bf16.mxu0 0
        %547 = vmatpush1.bf16.msra.mxu0 0
        %548 = vmatprep.subr.bf16.mxu0 0
        %549 = vmatpush1.bf16.msra.mxu0 0
        %550 = vmatprep.subr.bf16.mxu0 0
        %551 = vmatpush1.bf16.msra.mxu0 0
        %552 = vmatprep.subr.bf16.mxu0 0
        %553 = vmatpush1.bf16.msra.mxu0 0
        %554 = vmatprep.subr.bf16.mxu0 0
        %555 = vmatpush1.bf16.msra.mxu0 0
        %556 = vmatprep.subr.bf16.mxu0 0
        %557 = vmatpush1.bf16.msra.mxu0 0
        %558 = vmatprep.subr.bf16.mxu0 0
        %559 = vmatpush1.bf16.msra.mxu0 0
        %560 = vmatprep.subr.bf16.mxu0 0
        %561 = vmatpush1.bf16.msra.mxu0 0
        %562 = vmatprep.subr.bf16.mxu0 0
        %563 = vmatpush1.bf16.msra.mxu0 0
        %564 = vmatprep.subr.bf16.mxu0 0
        %565 = vmatpush1.bf16.msra.mxu0 0
        %566 = vmatprep.subr.bf16.mxu0 0
        %567 = vmatpush1.bf16.msra.mxu0 0
        %568 = vmatprep.subr.bf16.mxu0 0
        %569 = vmatpush1.bf16.msra.mxu0 0
        %570 = vmatprep.subr.bf16.mxu0 0
        %571 = vmatpush1.bf16.msra.mxu0 0
        %572 = vmatprep.mubr.bf16.mxu0 0
        %573 = vmatmul.mubr.bf16.gmra.mrb[0].mxu0 %v538
        %v574 = vpop.f32.mrb[0].mxu0
        %v575 = vadd.f32 %v523, %v574
        %v576 = vpop.f32.mrb[0].mxu0
        %v577 = vpop.f32.mrb[0].mxu0
        %v578 = vpop.f32.mrb[0].mxu0
        %579 = vdwg.mxu0
        %v580 = vld [vmem:[%s6] sm:$0xff]
        %v581 = vld [vmem:[%s6 + $0x8] sm:$0xff]
        %v582 = vld [vmem:[%s6 + $0x10] sm:$0xff]
        %v583 = vld [vmem:[%s6 + $0x18] sm:$0xff]
        %v584 = vld [vmem:[%s479] sm:$0xff]
        %v585 = vmul.f32 %v575, 0.35355338
        %v586 = vpack.c.bf16 %v585, %v585
        %v587 = vpack.c.bf16 %v575, %v575
        %589 = vrot.lane.b32.xlu0 %v587, 96
        %v590 = vpop.permute.xlu0 %589
        %vm591 = vcmask 64512
        %v593 = vsel %vm591, %v586, 0
        %v596 = vsel %vm591, %v590, 0
        %598 = vmatprep.subr.bf16.mxu0 0
        %599 = vmatpush1.bf16.xpose.msra.mxu0 %v596
        %600 = vmatprep.subr.bf16.mxu0 0
        %601 = vmatpush1.bf16.xpose.msra.mxu0 0
        %602 = vmatprep.subr.bf16.mxu0 0
        %603 = vmatpush1.bf16.xpose.msra.mxu0 0
        %604 = vmatprep.subr.bf16.mxu0 0
        %605 = vmatpush1.bf16.xpose.msra.mxu0 0
        %606 = vmatprep.subr.bf16.mxu0 0
        %607 = vmatpush1.bf16.xpose.msra.mxu0 0
        %608 = vmatprep.subr.bf16.mxu0 0
        %609 = vmatpush1.bf16.xpose.msra.mxu0 0
        %610 = vmatprep.subr.bf16.mxu0 0
        %611 = vmatpush1.bf16.xpose.msra.mxu0 0
        %612 = vmatprep.subr.bf16.mxu0 0
        %613 = vmatpush1.bf16.xpose.msra.mxu0 0
        %614 = vmatprep.subr.bf16.mxu0 0
        %615 = vmatpush1.bf16.xpose.msra.mxu0 0
        %616 = vmatprep.subr.bf16.mxu0 0
        %617 = vmatpush1.bf16.xpose.msra.mxu0 0
        %618 = vmatprep.subr.bf16.mxu0 0
        %619 = vmatpush1.bf16.xpose.msra.mxu0 0
        %620 = vmatprep.subr.bf16.mxu0 0
        %621 = vmatpush1.bf16.xpose.msra.mxu0 0
        %622 = vmatprep.subr.bf16.mxu0 0
        %623 = vmatpush1.bf16.xpose.msra.mxu0 0
        %624 = vmatprep.subr.bf16.mxu0 0
        %625 = vmatpush1.bf16.xpose.msra.mxu0 0
        %626 = vmatprep.subr.bf16.mxu0 0
        %627 = vmatpush1.bf16.xpose.msra.mxu0 0
        %628 = vmatprep.subr.bf16.mxu0 0
        %629 = vmatpush1.bf16.xpose.msra.mxu0 0
        %630 = vmatprep.mubr.bf16.mxu0 0
        %631 = vmatmul.mubr.bf16.gmra.mrb[0].mxu0 %v593
        %v632 = vpop.f32.mrb[0].mxu0
        %v633 = vadd.f32 0.0, %v632
        %v634 = vpop.f32.mrb[0].mxu0
        %v635 = vpop.f32.mrb[0].mxu0
        %v636 = vpop.f32.mrb[0].mxu0
        %637 = vdwg.mxu0
        %vm638 = vcmp.eq.f32.partialorder %v584, 0.0
        %v639 = vsel %vm638, -3.4028235e+38, %v633
        %v640 = vsel %vm591, %v639, -inf
        %641 = vmax.xlane.f32.xlu0 %v640
        %v642 = vpop.xlane.xlu0 %641
        %v643 = vsub.f32 %v639, %v642
        %v644 = vmul.f32 %v643, 1.442695
        %v645 = vpow.pop %v644
        %v646 = vsel %vm591, %v645, 0.0
        %647 = vadd.xlane.f32.xlu0 %v646
        %v648 = vpop.xlane.xlu0 %647
        %v649 = vrcp.pop %v648
        %v650 = vmul.f32 %v645, %v649
        %v651 = vpack.c.bf16 %v650, %v650
        %652 = vrot.lane.b32.xlu0 %v587, 64
        %v653 = vpop.permute.xlu0 %652
        %v655 = vsel %vm591, %v651, 0
        %vm657 = vcmask 1043456
        %v659 = vsel %vm657, %v653, 0
        %661 = vmatprep.subr.bf16.mxu0 0
        %662 = vmatpush1.bf16.msra.mxu0 %v659
        %663 = vmatprep.subr.bf16.mxu0 0
        %664 = vmatpush1.bf16.msra.mxu0 0
        %665 = vmatprep.subr.bf16.mxu0 0
        %666 = vmatpush1.bf16.msra.mxu0 0
        %667 = vmatprep.subr.bf16.mxu0 0
        %668 = vmatpush1.bf16.msra.mxu0 0
        %669 = vmatprep.subr.bf16.mxu0 0
        %670 = vmatpush1.bf16.msra.mxu0 0
        %671 = vmatprep.subr.bf16.mxu0 0
        %672 = vmatpush1.bf16.msra.mxu0 0
        %673 = vmatprep.subr.bf16.mxu0 0
        %674 = vmatpush1.bf16.msra.mxu0 0
        %675 = vmatprep.subr.bf16.mxu0 0
        %676 = vmatpush1.bf16.msra.mxu0 0
        %677 = vmatprep.subr.bf16.mxu0 0
        %678 = vmatpush1.bf16.msra.mxu0 0
        %679 = vmatprep.subr.bf16.mxu0 0
        %680 = vmatpush1.bf16.msra.mxu0 0
        %681 = vmatprep.subr.bf16.mxu0 0
        %682 = vmatpush1.bf16.msra.mxu0 0
        %683 = vmatprep.subr.bf16.mxu0 0
        %684 = vmatpush1.bf16.msra.mxu0 0
        %685 = vmatprep.subr.bf16.mxu0 0
        %686 = vmatpush1.bf16.msra.mxu0 0
        %687 = vmatprep.subr.bf16.mxu0 0
        %688 = vmatpush1.bf16.msra.mxu0 0
        %689 = vmatprep.subr.bf16.mxu0 0
        %690 = vmatpush1.bf16.msra.mxu0 0
        %691 = vmatprep.subr.bf16.mxu0 0
        %692 = vmatpush1.bf16.msra.mxu0 0
        %693 = vmatprep.mubr.bf16.mxu0 0
        %694 = vmatmul.mubr.bf16.gmra.mrb[0].mxu0 %v655
        %v695 = vpop.f32.mrb[0].mxu0
        %v696 = vadd.f32 0.0, %v695
        %v697 = vpop.f32.mrb[0].mxu0
        %v698 = vpop.f32.mrb[0].mxu0
        %v699 = vpop.f32.mrb[0].mxu0
        %700 = vdwg.mxu0
        %v701 = vpack.c.bf16 %v696, %v696
        %v702 = vpack.c.bf16 %v580, %v580
        %704 = vrot.lane.b32.xlu0 %v586, 120
        %v705 = vpop.permute.xlu0 %704
        %706 = vrot.lane.b32.xlu0 %v587, 88
        %v707 = vpop.permute.xlu0 %706
        %v709 = vsel %vm591, %v705, 0
        %v712 = vsel %vm591, %v707, 0
        %714 = vmatprep.subr.bf16.mxu0 0
        %715 = vmatpush1.bf16.xpose.msra.mxu0 %v712
        %716 = vmatprep.subr.bf16.mxu0 0
        %717 = vmatpush1.bf16.xpose.msra.mxu0 0
        %718 = vmatprep.subr.bf16.mxu0 0
        %719 = vmatpush1.bf16.xpose.msra.mxu0 0
        %720 = vmatprep.subr.bf16.mxu0 0
        %721 = vmatpush1.bf16.xpose.msra.mxu0 0
        %722 = vmatprep.subr.bf16.mxu0 0
        %723 = vmatpush1.bf16.xpose.msra.mxu0 0
        %724 = vmatprep.subr.bf16.mxu0 0
        %725 = vmatpush1.bf16.xpose.msra.mxu0 0
        %726 = vmatprep.subr.bf16.mxu0 0
        %727 = vmatpush1.bf16.xpose.msra.mxu0 0
        %728 = vmatprep.subr.bf16.mxu0 0
        %729 = vmatpush1.bf16.xpose.msra.mxu0 0
        %730 = vmatprep.subr.bf16.mxu0 0
        %731 = vmatpush1.bf16.xpose.msra.mxu0 0
        %732 = vmatprep.subr.bf16.mxu0 0
        %733 = vmatpush1.bf16.xpose.msra.mxu0 0
        %734 = vmatprep.subr.bf16.mxu0 0
        %735 = vmatpush1.bf16.xpose.msra.mxu0 0
        %736 = vmatprep.subr.bf16.mxu0 0
        %737 = vmatpush1.bf16.xpose.msra.mxu0 0
        %738 = vmatprep.subr.bf16.mxu0 0
        %739 = vmatpush1.bf16.xpose.msra.mxu0 0
        %740 = vmatprep.subr.bf16.mxu0 0
        %741 = vmatpush1.bf16.xpose.msra.mxu0 0
        %742 = vmatprep.subr.bf16.mxu0 0
        %743 = vmatpush1.bf16.xpose.msra.mxu0 0
        %744 = vmatprep.subr.bf16.mxu0 0
        %745 = vmatpush1.bf16.xpose.msra.mxu0 0
        %746 = vmatprep.mubr.bf16.mxu0 0
        %747 = vmatmul.mubr.bf16.gmra.mrb[0].mxu0 %v709
        %v748 = vpop.f32.mrb[0].mxu0
        %v749 = vadd.f32 0.0, %v748
        %v750 = vpop.f32.mrb[0].mxu0
        %v751 = vpop.f32.mrb[0].mxu0
        %v752 = vpop.f32.mrb[0].mxu0
        %753 = vdwg.mxu0
        %v754 = vsel %vm638, -3.4028235e+38, %v749
        %v755 = vsel %vm591, %v754, -inf
        %756 = vmax.xlane.f32.xlu0 %v755
        %v757 = vpop.xlane.xlu0 %756
        %v758 = vsub.f32 %v754, %v757
        %v759 = vmul.f32 %v758, 1.442695
        %v760 = vpow.pop %v759
        %v761 = vsel %vm591, %v760, 0.0
        %762 = vadd.xlane.f32.xlu0 %v761
        %v763 = vpop.xlane.xlu0 %762
        %v764 = vrcp.pop %v763
        %v765 = vmul.f32 %v760, %v764
        %v766 = vpack.c.bf16 %v765, %v765
        %767 = vrot.lane.b32.xlu0 %v587, 56
        %v768 = vpop.permute.xlu0 %767
        %v770 = vsel %vm591, %v766, 0
        %v773 = vsel %vm657, %v768, 0
        %775 = vmatprep.subr.bf16.mxu0 0
        %776 = vmatpush1.bf16.msra.mxu0 %v773
        %777 = vmatprep.subr.bf16.mxu0 0
        %778 = vmatpush1.bf16.msra.mxu0 0
        %779 = vmatprep.subr.bf16.mxu0 0
        %780 = vmatpush1.bf16.msra.mxu0 0
        %781 = vmatprep.subr.bf16.mxu0 0
        %782 = vmatpush1.bf16.msra.mxu0 0
        %783 = vmatprep.subr.bf16.mxu0 0
        %784 = vmatpush1.bf16.msra.mxu0 0
        %785 = vmatprep.subr.bf16.mxu0 0
        %786 = vmatpush1.bf16.msra.mxu0 0
        %787 = vmatprep.subr.bf16.mxu0 0
        %788 = vmatpush1.bf16.msra.mxu0 0
        %789 = vmatprep.subr.bf16.mxu0 0
        %790 = vmatpush1.bf16.msra.mxu0 0
        %791 = vmatprep.subr.bf16.mxu0 0
        %792 = vmatpush1.bf16.msra.mxu0 0
        %793 = vmatprep.subr.bf16.mxu0 0
        %794 = vmatpush1.bf16.msra.mxu0 0
        %795 = vmatprep.subr.bf16.mxu0 0
        %796 = vmatpush1.bf16.msra.mxu0 0
        %797 = vmatprep.subr.bf16.mxu0 0
        %798 = vmatpush1.bf16.msra.mxu0 0
        %799 = vmatprep.subr.bf16.mxu0 0
        %800 = vmatpush1.bf16.msra.mxu0 0
        %801 = vmatprep.subr.bf16.mxu0 0
        %802 = vmatpush1.bf16.msra.mxu0 0
        %803 = vmatprep.subr.bf16.mxu0 0
        %804 = vmatpush1.bf16.msra.mxu0 0
        %805 = vmatprep.subr.bf16.mxu0 0
        %806 = vmatpush1.bf16.msra.mxu0 0
        %807 = vmatprep.mubr.bf16.mxu0 0
        %808 = vmatmul.mubr.bf16.gmra.mrb[0].mxu0 %v770
        %v809 = vpop.f32.mrb[0].mxu0
        %v810 = vadd.f32 0.0, %v809
        %v811 = vpop.f32.mrb[0].mxu0
        %v812 = vpop.f32.mrb[0].mxu0
        %v813 = vpop.f32.mrb[0].mxu0
        %814 = vdwg.mxu0
        %v815 = vpack.c.bf16 %v810, %v810
        %v816 = vpack.c.bf16 %v581, %v581
        %v818 = vsel %vm591, %v815, 0
        %v821 = vsel %vm657, %v816, 0
        %823 = vmatprep.subr.bf16.mxu0 0
        %824 = vmatpush1.bf16.msra.mxu0 %v821
        %825 = vmatprep.subr.bf16.mxu0 0
        %826 = vmatpush1.bf16.msra.mxu0 0
        %827 = vmatprep.subr.bf16.mxu0 0
        %828 = vmatpush1.bf16.msra.mxu0 0
        %829 = vmatprep.subr.bf16.mxu0 0
        %830 = vmatpush1.bf16.msra.mxu0 0
        %831 = vmatprep.subr.bf16.mxu0 0
        %832 = vmatpush1.bf16.msra.mxu0 0
        %833 = vmatprep.subr.bf16.mxu0 0
        %834 = vmatpush1.bf16.msra.mxu0 0
        %835 = vmatprep.subr.bf16.mxu0 0
        %836 = vmatpush1.bf16.msra.mxu0 0
        %837 = vmatprep.subr.bf16.mxu0 0
        %838 = vmatpush1.bf16.msra.mxu0 0
        %839 = vmatprep.subr.bf16.mxu0 0
        %840 = vmatpush1.bf16.msra.mxu0 0
        %841 = vmatprep.subr.bf16.mxu0 0
        %842 = vmatpush1.bf16.msra.mxu0 0
        %843 = vmatprep.subr.bf16.mxu0 0
        %844 = vmatpush1.bf16.msra.mxu0 0
        %845 = vmatprep.subr.bf16.mxu0 0
        %846 = vmatpush1.bf16.msra.mxu0 0
        %847 = vmatprep.subr.bf16.mxu0 0
        %848 = vmatpush1.bf16.msra.mxu0 0
        %849 = vmatprep.subr.bf16.mxu0 0
        %850 = vmatpush1.bf16.msra.mxu0 0
        %851 = vmatprep.subr.bf16.mxu0 0
        %852 = vmatpush1.bf16.msra.mxu0 0
        %853 = vmatprep.subr.bf16.mxu0 0
        %854 = vmatpush1.bf16.msra.mxu0 0
        %855 = vmatprep.mubr.bf16.mxu0 0
        %856 = vmatmul.mubr.bf16.gmra.mrb[0].mxu0 %v818
        %v857 = vpop.f32.mrb[0].mxu0
        %v858 = vadd.f32 0.0, %v857
        %v859 = vpop.f32.mrb[0].mxu0
        %v860 = vpop.f32.mrb[0].mxu0
        %v861 = vpop.f32.mrb[0].mxu0
        %862 = vdwg.mxu0
        %v864 = vsel %vm591, %v701, 0
        %v867 = vsel %vm657, %v702, 0
        %869 = vmatprep.subr.bf16.mxu0 0
        %870 = vmatpush1.bf16.msra.mxu0 %v867
        %871 = vmatprep.subr.bf16.mxu0 0
        %872 = vmatpush1.bf16.msra.mxu0 0
        %873 = vmatprep.subr.bf16.mxu0 0
        %874 = vmatpush1.bf16.msra.mxu0 0
        %875 = vmatprep.subr.bf16.mxu0 0
        %876 = vmatpush1.bf16.msra.mxu0 0
        %877 = vmatprep.subr.bf16.mxu0 0
        %878 = vmatpush1.bf16.msra.mxu0 0
        %879 = vmatprep.subr.bf16.mxu0 0
        %880 = vmatpush1.bf16.msra.mxu0 0
        %881 = vmatprep.subr.bf16.mxu0 0
        %882 = vmatpush1.bf16.msra.mxu0 0
        %883 = vmatprep.subr.bf16.mxu0 0
        %884 = vmatpush1.bf16.msra.mxu0 0
        %885 = vmatprep.subr.bf16.mxu0 0
        %886 = vmatpush1.bf16.msra.mxu0 0
        %887 = vmatprep.subr.bf16.mxu0 0
        %888 = vmatpush1.bf16.msra.mxu0 0
        %889 = vmatprep.subr.bf16.mxu0 0
        %890 = vmatpush1.bf16.msra.mxu0 0
        %891 = vmatprep.subr.bf16.mxu0 0
        %892 = vmatpush1.bf16.msra.mxu0 0
        %893 = vmatprep.subr.bf16.mxu0 0
        %894 = vmatpush1.bf16.msra.mxu0 0
        %895 = vmatprep.subr.bf16.mxu0 0
        %896 = vmatpush1.bf16.msra.mxu0 0
        %897 = vmatprep.subr.bf16.mxu0 0
        %898 = vmatpush1.bf16.msra.mxu0 0
        %899 = vmatprep.subr.bf16.mxu0 0
        %900 = vmatpush1.bf16.msra.mxu0 0
        %901 = vmatprep.mubr.bf16.mxu0 0
        %902 = vmatmul.mubr.bf16.gmra.mrb[0].mxu0 %v864
        %v903 = vpop.f32.mrb[0].mxu0
        %v904 = vadd.f32 %v858, %v903
        %v905 = vpop.f32.mrb[0].mxu0
        %v906 = vpop.f32.mrb[0].mxu0
        %v907 = vpop.f32.mrb[0].mxu0
        %908 = vdwg.mxu0
        %909 = vrot.lane.b32.xlu0 %v586, 112
        %v910 = vpop.permute.xlu0 %909
        %911 = vrot.lane.b32.xlu0 %v587, 80
        %v912 = vpop.permute.xlu0 %911
        %v914 = vsel %vm591, %v910, 0
        %v917 = vsel %vm591, %v912, 0
        %919 = vmatprep.subr.bf16.mxu0 0
        %920 = vmatpush1.bf16.xpose.msra.mxu0 %v917
        %921 = vmatprep.subr.bf16.mxu0 0
        %922 = vmatpush1.bf16.xpose.msra.mxu0 0
        %923 = vmatprep.subr.bf16.mxu0 0
        %924 = vmatpush1.bf16.xpose.msra.mxu0 0
        %925 = vmatprep.subr.bf16.mxu0 0
        %926 = vmatpush1.bf16.xpose.msra.mxu0 0
        %927 = vmatprep.subr.bf16.mxu0 0
        %928 = vmatpush1.bf16.xpose.msra.mxu0 0
        %929 = vmatprep.subr.bf16.mxu0 0
        %930 = vmatpush1.bf16.xpose.msra.mxu0 0
        %931 = vmatprep.subr.bf16.mxu0 0
        %932 = vmatpush1.bf16.xpose.msra.mxu0 0
        %933 = vmatprep.subr.bf16.mxu0 0
        %934 = vmatpush1.bf16.xpose.msra.mxu0 0
        %935 = vmatprep.subr.bf16.mxu0 0
        %936 = vmatpush1.bf16.xpose.msra.mxu0 0
        %937 = vmatprep.subr.bf16.mxu0 0
        %938 = vmatpush1.bf16.xpose.msra.mxu0 0
        %939 = vmatprep.subr.bf16.mxu0 0
        %940 = vmatpush1.bf16.xpose.msra.mxu0 0
        %941 = vmatprep.subr.bf16.mxu0 0
        %942 = vmatpush1.bf16.xpose.msra.mxu0 0
        %943 = vmatprep.subr.bf16.mxu0 0
        %944 = vmatpush1.bf16.xpose.msra.mxu0 0
        %945 = vmatprep.subr.bf16.mxu0 0
        %946 = vmatpush1.bf16.xpose.msra.mxu0 0
        %947 = vmatprep.subr.bf16.mxu0 0
        %948 = vmatpush1.bf16.xpose.msra.mxu0 0
        %949 = vmatprep.subr.bf16.mxu0 0
        %950 = vmatpush1.bf16.xpose.msra.mxu0 0
        %951 = vmatprep.mubr.bf16.mxu0 0
        %952 = vmatmul.mubr.bf16.gmra.mrb[0].mxu0 %v914
        %v953 = vpop.f32.mrb[0].mxu0
        %v954 = vadd.f32 0.0, %v953
        %v955 = vpop.f32.mrb[0].mxu0
        %v956 = vpop.f32.mrb[0].mxu0
        %v957 = vpop.f32.mrb[0].mxu0
        %958 = vdwg.mxu0
        %v959 = vsel %vm638, -3.4028235e+38, %v954
        %v960 = vsel %vm591, %v959, -inf
        %961 = vmax.xlane.f32.xlu0 %v960
        %v962 = vpop.xlane.xlu0 %961
        %v963 = vsub.f32 %v959, %v962
        %v964 = vmul.f32 %v963, 1.442695
        %v965 = vpow.pop %v964
        %v966 = vsel %vm591, %v965, 0.0
        %967 = vadd.xlane.f32.xlu0 %v966
        %v968 = vpop.xlane.xlu0 %967
        %v969 = vrcp.pop %v968
        %v970 = vmul.f32 %v965, %v969
        %v971 = vpack.c.bf16 %v970, %v970
        %972 = vrot.lane.b32.xlu0 %v587, 48
        %v973 = vpop.permute.xlu0 %972
        %v975 = vsel %vm591, %v971, 0
        %v978 = vsel %vm657, %v973, 0
        %980 = vmatprep.subr.bf16.mxu0 0
        %981 = vmatpush1.bf16.msra.mxu0 %v978
        %982 = vmatprep.subr.bf16.mxu0 0
        %983 = vmatpush1.bf16.msra.mxu0 0
        %984 = vmatprep.subr.bf16.mxu0 0
        %985 = vmatpush1.bf16.msra.mxu0 0
        %986 = vmatprep.subr.bf16.mxu0 0
        %987 = vmatpush1.bf16.msra.mxu0 0
        %988 = vmatprep.subr.bf16.mxu0 0
        %989 = vmatpush1.bf16.msra.mxu0 0
        %990 = vmatprep.subr.bf16.mxu0 0
        %991 = vmatpush1.bf16.msra.mxu0 0
        %992 = vmatprep.subr.bf16.mxu0 0
        %993 = vmatpush1.bf16.msra.mxu0 0
        %994 = vmatprep.subr.bf16.mxu0 0
        %995 = vmatpush1.bf16.msra.mxu0 0
        %996 = vmatprep.subr.bf16.mxu0 0
        %997 = vmatpush1.bf16.msra.mxu0 0
        %998 = vmatprep.subr.bf16.mxu0 0
        %999 = vmatpush1.bf16.msra.mxu0 0
        %1000 = vmatprep.subr.bf16.mxu0 0
        %1001 = vmatpush1.bf16.msra.mxu0 0
        %1002 = vmatprep.subr.bf16.mxu0 0
        %1003 = vmatpush1.bf16.msra.mxu0 0
        %1004 = vmatprep.subr.bf16.mxu0 0
        %1005 = vmatpush1.bf16.msra.mxu0 0
        %1006 = vmatprep.subr.bf16.mxu0 0
        %1007 = vmatpush1.bf16.msra.mxu0 0
        %1008 = vmatprep.subr.bf16.mxu0 0
        %1009 = vmatpush1.bf16.msra.mxu0 0
        %1010 = vmatprep.subr.bf16.mxu0 0
        %1011 = vmatpush1.bf16.msra.mxu0 0
        %1012 = vmatprep.mubr.bf16.mxu0 0
        %1013 = vmatmul.mubr.bf16.gmra.mrb[0].mxu0 %v975
        %v1014 = vpop.f32.mrb[0].mxu0
        %v1015 = vadd.f32 0.0, %v1014
        %v1016 = vpop.f32.mrb[0].mxu0
        %v1017 = vpop.f32.mrb[0].mxu0
        %v1018 = vpop.f32.mrb[0].mxu0
        %1019 = vdwg.mxu0
        %v1020 = vpack.c.bf16 %v1015, %v1015
        %v1021 = vpack.c.bf16 %v582, %v582
        %v1023 = vsel %vm591, %v1020, 0
        %v1026 = vsel %vm657, %v1021, 0
        %1028 = vmatprep.subr.bf16.mxu0 0
        %1029 = vmatpush1.bf16.msra.mxu0 %v1026
        %1030 = vmatprep.subr.bf16.mxu0 0
        %1031 = vmatpush1.bf16.msra.mxu0 0
        %1032 = vmatprep.subr.bf16.mxu0 0
        %1033 = vmatpush1.bf16.msra.mxu0 0
        %1034 = vmatprep.subr.bf16.mxu0 0
        %1035 = vmatpush1.bf16.msra.mxu0 0
        %1036 = vmatprep.subr.bf16.mxu0 0
        %1037 = vmatpush1.bf16.msra.mxu0 0
        %1038 = vmatprep.subr.bf16.mxu0 0
        %1039 = vmatpush1.bf16.msra.mxu0 0
        %1040 = vmatprep.subr.bf16.mxu0 0
        %1041 = vmatpush1.bf16.msra.mxu0 0
        %1042 = vmatprep.subr.bf16.mxu0 0
        %1043 = vmatpush1.bf16.msra.mxu0 0
        %1044 = vmatprep.subr.bf16.mxu0 0
        %1045 = vmatpush1.bf16.msra.mxu0 0
        %1046 = vmatprep.subr.bf16.mxu0 0
        %1047 = vmatpush1.bf16.msra.mxu0 0
        %1048 = vmatprep.subr.bf16.mxu0 0
        %1049 = vmatpush1.bf16.msra.mxu0 0
        %1050 = vmatprep.subr.bf16.mxu0 0
        %1051 = vmatpush1.bf16.msra.mxu0 0
        %1052 = vmatprep.subr.bf16.mxu0 0
        %1053 = vmatpush1.bf16.msra.mxu0 0
        %1054 = vmatprep.subr.bf16.mxu0 0
        %1055 = vmatpush1.bf16.msra.mxu0 0
        %1056 = vmatprep.subr.bf16.mxu0 0
        %1057 = vmatpush1.bf16.msra.mxu0 0
        %1058 = vmatprep.subr.bf16.mxu0 0
        %1059 = vmatpush1.bf16.msra.mxu0 0
        %1060 = vmatprep.mubr.bf16.mxu0 0
        %1061 = vmatmul.mubr.bf16.gmra.mrb[0].mxu0 %v1023
        %v1062 = vpop.f32.mrb[0].mxu0
        %v1063 = vadd.f32 0.0, %v1062
        %v1064 = vpop.f32.mrb[0].mxu0
        %v1065 = vpop.f32.mrb[0].mxu0
        %v1066 = vpop.f32.mrb[0].mxu0
        %1067 = vdwg.mxu0
        %v1068 = vadd.f32 %v904, %v1063
        %1069 = vrot.lane.b32.xlu0 %v586, 104
        %v1070 = vpop.permute.xlu0 %1069
        %1071 = vrot.lane.b32.xlu0 %v587, 72
        %v1072 = vpop.permute.xlu0 %1071
        %v1074 = vsel %vm591, %v1070, 0
        %v1077 = vsel %vm591, %v1072, 0
        %1079 = vmatprep.subr.bf16.mxu0 0
        %1080 = vmatpush1.bf16.xpose.msra.mxu0 %v1077
        %1081 = vmatprep.subr.bf16.mxu0 0
        %1082 = vmatpush1.bf16.xpose.msra.mxu0 0
        %1083 = vmatprep.subr.bf16.mxu0 0
        %1084 = vmatpush1.bf16.xpose.msra.mxu0 0
        %1085 = vmatprep.subr.bf16.mxu0 0
        %1086 = vmatpush1.bf16.xpose.msra.mxu0 0
        %1087 = vmatprep.subr.bf16.mxu0 0
        %1088 = vmatpush1.bf16.xpose.msra.mxu0 0
        %1089 = vmatprep.subr.bf16.mxu0 0
        %1090 = vmatpush1.bf16.xpose.msra.mxu0 0
        %1091 = vmatprep.subr.bf16.mxu0 0
        %1092 = vmatpush1.bf16.xpose.msra.mxu0 0
        %1093 = vmatprep.subr.bf16.mxu0 0
        %1094 = vmatpush1.bf16.xpose.msra.mxu0 0
        %1095 = vmatprep.subr.bf16.mxu0 0
        %1096 = vmatpush1.bf16.xpose.msra.mxu0 0
        %1097 = vmatprep.subr.bf16.mxu0 0
        %1098 = vmatpush1.bf16.xpose.msra.mxu0 0
        %1099 = vmatprep.subr.bf16.mxu0 0
        %1100 = vmatpush1.bf16.xpose.msra.mxu0 0
        %1101 = vmatprep.subr.bf16.mxu0 0
        %1102 = vmatpush1.bf16.xpose.msra.mxu0 0
        %1103 = vmatprep.subr.bf16.mxu0 0
        %1104 = vmatpush1.bf16.xpose.msra.mxu0 0
        %1105 = vmatprep.subr.bf16.mxu0 0
        %1106 = vmatpush1.bf16.xpose.msra.mxu0 0
        %1107 = vmatprep.subr.bf16.mxu0 0
        %1108 = vmatpush1.bf16.xpose.msra.mxu0 0
        %1109 = vmatprep.subr.bf16.mxu0 0
        %1110 = vmatpush1.bf16.xpose.msra.mxu0 0
        %1111 = vmatprep.mubr.bf16.mxu0 0
        %1112 = vmatmul.mubr.bf16.gmra.mrb[0].mxu0 %v1074
        %v1113 = vpop.f32.mrb[0].mxu0
        %v1114 = vadd.f32 0.0, %v1113
        %v1115 = vpop.f32.mrb[0].mxu0
        %v1116 = vpop.f32.mrb[0].mxu0
        %v1117 = vpop.f32.mrb[0].mxu0
        %1118 = vdwg.mxu0
        %v1119 = vsel %vm638, -3.4028235e+38, %v1114
        %v1120 = vsel %vm591, %v1119, -inf
        %1121 = vmax.xlane.f32.xlu0 %v1120
        %v1122 = vpop.xlane.xlu0 %1121
        %v1123 = vsub.f32 %v1119, %v1122
        %v1124 = vmul.f32 %v1123, 1.442695
        %v1125 = vpow.pop %v1124
        %v1126 = vsel %vm591, %v1125, 0.0
        %1127 = vadd.xlane.f32.xlu0 %v1126
        %v1128 = vpop.xlane.xlu0 %1127
        %v1129 = vrcp.pop %v1128
        %v1130 = vmul.f32 %v1125, %v1129
        %v1131 = vpack.c.bf16 %v1130, %v1130
        %1132 = vrot.lane.b32.xlu0 %v587, 40
        %v1133 = vpop.permute.xlu0 %1132
        %v1135 = vsel %vm591, %v1131, 0
        %v1138 = vsel %vm657, %v1133, 0
        %1140 = vmatprep.subr.bf16.mxu0 0
        %1141 = vmatpush1.bf16.msra.mxu0 %v1138
        %1142 = vmatprep.subr.bf16.mxu0 0
        %1143 = vmatpush1.bf16.msra.mxu0 0
        %1144 = vmatprep.subr.bf16.mxu0 0
        %1145 = vmatpush1.bf16.msra.mxu0 0
        %1146 = vmatprep.subr.bf16.mxu0 0
        %1147 = vmatpush1.bf16.msra.mxu0 0
        %1148 = vmatprep.subr.bf16.mxu0 0
        %1149 = vmatpush1.bf16.msra.mxu0 0
        %1150 = vmatprep.subr.bf16.mxu0 0
        %1151 = vmatpush1.bf16.msra.mxu0 0
        %1152 = vmatprep.subr.bf16.mxu0 0
        %1153 = vmatpush1.bf16.msra.mxu0 0
        %1154 = vmatprep.subr.bf16.mxu0 0
        %1155 = vmatpush1.bf16.msra.mxu0 0
        %1156 = vmatprep.subr.bf16.mxu0 0
        %1157 = vmatpush1.bf16.msra.mxu0 0
        %1158 = vmatprep.subr.bf16.mxu0 0
        %1159 = vmatpush1.bf16.msra.mxu0 0
        %1160 = vmatprep.subr.bf16.mxu0 0
        %1161 = vmatpush1.bf16.msra.mxu0 0
        %1162 = vmatprep.subr.bf16.mxu0 0
        %1163 = vmatpush1.bf16.msra.mxu0 0
        %1164 = vmatprep.subr.bf16.mxu0 0
        %1165 = vmatpush1.bf16.msra.mxu0 0
        %1166 = vmatprep.subr.bf16.mxu0 0
        %1167 = vmatpush1.bf16.msra.mxu0 0
        %1168 = vmatprep.subr.bf16.mxu0 0
        %1169 = vmatpush1.bf16.msra.mxu0 0
        %1170 = vmatprep.subr.bf16.mxu0 0
        %1171 = vmatpush1.bf16.msra.mxu0 0
        %1172 = vmatprep.mubr.bf16.mxu0 0
        %1173 = vmatmul.mubr.bf16.gmra.mrb[0].mxu0 %v1135
        %v1174 = vpop.f32.mrb[0].mxu0
        %v1175 = vadd.f32 0.0, %v1174
        %v1176 = vpop.f32.mrb[0].mxu0
        %v1177 = vpop.f32.mrb[0].mxu0
        %v1178 = vpop.f32.mrb[0].mxu0
        %1179 = vdwg.mxu0
        %v1180 = vpack.c.bf16 %v1175, %v1175
        %v1181 = vpack.c.bf16 %v583, %v583
        %v1183 = vsel %vm591, %v1180, 0
        %v1186 = vsel %vm657, %v1181, 0
        %1188 = vmatprep.subr.bf16.mxu0 0
        %1189 = vmatpush1.bf16.msra.mxu0 %v1186
        %1190 = vmatprep.subr.bf16.mxu0 0
        %1191 = vmatpush1.bf16.msra.mxu0 0
        %1192 = vmatprep.subr.bf16.mxu0 0
        %1193 = vmatpush1.bf16.msra.mxu0 0
        %1194 = vmatprep.subr.bf16.mxu0 0
        %1195 = vmatpush1.bf16.msra.mxu0 0
        %1196 = vmatprep.subr.bf16.mxu0 0
        %1197 = vmatpush1.bf16.msra.mxu0 0
        %1198 = vmatprep.subr.bf16.mxu0 0
        %1199 = vmatpush1.bf16.msra.mxu0 0
        %1200 = vmatprep.subr.bf16.mxu0 0
        %1201 = vmatpush1.bf16.msra.mxu0 0
        %1202 = vmatprep.subr.bf16.mxu0 0
        %1203 = vmatpush1.bf16.msra.mxu0 0
        %1204 = vmatprep.subr.bf16.mxu0 0
        %1205 = vmatpush1.bf16.msra.mxu0 0
        %1206 = vmatprep.subr.bf16.mxu0 0
        %1207 = vmatpush1.bf16.msra.mxu0 0
        %1208 = vmatprep.subr.bf16.mxu0 0
        %1209 = vmatpush1.bf16.msra.mxu0 0
        %1210 = vmatprep.subr.bf16.mxu0 0
        %1211 = vmatpush1.bf16.msra.mxu0 0
        %1212 = vmatprep.subr.bf16.mxu0 0
        %1213 = vmatpush1.bf16.msra.mxu0 0
        %1214 = vmatprep.subr.bf16.mxu0 0
        %1215 = vmatpush1.bf16.msra.mxu0 0
        %1216 = vmatprep.subr.bf16.mxu0 0
        %1217 = vmatpush1.bf16.msra.mxu0 0
        %1218 = vmatprep.subr.bf16.mxu0 0
        %1219 = vmatpush1.bf16.msra.mxu0 0
        %1220 = vmatprep.mubr.bf16.mxu0 0
        %1221 = vmatmul.mubr.bf16.gmra.mrb[0].mxu0 %v1183
        %v1222 = vpop.f32.mrb[0].mxu0
        %v1223 = vadd.f32 0.0, %v1222
        %v1224 = vpop.f32.mrb[0].mxu0
        %v1225 = vpop.f32.mrb[0].mxu0
        %v1226 = vpop.f32.mrb[0].mxu0
        %1227 = vdwg.mxu0
        %v1228 = vadd.f32 %v1068, %v1223
        %v1229 = vadd.f32 %v481, %v1228
        %v1230 = vld [vmem:[%s7] sm:$0x1]
        %v1232 = vlaneseq
        %v1233 = vshrl.u32 %v1232, 7
        %v1234 = vsub.s32 0, %v1233
        %v1235 = vrot.slane %v1230, %v1234
        %v1237 = vadd.f32 %v1229, %v1235
        %v1238 = vsel %vm482, %v1237, 0.0
        %1239 = vadd.xlane.f32.xlu0 %v1238
        %v1240 = vpop.xlane.xlu0 %1239
        %v1241 = vmul.f32 %v1240, %v486
        %v1242 = vsub.f32 %v1237, %v1241
        %v1243 = vmul.f32 %v1242, %v1242
        %v1244 = vsel %vm482, %v1243, 0.0
        %1245 = vadd.xlane.f32.xlu0 %v1244
        %v1246 = vpop.xlane.xlu0 %1245
        %v1247 = vmul.f32 %v1246, %v486
        %v1248 = vadd.f32 %v1247, 1e-05
        %v1249 = vrsqrt.pop %v1248
        %v1250 = vmul.f32 %v1242, %v1249
        %v1251 = vld [vmem:[%s8] sm:$0x1]
        %v1253 = vlaneseq
        %v1254 = vshrl.u32 %v1253, 7
        %v1255 = vsub.s32 0, %v1254
        %v1256 = vrot.slane %v1251, %v1255
        %v1258 = vmul.f32 %v1250, %v1256
        %v1259 = vld [vmem:[%s9] sm:$0x1]
        %v1261 = vlaneseq
        %v1262 = vshrl.u32 %v1261, 7
        %v1263 = vsub.s32 0, %v1262
        %v1264 = vrot.slane %v1259, %v1263
        %v1266 = vadd.f32 %v1258, %v1264
        %v1267 = vpack.c.bf16 %v1266, %v1266
        %v1268 = vld [vmem:[%s10] sm:$0xff]
        %v1269 = vld [vmem:[%s10 + $0x8] sm:$0xff]
        %v1270 = vld [vmem:[%s10 + $0x10] sm:$0xff]
        %v1271 = vld [vmem:[%s10 + $0x18] sm:$0xff]
        %v1272 = vld [vmem:[%s10 + $0x20] sm:$0xff]
        %v1273 = vld [vmem:[%s10 + $0x28] sm:$0xff]
        %v1274 = vld [vmem:[%s10 + $0x30] sm:$0xff]
        %v1275 = vld [vmem:[%s10 + $0x38] sm:$0xff]
        %v1276 = vld [vmem:[%s10 + $0x40] sm:$0xff]
        %v1277 = vld [vmem:[%s10 + $0x48] sm:$0xff]
        %v1278 = vld [vmem:[%s10 + $0x50] sm:$0xff]
        %v1279 = vld [vmem:[%s10 + $0x58] sm:$0xff]
        %v1280 = vld [vmem:[%s10 + $0x60] sm:$0xff]
        %v1281 = vld [vmem:[%s10 + $0x68] sm:$0xff]
        %v1282 = vld [vmem:[%s10 + $0x70] sm:$0xff]
        %v1283 = vld [vmem:[%s10 + $0x78] sm:$0xff]
        %v1284 = vld [vmem:[%s10 + $0x80] sm:$0xff]
        %v1285 = vld [vmem:[%s10 + $0x88] sm:$0xff]
        %v1286 = vld [vmem:[%s10 + $0x90] sm:$0xff]
        %v1287 = vld [vmem:[%s10 + $0x98] sm:$0xff]
        %v1288 = vld [vmem:[%s10 + $0xa0] sm:$0xff]
        %v1289 = vld [vmem:[%s10 + $0xa8] sm:$0xff]
        %v1290 = vld [vmem:[%s10 + $0xb0] sm:$0xff]
        %v1291 = vld [vmem:[%s10 + $0xb8] sm:$0xff]
        %v1292 = vld [vmem:[%s10 + $0xc0] sm:$0xff]
        %v1293 = vld [vmem:[%s10 + $0xc8] sm:$0xff]
        %v1294 = vld [vmem:[%s10 + $0xd0] sm:$0xff]
        %v1295 = vld [vmem:[%s10 + $0xd8] sm:$0xff]
        %v1296 = vld [vmem:[%s10 + $0xe0] sm:$0xff]
        %v1297 = vld [vmem:[%s10 + $0xe8] sm:$0xff]
        %v1298 = vld [vmem:[%s10 + $0xf0] sm:$0xff]
        %v1299 = vld [vmem:[%s10 + $0xf8] sm:$0xff]
        %v1300 = vld [vmem:[%s11] sm:$0xff]
        %v1301 = vld [vmem:[%s11 + $0x8] sm:$0xff]
        %v1304 = vlaneseq
        %v1305 = vshrl.u32 %v1304, 7
        %v1306 = vsub.s32 0, %v1305
        %v1307 = vrot.slane %v1300, %v1306
        %v1308 = vlaneseq
        %v1309 = vshrl.u32 %v1308, 7
        %v1310 = vsub.s32 1, %v1309
        %v1311 = vrot.slane %v1300, %v1310
        %v1312 = vlaneseq
        %v1313 = vshrl.u32 %v1312, 7
        %v1314 = vsub.s32 2, %v1313
        %v1315 = vrot.slane %v1300, %v1314
        %v1316 = vlaneseq
        %v1317 = vshrl.u32 %v1316, 7
        %v1318 = vsub.s32 3, %v1317
        %v1319 = vrot.slane %v1300, %v1318
        %v1320 = vlaneseq
        %v1321 = vshrl.u32 %v1320, 7
        %v1322 = vsub.s32 4, %v1321
        %v1323 = vrot.slane %v1300, %v1322
        %v1324 = vlaneseq
        %v1325 = vshrl.u32 %v1324, 7
        %v1326 = vsub.s32 5, %v1325
        %v1327 = vrot.slane %v1300, %v1326
        %v1328 = vlaneseq
        %v1329 = vshrl.u32 %v1328, 7
        %v1330 = vsub.s32 6, %v1329
        %v1331 = vrot.slane %v1300, %v1330
        %v1332 = vlaneseq
        %v1333 = vshrl.u32 %v1332, 7
        %v1334 = vsub.s32 7, %v1333
        %v1335 = vrot.slane %v1300, %v1334
        %v1336 = vlaneseq
        %v1337 = vshrl.u32 %v1336, 7
        %v1338 = vsub.s32 0, %v1337
        %v1339 = vrot.slane %v1301, %v1338
        %v1340 = vlaneseq
        %v1341 = vshrl.u32 %v1340, 7
        %v1342 = vsub.s32 1, %v1341
        %v1343 = vrot.slane %v1301, %v1342
        %v1344 = vlaneseq
        %v1345 = vshrl.u32 %v1344, 7
        %v1346 = vsub.s32 2, %v1345
        %v1347 = vrot.slane %v1301, %v1346
        %v1348 = vlaneseq
        %v1349 = vshrl.u32 %v1348, 7
        %v1350 = vsub.s32 3, %v1349
        %v1351 = vrot.slane %v1301, %v1350
        %v1352 = vlaneseq
        %v1353 = vshrl.u32 %v1352, 7
        %v1354 = vsub.s32 4, %v1353
        %v1355 = vrot.slane %v1301, %v1354
        %v1356 = vlaneseq
        %v1357 = vshrl.u32 %v1356, 7
        %v1358 = vsub.s32 5, %v1357
        %v1359 = vrot.slane %v1301, %v1358
        %v1360 = vlaneseq
        %v1361 = vshrl.u32 %v1360, 7
        %v1362 = vsub.s32 6, %v1361
        %v1363 = vrot.slane %v1301, %v1362
        %v1364 = vlaneseq
        %v1365 = vshrl.u32 %v1364, 7
        %v1366 = vsub.s32 7, %v1365
        %v1367 = vrot.slane %v1301, %v1366
        %v1416 = vunpack.c.l.b16 %v1268
        %v1417 = vunpack.c.h.b16 %v1268
        %v1418 = vunpack.c.l.b16 %v1269
        %v1419 = vunpack.c.h.b16 %v1269
        %v1420 = vunpack.c.l.b16 %v1270
        %v1421 = vunpack.c.h.b16 %v1270
        %v1422 = vunpack.c.l.b16 %v1271
        %v1423 = vunpack.c.h.b16 %v1271
        %v1424 = vunpack.c.l.b16 %v1272
        %v1425 = vunpack.c.h.b16 %v1272
        %v1426 = vunpack.c.l.b16 %v1273
        %v1427 = vunpack.c.h.b16 %v1273
        %v1428 = vunpack.c.l.b16 %v1274
        %v1429 = vunpack.c.h.b16 %v1274
        %v1430 = vunpack.c.l.b16 %v1275
        %v1431 = vunpack.c.h.b16 %v1275
        %v1432 = vunpack.c.l.b16 %v1276
        %v1433 = vunpack.c.h.b16 %v1276
        %v1434 = vunpack.c.l.b16 %v1277
        %v1435 = vunpack.c.h.b16 %v1277
        %v1436 = vunpack.c.l.b16 %v1278
        %v1437 = vunpack.c.h.b16 %v1278
        %v1438 = vunpack.c.l.b16 %v1279
        %v1439 = vunpack.c.h.b16 %v1279
        %v1440 = vunpack.c.l.b16 %v1280
        %v1441 = vunpack.c.h.b16 %v1280
        %v1442 = vunpack.c.l.b16 %v1281
        %v1443 = vunpack.c.h.b16 %v1281
        %v1444 = vunpack.c.l.b16 %v1282
        %v1445 = vunpack.c.h.b16 %v1282
        %v1446 = vunpack.c.l.b16 %v1283
        %v1447 = vunpack.c.h.b16 %v1283
        %v1448 = vunpack.c.l.b16 %v1284
        %v1449 = vunpack.c.h.b16 %v1284
        %v1450 = vunpack.c.l.b16 %v1285
        %v1451 = vunpack.c.h.b16 %v1285
        %v1452 = vunpack.c.l.b16 %v1286
        %v1453 = vunpack.c.h.b16 %v1286
        %v1454 = vunpack.c.l.b16 %v1287
        %v1455 = vunpack.c.h.b16 %v1287
        %v1456 = vunpack.c.l.b16 %v1288
        %v1457 = vunpack.c.h.b16 %v1288
        %v1458 = vunpack.c.l.b16 %v1289
        %v1459 = vunpack.c.h.b16 %v1289
        %v1460 = vunpack.c.l.b16 %v1290
        %v1461 = vunpack.c.h.b16 %v1290
        %v1462 = vunpack.c.l.b16 %v1291
        %v1463 = vunpack.c.h.b16 %v1291
        %v1464 = vunpack.c.l.b16 %v1292
        %v1465 = vunpack.c.h.b16 %v1292
        %v1466 = vunpack.c.l.b16 %v1293
        %v1467 = vunpack.c.h.b16 %v1293
        %v1468 = vunpack.c.l.b16 %v1294
        %v1469 = vunpack.c.h.b16 %v1294
        %v1470 = vunpack.c.l.b16 %v1295
        %v1471 = vunpack.c.h.b16 %v1295
        %v1472 = vunpack.c.l.b16 %v1296
        %v1473 = vunpack.c.h.b16 %v1296
        %v1474 = vunpack.c.l.b16 %v1297
        %v1475 = vunpack.c.h.b16 %v1297
        %v1476 = vunpack.c.l.b16 %v1298
        %v1477 = vunpack.c.h.b16 %v1298
        %v1478 = vunpack.c.l.b16 %v1299
        %v1479 = vunpack.c.h.b16 %v1299
        %v1480 = vpack.c.b16 %v1432, %v1416
        %v1481 = vpack.c.b16 %v1433, %v1417
        %v1482 = vpack.c.b16 %v1434, %v1418
        %v1483 = vpack.c.b16 %v1435, %v1419
        %v1484 = vpack.c.b16 %v1436, %v1420
        %v1485 = vpack.c.b16 %v1437, %v1421
        %v1486 = vpack.c.b16 %v1438, %v1422
        %v1487 = vpack.c.b16 %v1439, %v1423
        %v1488 = vpack.c.b16 %v1440, %v1424
        %v1489 = vpack.c.b16 %v1441, %v1425
        %v1490 = vpack.c.b16 %v1442, %v1426
        %v1491 = vpack.c.b16 %v1443, %v1427
        %v1492 = vpack.c.b16 %v1444, %v1428
        %v1493 = vpack.c.b16 %v1445, %v1429
        %v1494 = vpack.c.b16 %v1446, %v1430
        %v1495 = vpack.c.b16 %v1447, %v1431
        %v1496 = vpack.c.b16 %v1464, %v1448
        %v1497 = vpack.c.b16 %v1465, %v1449
        %v1498 = vpack.c.b16 %v1466, %v1450
        %v1499 = vpack.c.b16 %v1467, %v1451
        %v1500 = vpack.c.b16 %v1468, %v1452
        %v1501 = vpack.c.b16 %v1469, %v1453
        %v1502 = vpack.c.b16 %v1470, %v1454
        %v1503 = vpack.c.b16 %v1471, %v1455
        %v1504 = vpack.c.b16 %v1472, %v1456
        %v1505 = vpack.c.b16 %v1473, %v1457
        %v1506 = vpack.c.b16 %v1474, %v1458
        %v1507 = vpack.c.b16 %v1475, %v1459
        %v1508 = vpack.c.b16 %v1476, %v1460
        %v1509 = vpack.c.b16 %v1477, %v1461
        %v1510 = vpack.c.b16 %v1478, %v1462
        %v1511 = vpack.c.b16 %v1479, %v1463
        %v1545 = vsel %vm482, %v1267, 0
        %1547 = vmatprep.subr.bf16.mxu0 %v1481
        %1548 = vmatpush1.bf16.msra.mxu0 %v1480
        %1549 = vmatprep.subr.bf16.mxu0 %v1497
        %1550 = vmatpush1.bf16.msra.mxu0 %v1496
        %1551 = vmatprep.subr.bf16.mxu0 0
        %1552 = vmatpush1.bf16.msra.mxu0 0
        %1553 = vmatprep.subr.bf16.mxu0 0
        %1554 = vmatpush1.bf16.msra.mxu0 0
        %1555 = vmatprep.subr.bf16.mxu0 0
        %1556 = vmatpush1.bf16.msra.mxu0 0
        %1557 = vmatprep.subr.bf16.mxu0 0
        %1558 = vmatpush1.bf16.msra.mxu0 0
        %1559 = vmatprep.subr.bf16.mxu0 0
        %1560 = vmatpush1.bf16.msra.mxu0 0
        %1561 = vmatprep.subr.bf16.mxu0 0
        %1562 = vmatpush1.bf16.msra.mxu0 0
        %1563 = vmatprep.subr.bf16.mxu0 0
        %1564 = vmatpush1.bf16.msra.mxu0 0
        %1565 = vmatprep.subr.bf16.mxu0 0
        %1566 = vmatpush1.bf16.msra.mxu0 0
        %1567 = vmatprep.subr.bf16.mxu0 0
        %1568 = vmatpush1.bf16.msra.mxu0 0
        %1569 = vmatprep.subr.bf16.mxu0 0
        %1570 = vmatpush1.bf16.msra.mxu0 0
        %1571 = vmatprep.subr.bf16.mxu0 0
        %1572 = vmatpush1.bf16.msra.mxu0 0
        %1573 = vmatprep.subr.bf16.mxu0 0
        %1574 = vmatpush1.bf16.msra.mxu0 0
        %1575 = vmatprep.subr.bf16.mxu0 0
        %1576 = vmatpush1.bf16.msra.mxu0 0
        %1577 = vmatprep.subr.bf16.mxu0 0
        %1578 = vmatpush1.bf16.msra.mxu0 0
        %1579 = vmatprep.mubr.bf16.mxu0 0
        %1580 = vmatmul.mubr.bf16.gmra.mrb[0].mxu0 %v1545
        %v1581 = vpop.f32.mrb[0].mxu0
        %v1582 = vadd.f32 %v1307, %v1581
        %v1583 = vpop.f32.mrb[0].mxu0
        %v1584 = vadd.f32 %v1311, %v1583
        %v1585 = vpop.f32.mrb[0].mxu0
        %v1586 = vpop.f32.mrb[0].mxu0
        %1587 = vdwg.mxu0
        %1588 = vmatprep.subr.bf16.mxu0 %v1483
        %1589 = vmatpush1.bf16.msra.mxu0 %v1482
        %1590 = vmatprep.subr.bf16.mxu0 %v1499
        %1591 = vmatpush1.bf16.msra.mxu0 %v1498
        %1592 = vmatprep.subr.bf16.mxu0 0
        %1593 = vmatpush1.bf16.msra.mxu0 0
        %1594 = vmatprep.subr.bf16.mxu0 0
        %1595 = vmatpush1.bf16.msra.mxu0 0
        %1596 = vmatprep.subr.bf16.mxu0 0
        %1597 = vmatpush1.bf16.msra.mxu0 0
        %1598 = vmatprep.subr.bf16.mxu0 0
        %1599 = vmatpush1.bf16.msra.mxu0 0
        %1600 = vmatprep.subr.bf16.mxu0 0
        %1601 = vmatpush1.bf16.msra.mxu0 0
        %1602 = vmatprep.subr.bf16.mxu0 0
        %1603 = vmatpush1.bf16.msra.mxu0 0
        %1604 = vmatprep.subr.bf16.mxu0 0
        %1605 = vmatpush1.bf16.msra.mxu0 0
        %1606 = vmatprep.subr.bf16.mxu0 0
        %1607 = vmatpush1.bf16.msra.mxu0 0
        %1608 = vmatprep.subr.bf16.mxu0 0
        %1609 = vmatpush1.bf16.msra.mxu0 0
        %1610 = vmatprep.subr.bf16.mxu0 0
        %1611 = vmatpush1.bf16.msra.mxu0 0
        %1612 = vmatprep.subr.bf16.mxu0 0
        %1613 = vmatpush1.bf16.msra.mxu0 0
        %1614 = vmatprep.subr.bf16.mxu0 0
        %1615 = vmatpush1.bf16.msra.mxu0 0
        %1616 = vmatprep.subr.bf16.mxu0 0
        %1617 = vmatpush1.bf16.msra.mxu0 0
        %1618 = vmatprep.subr.bf16.mxu0 0
        %1619 = vmatpush1.bf16.msra.mxu0 0
        %1620 = vmatprep.mubr.bf16.mxu0 0
        %1621 = vmatmul.mubr.bf16.gmra.mrb[0].mxu0 %v1545
        %v1622 = vpop.f32.mrb[0].mxu0
        %v1623 = vadd.f32 %v1315, %v1622
        %v1624 = vpop.f32.mrb[0].mxu0
        %v1625 = vadd.f32 %v1319, %v1624
        %v1626 = vpop.f32.mrb[0].mxu0
        %v1627 = vpop.f32.mrb[0].mxu0
        %1628 = vdwg.mxu0
        %1629 = vmatprep.subr.bf16.mxu0 %v1485
        %1630 = vmatpush1.bf16.msra.mxu0 %v1484
        %1631 = vmatprep.subr.bf16.mxu0 %v1501
        %1632 = vmatpush1.bf16.msra.mxu0 %v1500
        %1633 = vmatprep.subr.bf16.mxu0 0
        %1634 = vmatpush1.bf16.msra.mxu0 0
        %1635 = vmatprep.subr.bf16.mxu0 0
        %1636 = vmatpush1.bf16.msra.mxu0 0
        %1637 = vmatprep.subr.bf16.mxu0 0
        %1638 = vmatpush1.bf16.msra.mxu0 0
        %1639 = vmatprep.subr.bf16.mxu0 0
        %1640 = vmatpush1.bf16.msra.mxu0 0
        %1641 = vmatprep.subr.bf16.mxu0 0
        %1642 = vmatpush1.bf16.msra.mxu0 0
        %1643 = vmatprep.subr.bf16.mxu0 0
        %1644 = vmatpush1.bf16.msra.mxu0 0
        %1645 = vmatprep.subr.bf16.mxu0 0
        %1646 = vmatpush1.bf16.msra.mxu0 0
        %1647 = vmatprep.subr.bf16.mxu0 0
        %1648 = vmatpush1.bf16.msra.mxu0 0
        %1649 = vmatprep.subr.bf16.mxu0 0
        %1650 = vmatpush1.bf16.msra.mxu0 0
        %1651 = vmatprep.subr.bf16.mxu0 0
        %1652 = vmatpush1.bf16.msra.mxu0 0
        %1653 = vmatprep.subr.bf16.mxu0 0
        %1654 = vmatpush1.bf16.msra.mxu0 0
        %1655 = vmatprep.subr.bf16.mxu0 0
        %1656 = vmatpush1.bf16.msra.mxu0 0
        %1657 = vmatprep.subr.bf16.mxu0 0
        %1658 = vmatpush1.bf16.msra.mxu0 0
        %1659 = vmatprep.subr.bf16.mxu0 0
        %1660 = vmatpush1.bf16.msra.mxu0 0
        %1661 = vmatprep.mubr.bf16.mxu0 0
        %1662 = vmatmul.mubr.bf16.gmra.mrb[0].mxu0 %v1545
        %v1663 = vpop.f32.mrb[0].mxu0
        %v1664 = vadd.f32 %v1323, %v1663
        %v1665 = vpop.f32.mrb[0].mxu0
        %v1666 = vadd.f32 %v1327, %v1665
        %v1667 = vpop.f32.mrb[0].mxu0
        %v1668 = vpop.f32.mrb[0].mxu0
        %1669 = vdwg.mxu0
        %1670 = vmatprep.subr.bf16.mxu0 %v1487
        %1671 = vmatpush1.bf16.msra.mxu0 %v1486
        %1672 = vmatprep.subr.bf16.mxu0 %v1503
        %1673 = vmatpush1.bf16.msra.mxu0 %v1502
        %1674 = vmatprep.subr.bf16.mxu0 0
        %1675 = vmatpush1.bf16.msra.mxu0 0
        %1676 = vmatprep.subr.bf16.mxu0 0
        %1677 = vmatpush1.bf16.msra.mxu0 0
        %1678 = vmatprep.subr.bf16.mxu0 0
        %1679 = vmatpush1.bf16.msra.mxu0 0
        %1680 = vmatprep.subr.bf16.mxu0 0
        %1681 = vmatpush1.bf16.msra.mxu0 0
        %1682 = vmatprep.subr.bf16.mxu0 0
        %1683 = vmatpush1.bf16.msra.mxu0 0
        %1684 = vmatprep.subr.bf16.mxu0 0
        %1685 = vmatpush1.bf16.msra.mxu0 0
        %1686 = vmatprep.subr.bf16.mxu0 0
        %1687 = vmatpush1.bf16.msra.mxu0 0
        %1688 = vmatprep.subr.bf16.mxu0 0
        %1689 = vmatpush1.bf16.msra.mxu0 0
        %1690 = vmatprep.subr.bf16.mxu0 0
        %1691 = vmatpush1.bf16.msra.mxu0 0
        %1692 = vmatprep.subr.bf16.mxu0 0
        %1693 = vmatpush1.bf16.msra.mxu0 0
        %1694 = vmatprep.subr.bf16.mxu0 0
        %1695 = vmatpush1.bf16.msra.mxu0 0
        %1696 = vmatprep.subr.bf16.mxu0 0
        %1697 = vmatpush1.bf16.msra.mxu0 0
        %1698 = vmatprep.subr.bf16.mxu0 0
        %1699 = vmatpush1.bf16.msra.mxu0 0
        %1700 = vmatprep.subr.bf16.mxu0 0
        %1701 = vmatpush1.bf16.msra.mxu0 0
        %1702 = vmatprep.mubr.bf16.mxu0 0
        %1703 = vmatmul.mubr.bf16.gmra.mrb[0].mxu0 %v1545
        %v1704 = vpop.f32.mrb[0].mxu0
        %v1705 = vadd.f32 %v1331, %v1704
        %v1706 = vpop.f32.mrb[0].mxu0
        %v1707 = vadd.f32 %v1335, %v1706
        %v1708 = vpop.f32.mrb[0].mxu0
        %v1709 = vpop.f32.mrb[0].mxu0
        %1710 = vdwg.mxu0
        %1711 = vmatprep.subr.bf16.mxu0 %v1489
        %1712 = vmatpush1.bf16.msra.mxu0 %v1488
        %1713 = vmatprep.subr.bf16.mxu0 %v1505
        %1714 = vmatpush1.bf16.msra.mxu0 %v1504
        %1715 = vmatprep.subr.bf16.mxu0 0
        %1716 = vmatpush1.bf16.msra.mxu0 0
        %1717 = vmatprep.subr.bf16.mxu0 0
        %1718 = vmatpush1.bf16.msra.mxu0 0
        %1719 = vmatprep.subr.bf16.mxu0 0
        %1720 = vmatpush1.bf16.msra.mxu0 0
        %1721 = vmatprep.subr.bf16.mxu0 0
        %1722 = vmatpush1.bf16.msra.mxu0 0
        %1723 = vmatprep.subr.bf16.mxu0 0
        %1724 = vmatpush1.bf16.msra.mxu0 0
        %1725 = vmatprep.subr.bf16.mxu0 0
        %1726 = vmatpush1.bf16.msra.mxu0 0
        %1727 = vmatprep.subr.bf16.mxu0 0
        %1728 = vmatpush1.bf16.msra.mxu0 0
        %1729 = vmatprep.subr.bf16.mxu0 0
        %1730 = vmatpush1.bf16.msra.mxu0 0
        %1731 = vmatprep.subr.bf16.mxu0 0
        %1732 = vmatpush1.bf16.msra.mxu0 0
        %1733 = vmatprep.subr.bf16.mxu0 0
        %1734 = vmatpush1.bf16.msra.mxu0 0
        %1735 = vmatprep.subr.bf16.mxu0 0
        %1736 = vmatpush1.bf16.msra.mxu0 0
        %1737 = vmatprep.subr.bf16.mxu0 0
        %1738 = vmatpush1.bf16.msra.mxu0 0
        %1739 = vmatprep.subr.bf16.mxu0 0
        %1740 = vmatpush1.bf16.msra.mxu0 0
        %1741 = vmatprep.subr.bf16.mxu0 0
        %1742 = vmatpush1.bf16.msra.mxu0 0
        %1743 = vmatprep.mubr.bf16.mxu0 0
        %1744 = vmatmul.mubr.bf16.gmra.mrb[0].mxu0 %v1545
        %v1745 = vpop.f32.mrb[0].mxu0
        %v1746 = vadd.f32 %v1339, %v1745
        %v1747 = vpop.f32.mrb[0].mxu0
        %v1748 = vadd.f32 %v1343, %v1747
        %v1749 = vpop.f32.mrb[0].mxu0
        %v1750 = vpop.f32.mrb[0].mxu0
        %1751 = vdwg.mxu0
        %1752 = vmatprep.subr.bf16.mxu0 %v1491
        %1753 = vmatpush1.bf16.msra.mxu0 %v1490
        %1754 = vmatprep.subr.bf16.mxu0 %v1507
        %1755 = vmatpush1.bf16.msra.mxu0 %v1506
        %1756 = vmatprep.subr.bf16.mxu0 0
        %1757 = vmatpush1.bf16.msra.mxu0 0
        %1758 = vmatprep.subr.bf16.mxu0 0
        %1759 = vmatpush1.bf16.msra.mxu0 0
        %1760 = vmatprep.subr.bf16.mxu0 0
        %1761 = vmatpush1.bf16.msra.mxu0 0
        %1762 = vmatprep.subr.bf16.mxu0 0
        %1763 = vmatpush1.bf16.msra.mxu0 0
        %1764 = vmatprep.subr.bf16.mxu0 0
        %1765 = vmatpush1.bf16.msra.mxu0 0
        %1766 = vmatprep.subr.bf16.mxu0 0
        %1767 = vmatpush1.bf16.msra.mxu0 0
        %1768 = vmatprep.subr.bf16.mxu0 0
        %1769 = vmatpush1.bf16.msra.mxu0 0
        %1770 = vmatprep.subr.bf16.mxu0 0
        %1771 = vmatpush1.bf16.msra.mxu0 0
        %1772 = vmatprep.subr.bf16.mxu0 0
        %1773 = vmatpush1.bf16.msra.mxu0 0
        %1774 = vmatprep.subr.bf16.mxu0 0
        %1775 = vmatpush1.bf16.msra.mxu0 0
        %1776 = vmatprep.subr.bf16.mxu0 0
        %1777 = vmatpush1.bf16.msra.mxu0 0
        %1778 = vmatprep.subr.bf16.mxu0 0
        %1779 = vmatpush1.bf16.msra.mxu0 0
        %1780 = vmatprep.subr.bf16.mxu0 0
        %1781 = vmatpush1.bf16.msra.mxu0 0
        %1782 = vmatprep.subr.bf16.mxu0 0
        %1783 = vmatpush1.bf16.msra.mxu0 0
        %1784 = vmatprep.mubr.bf16.mxu0 0
        %1785 = vmatmul.mubr.bf16.gmra.mrb[0].mxu0 %v1545
        %v1786 = vpop.f32.mrb[0].mxu0
        %v1787 = vadd.f32 %v1347, %v1786
        %v1788 = vpop.f32.mrb[0].mxu0
        %v1789 = vadd.f32 %v1351, %v1788
        %v1790 = vpop.f32.mrb[0].mxu0
        %v1791 = vpop.f32.mrb[0].mxu0
        %1792 = vdwg.mxu0
        %1793 = vmatprep.subr.bf16.mxu0 %v1493
        %1794 = vmatpush1.bf16.msra.mxu0 %v1492
        %1795 = vmatprep.subr.bf16.mxu0 %v1509
        %1796 = vmatpush1.bf16.msra.mxu0 %v1508
        %1797 = vmatprep.subr.bf16.mxu0 0
        %1798 = vmatpush1.bf16.msra.mxu0 0
        %1799 = vmatprep.subr.bf16.mxu0 0
        %1800 = vmatpush1.bf16.msra.mxu0 0
        %1801 = vmatprep.subr.bf16.mxu0 0
        %1802 = vmatpush1.bf16.msra.mxu0 0
        %1803 = vmatprep.subr.bf16.mxu0 0
        %1804 = vmatpush1.bf16.msra.mxu0 0
        %1805 = vmatprep.subr.bf16.mxu0 0
        %1806 = vmatpush1.bf16.msra.mxu0 0
        %1807 = vmatprep.subr.bf16.mxu0 0
        %1808 = vmatpush1.bf16.msra.mxu0 0
        %1809 = vmatprep.subr.bf16.mxu0 0
        %1810 = vmatpush1.bf16.msra.mxu0 0
        %1811 = vmatprep.subr.bf16.mxu0 0
        %1812 = vmatpush1.bf16.msra.mxu0 0
        %1813 = vmatprep.subr.bf16.mxu0 0
        %1814 = vmatpush1.bf16.msra.mxu0 0
        %1815 = vmatprep.subr.bf16.mxu0 0
        %1816 = vmatpush1.bf16.msra.mxu0 0
        %1817 = vmatprep.subr.bf16.mxu0 0
        %1818 = vmatpush1.bf16.msra.mxu0 0
        %1819 = vmatprep.subr.bf16.mxu0 0
        %1820 = vmatpush1.bf16.msra.mxu0 0
        %1821 = vmatprep.subr.bf16.mxu0 0
        %1822 = vmatpush1.bf16.msra.mxu0 0
        %1823 = vmatprep.subr.bf16.mxu0 0
        %1824 = vmatpush1.bf16.msra.mxu0 0
        %1825 = vmatprep.mubr.bf16.mxu0 0
        %1826 = vmatmul.mubr.bf16.gmra.mrb[0].mxu0 %v1545
        %v1827 = vpop.f32.mrb[0].mxu0
        %v1828 = vadd.f32 %v1355, %v1827
        %v1829 = vpop.f32.mrb[0].mxu0
        %v1830 = vadd.f32 %v1359, %v1829
        %v1831 = vpop.f32.mrb[0].mxu0
        %v1832 = vpop.f32.mrb[0].mxu0
        %1833 = vdwg.mxu0
        %1834 = vmatprep.subr.bf16.mxu0 %v1495
        %1835 = vmatpush1.bf16.msra.mxu0 %v1494
        %1836 = vmatprep.subr.bf16.mxu0 %v1511
        %1837 = vmatpush1.bf16.msra.mxu0 %v1510
        %1838 = vmatprep.subr.bf16.mxu0 0
        %1839 = vmatpush1.bf16.msra.mxu0 0
        %1840 = vmatprep.subr.bf16.mxu0 0
        %1841 = vmatpush1.bf16.msra.mxu0 0
        %1842 = vmatprep.subr.bf16.mxu0 0
        %1843 = vmatpush1.bf16.msra.mxu0 0
        %1844 = vmatprep.subr.bf16.mxu0 0
        %1845 = vmatpush1.bf16.msra.mxu0 0
        %1846 = vmatprep.subr.bf16.mxu0 0
        %1847 = vmatpush1.bf16.msra.mxu0 0
        %1848 = vmatprep.subr.bf16.mxu0 0
        %1849 = vmatpush1.bf16.msra.mxu0 0
        %1850 = vmatprep.subr.bf16.mxu0 0
        %1851 = vmatpush1.bf16.msra.mxu0 0
        %1852 = vmatprep.subr.bf16.mxu0 0
        %1853 = vmatpush1.bf16.msra.mxu0 0
        %1854 = vmatprep.subr.bf16.mxu0 0
        %1855 = vmatpush1.bf16.msra.mxu0 0
        %1856 = vmatprep.subr.bf16.mxu0 0
        %1857 = vmatpush1.bf16.msra.mxu0 0
        %1858 = vmatprep.subr.bf16.mxu0 0
        %1859 = vmatpush1.bf16.msra.mxu0 0
        %1860 = vmatprep.subr.bf16.mxu0 0
        %1861 = vmatpush1.bf16.msra.mxu0 0
        %1862 = vmatprep.subr.bf16.mxu0 0
        %1863 = vmatpush1.bf16.msra.mxu0 0
        %1864 = vmatprep.subr.bf16.mxu0 0
        %1865 = vmatpush1.bf16.msra.mxu0 0
        %1866 = vmatprep.mubr.bf16.mxu0 0
        %1867 = vmatmul.mubr.bf16.gmra.mrb[0].mxu0 %v1545
        %v1868 = vpop.f32.mrb[0].mxu0
        %v1869 = vadd.f32 %v1363, %v1868
        %v1870 = vpop.f32.mrb[0].mxu0
        %v1871 = vadd.f32 %v1367, %v1870
        %v1872 = vpop.f32.mrb[0].mxu0
        %v1873 = vpop.f32.mrb[0].mxu0
        %1874 = vdwg.mxu0
        %v1875 = vmax.f32 %v1582, 0.0
        %v1876 = vmax.f32 %v1584, 0.0
        %v1877 = vmax.f32 %v1623, 0.0
        %v1878 = vmax.f32 %v1625, 0.0
        %v1879 = vmax.f32 %v1664, 0.0
        %v1880 = vmax.f32 %v1666, 0.0
        %v1881 = vmax.f32 %v1705, 0.0
        %v1882 = vmax.f32 %v1707, 0.0
        %v1883 = vmax.f32 %v1746, 0.0
        %v1884 = vmax.f32 %v1748, 0.0
        %v1885 = vmax.f32 %v1787, 0.0
        %v1886 = vmax.f32 %v1789, 0.0
        %v1887 = vmax.f32 %v1828, 0.0
        %v1888 = vmax.f32 %v1830, 0.0
        %v1889 = vmax.f32 %v1869, 0.0
        %v1890 = vmax.f32 %v1871, 0.0
        %v1891 = vpack.c.bf16 %v1875, %v1875
        %v1892 = vpack.c.bf16 %v1876, %v1876
        %v1893 = vpack.c.bf16 %v1877, %v1877
        %v1894 = vpack.c.bf16 %v1878, %v1878
        %v1895 = vpack.c.bf16 %v1879, %v1879
        %v1896 = vpack.c.bf16 %v1880, %v1880
        %v1897 = vpack.c.bf16 %v1881, %v1881
        %v1898 = vpack.c.bf16 %v1882, %v1882
        %v1899 = vpack.c.bf16 %v1883, %v1883
        %v1900 = vpack.c.bf16 %v1884, %v1884
        %v1901 = vpack.c.bf16 %v1885, %v1885
        %v1902 = vpack.c.bf16 %v1886, %v1886
        %v1903 = vpack.c.bf16 %v1887, %v1887
        %v1904 = vpack.c.bf16 %v1888, %v1888
        %v1905 = vpack.c.bf16 %v1889, %v1889
        %v1906 = vpack.c.bf16 %v1890, %v1890
        %v1907 = vld [vmem:[%s12] sm:$0xf]
        %v1908 = vld [vmem:[%s12 + $0x4] sm:$0xf]
        %v1909 = vld [vmem:[%s12 + $0x8] sm:$0xf]
        %v1910 = vld [vmem:[%s12 + $0xc] sm:$0xf]
        %v1911 = vld [vmem:[%s12 + $0x10] sm:$0xf]
        %v1912 = vld [vmem:[%s12 + $0x14] sm:$0xf]
        %v1913 = vld [vmem:[%s12 + $0x18] sm:$0xf]
        %v1914 = vld [vmem:[%s12 + $0x1c] sm:$0xf]
        %v1915 = vld [vmem:[%s12 + $0x20] sm:$0xf]
        %v1916 = vld [vmem:[%s12 + $0x24] sm:$0xf]
        %v1917 = vld [vmem:[%s12 + $0x28] sm:$0xf]
        %v1918 = vld [vmem:[%s12 + $0x2c] sm:$0xf]
        %v1919 = vld [vmem:[%s12 + $0x30] sm:$0xf]
        %v1920 = vld [vmem:[%s12 + $0x34] sm:$0xf]
        %v1921 = vld [vmem:[%s12 + $0x38] sm:$0xf]
        %v1922 = vld [vmem:[%s12 + $0x3c] sm:$0xf]
        %v1923 = vld [vmem:[%s12 + $0x40] sm:$0xf]
        %v1924 = vld [vmem:[%s12 + $0x44] sm:$0xf]
        %v1925 = vld [vmem:[%s12 + $0x48] sm:$0xf]
        %v1926 = vld [vmem:[%s12 + $0x4c] sm:$0xf]
        %v1927 = vld [vmem:[%s12 + $0x50] sm:$0xf]
        %v1928 = vld [vmem:[%s12 + $0x54] sm:$0xf]
        %v1929 = vld [vmem:[%s12 + $0x58] sm:$0xf]
        %v1930 = vld [vmem:[%s12 + $0x5c] sm:$0xf]
        %v1931 = vld [vmem:[%s12 + $0x60] sm:$0xf]
        %v1932 = vld [vmem:[%s12 + $0x64] sm:$0xf]
        %v1933 = vld [vmem:[%s12 + $0x68] sm:$0xf]
        %v1934 = vld [vmem:[%s12 + $0x6c] sm:$0xf]
        %v1935 = vld [vmem:[%s12 + $0x70] sm:$0xf]
        %v1936 = vld [vmem:[%s12 + $0x74] sm:$0xf]
        %v1937 = vld [vmem:[%s12 + $0x78] sm:$0xf]
        %v1938 = vld [vmem:[%s12 + $0x7c] sm:$0xf]
        %v1939 = vld [vmem:[%s12 + $0x80] sm:$0xf]
        %v1940 = vld [vmem:[%s12 + $0x84] sm:$0xf]
        %v1941 = vld [vmem:[%s12 + $0x88] sm:$0xf]
        %v1942 = vld [vmem:[%s12 + $0x8c] sm:$0xf]
        %v1943 = vld [vmem:[%s12 + $0x90] sm:$0xf]
        %v1944 = vld [vmem:[%s12 + $0x94] sm:$0xf]
        %v1945 = vld [vmem:[%s12 + $0x98] sm:$0xf]
        %v1946 = vld [vmem:[%s12 + $0x9c] sm:$0xf]
        %v1947 = vld [vmem:[%s12 + $0xa0] sm:$0xf]
        %v1948 = vld [vmem:[%s12 + $0xa4] sm:$0xf]
        %v1949 = vld [vmem:[%s12 + $0xa8] sm:$0xf]
        %v1950 = vld [vmem:[%s12 + $0xac] sm:$0xf]
        %v1951 = vld [vmem:[%s12 + $0xb0] sm:$0xf]
        %v1952 = vld [vmem:[%s12 + $0xb4] sm:$0xf]
        %v1953 = vld [vmem:[%s12 + $0xb8] sm:$0xf]
        %v1954 = vld [vmem:[%s12 + $0xbc] sm:$0xf]
        %v1955 = vld [vmem:[%s12 + $0xc0] sm:$0xf]
        %v1956 = vld [vmem:[%s12 + $0xc4] sm:$0xf]
        %v1957 = vld [vmem:[%s12 + $0xc8] sm:$0xf]
        %v1958 = vld [vmem:[%s12 + $0xcc] sm:$0xf]
        %v1959 = vld [vmem:[%s12 + $0xd0] sm:$0xf]
        %v1960 = vld [vmem:[%s12 + $0xd4] sm:$0xf]
        %v1961 = vld [vmem:[%s12 + $0xd8] sm:$0xf]
        %v1962 = vld [vmem:[%s12 + $0xdc] sm:$0xf]
        %v1963 = vld [vmem:[%s12 + $0xe0] sm:$0xf]
        %v1964 = vld [vmem:[%s12 + $0xe4] sm:$0xf]
        %v1965 = vld [vmem:[%s12 + $0xe8] sm:$0xf]
        %v1966 = vld [vmem:[%s12 + $0xec] sm:$0xf]
        %v1967 = vld [vmem:[%s12 + $0xf0] sm:$0xf]
        %v1968 = vld [vmem:[%s12 + $0xf4] sm:$0xf]
        %v1969 = vld [vmem:[%s12 + $0xf8] sm:$0xf]
        %v1970 = vld [vmem:[%s12 + $0xfc] sm:$0xf]
        %v1971 = vld [vmem:[%s12 + $0x100] sm:$0xf]
        %v1972 = vld [vmem:[%s12 + $0x104] sm:$0xf]
        %v1973 = vld [vmem:[%s12 + $0x108] sm:$0xf]
        %v1974 = vld [vmem:[%s12 + $0x10c] sm:$0xf]
        %v1975 = vld [vmem:[%s12 + $0x110] sm:$0xf]
        %v1976 = vld [vmem:[%s12 + $0x114] sm:$0xf]
        %v1977 = vld [vmem:[%s12 + $0x118] sm:$0xf]
        %v1978 = vld [vmem:[%s12 + $0x11c] sm:$0xf]
        %v1979 = vld [vmem:[%s12 + $0x120] sm:$0xf]
        %v1980 = vld [vmem:[%s12 + $0x124] sm:$0xf]
        %v1981 = vld [vmem:[%s12 + $0x128] sm:$0xf]
        %v1982 = vld [vmem:[%s12 + $0x12c] sm:$0xf]
        %v1983 = vld [vmem:[%s12 + $0x130] sm:$0xf]
        %v1984 = vld [vmem:[%s12 + $0x134] sm:$0xf]
        %v1985 = vld [vmem:[%s12 + $0x138] sm:$0xf]
        %v1986 = vld [vmem:[%s12 + $0x13c] sm:$0xf]
        %v1987 = vld [vmem:[%s12 + $0x140] sm:$0xf]
        %v1988 = vld [vmem:[%s12 + $0x144] sm:$0xf]
        %v1989 = vld [vmem:[%s12 + $0x148] sm:$0xf]
        %v1990 = vld [vmem:[%s12 + $0x14c] sm:$0xf]
        %v1991 = vld [vmem:[%s12 + $0x150] sm:$0xf]
        %v1992 = vld [vmem:[%s12 + $0x154] sm:$0xf]
        %v1993 = vld [vmem:[%s12 + $0x158] sm:$0xf]
        %v1994 = vld [vmem:[%s12 + $0x15c] sm:$0xf]
        %v1995 = vld [vmem:[%s12 + $0x160] sm:$0xf]
        %v1996 = vld [vmem:[%s12 + $0x164] sm:$0xf]
        %v1997 = vld [vmem:[%s12 + $0x168] sm:$0xf]
        %v1998 = vld [vmem:[%s12 + $0x16c] sm:$0xf]
        %v1999 = vld [vmem:[%s12 + $0x170] sm:$0xf]
        %v2000 = vld [vmem:[%s12 + $0x174] sm:$0xf]
        %v2001 = vld [vmem:[%s12 + $0x178] sm:$0xf]
        %v2002 = vld [vmem:[%s12 + $0x17c] sm:$0xf]
        %v2003 = vld [vmem:[%s12 + $0x180] sm:$0xf]
        %v2004 = vld [vmem:[%s12 + $0x184] sm:$0xf]
        %v2005 = vld [vmem:[%s12 + $0x188] sm:$0xf]
        %v2006 = vld [vmem:[%s12 + $0x18c] sm:$0xf]
        %v2007 = vld [vmem:[%s12 + $0x190] sm:$0xf]
        %v2008 = vld [vmem:[%s12 + $0x194] sm:$0xf]
        %v2009 = vld [vmem:[%s12 + $0x198] sm:$0xf]
        %v2010 = vld [vmem:[%s12 + $0x19c] sm:$0xf]
        %v2011 = vld [vmem:[%s12 + $0x1a0] sm:$0xf]
        %v2012 = vld [vmem:[%s12 + $0x1a4] sm:$0xf]
        %v2013 = vld [vmem:[%s12 + $0x1a8] sm:$0xf]
        %v2014 = vld [vmem:[%s12 + $0x1ac] sm:$0xf]
        %v2015 = vld [vmem:[%s12 + $0x1b0] sm:$0xf]
        %v2016 = vld [vmem:[%s12 + $0x1b4] sm:$0xf]
        %v2017 = vld [vmem:[%s12 + $0x1b8] sm:$0xf]
        %v2018 = vld [vmem:[%s12 + $0x1bc] sm:$0xf]
        %v2019 = vld [vmem:[%s12 + $0x1c0] sm:$0xf]
        %v2020 = vld [vmem:[%s12 + $0x1c4] sm:$0xf]
        %v2021 = vld [vmem:[%s12 + $0x1c8] sm:$0xf]
        %v2022 = vld [vmem:[%s12 + $0x1cc] sm:$0xf]
        %v2023 = vld [vmem:[%s12 + $0x1d0] sm:$0xf]
        %v2024 = vld [vmem:[%s12 + $0x1d4] sm:$0xf]
        %v2025 = vld [vmem:[%s12 + $0x1d8] sm:$0xf]
        %v2026 = vld [vmem:[%s12 + $0x1dc] sm:$0xf]
        %v2027 = vld [vmem:[%s12 + $0x1e0] sm:$0xf]
        %v2028 = vld [vmem:[%s12 + $0x1e4] sm:$0xf]
        %v2029 = vld [vmem:[%s12 + $0x1e8] sm:$0xf]
        %v2030 = vld [vmem:[%s12 + $0x1ec] sm:$0xf]
        %v2031 = vld [vmem:[%s12 + $0x1f0] sm:$0xf]
        %v2032 = vld [vmem:[%s12 + $0x1f4] sm:$0xf]
        %v2033 = vld [vmem:[%s12 + $0x1f8] sm:$0xf]
        %v2034 = vld [vmem:[%s12 + $0x1fc] sm:$0xf]
        %v2035 = vld [vmem:[%s12 + $0x200] sm:$0xf]
        %v2036 = vld [vmem:[%s12 + $0x204] sm:$0xf]
        %v2037 = vld [vmem:[%s12 + $0x208] sm:$0xf]
        %v2038 = vld [vmem:[%s12 + $0x20c] sm:$0xf]
        %v2039 = vld [vmem:[%s12 + $0x210] sm:$0xf]
        %v2040 = vld [vmem:[%s12 + $0x214] sm:$0xf]
        %v2041 = vld [vmem:[%s12 + $0x218] sm:$0xf]
        %v2042 = vld [vmem:[%s12 + $0x21c] sm:$0xf]
        %v2043 = vld [vmem:[%s12 + $0x220] sm:$0xf]
        %v2044 = vld [vmem:[%s12 + $0x224] sm:$0xf]
        %v2045 = vld [vmem:[%s12 + $0x228] sm:$0xf]
        %v2046 = vld [vmem:[%s12 + $0x22c] sm:$0xf]
        %v2047 = vld [vmem:[%s12 + $0x230] sm:$0xf]
        %v2048 = vld [vmem:[%s12 + $0x234] sm:$0xf]
        %v2049 = vld [vmem:[%s12 + $0x238] sm:$0xf]
        %v2050 = vld [vmem:[%s12 + $0x23c] sm:$0xf]
        %v2051 = vld [vmem:[%s12 + $0x240] sm:$0xf]
        %v2052 = vld [vmem:[%s12 + $0x244] sm:$0xf]
        %v2053 = vld [vmem:[%s12 + $0x248] sm:$0xf]
        %v2054 = vld [vmem:[%s12 + $0x24c] sm:$0xf]
        %v2055 = vld [vmem:[%s12 + $0x250] sm:$0xf]
        %v2056 = vld [vmem:[%s12 + $0x254] sm:$0xf]
        %v2057 = vld [vmem:[%s12 + $0x258] sm:$0xf]
        %v2058 = vld [vmem:[%s12 + $0x25c] sm:$0xf]
        %v2059 = vld [vmem:[%s12 + $0x260] sm:$0xf]
        %v2060 = vld [vmem:[%s12 + $0x264] sm:$0xf]
        %v2061 = vld [vmem:[%s12 + $0x268] sm:$0xf]
        %v2062 = vld [vmem:[%s12 + $0x26c] sm:$0xf]
        %v2063 = vld [vmem:[%s12 + $0x270] sm:$0xf]
        %v2064 = vld [vmem:[%s12 + $0x274] sm:$0xf]
        %v2065 = vld [vmem:[%s12 + $0x278] sm:$0xf]
        %v2066 = vld [vmem:[%s12 + $0x27c] sm:$0xf]
        %v2067 = vld [vmem:[%s12 + $0x280] sm:$0xf]
        %v2068 = vld [vmem:[%s12 + $0x284] sm:$0xf]
        %v2069 = vld [vmem:[%s12 + $0x288] sm:$0xf]
        %v2070 = vld [vmem:[%s12 + $0x28c] sm:$0xf]
        %v2071 = vld [vmem:[%s12 + $0x290] sm:$0xf]
        %v2072 = vld [vmem:[%s12 + $0x294] sm:$0xf]
        %v2073 = vld [vmem:[%s12 + $0x298] sm:$0xf]
        %v2074 = vld [vmem:[%s12 + $0x29c] sm:$0xf]
        %v2075 = vld [vmem:[%s12 + $0x2a0] sm:$0xf]
        %v2076 = vld [vmem:[%s12 + $0x2a4] sm:$0xf]
        %v2077 = vld [vmem:[%s12 + $0x2a8] sm:$0xf]
        %v2078 = vld [vmem:[%s12 + $0x2ac] sm:$0xf]
        %v2079 = vld [vmem:[%s12 + $0x2b0] sm:$0xf]
        %v2080 = vld [vmem:[%s12 + $0x2b4] sm:$0xf]
        %v2081 = vld [vmem:[%s12 + $0x2b8] sm:$0xf]
        %v2082 = vld [vmem:[%s12 + $0x2bc] sm:$0xf]
        %v2083 = vld [vmem:[%s12 + $0x2c0] sm:$0xf]
        %v2084 = vld [vmem:[%s12 + $0x2c4] sm:$0xf]
        %v2085 = vld [vmem:[%s12 + $0x2c8] sm:$0xf]
        %v2086 = vld [vmem:[%s12 + $0x2cc] sm:$0xf]
        %v2087 = vld [vmem:[%s12 + $0x2d0] sm:$0xf]
        %v2088 = vld [vmem:[%s12 + $0x2d4] sm:$0xf]
        %v2089 = vld [vmem:[%s12 + $0x2d8] sm:$0xf]
        %v2090 = vld [vmem:[%s12 + $0x2dc] sm:$0xf]
        %v2091 = vld [vmem:[%s12 + $0x2e0] sm:$0xf]
        %v2092 = vld [vmem:[%s12 + $0x2e4] sm:$0xf]
        %v2093 = vld [vmem:[%s12 + $0x2e8] sm:$0xf]
        %v2094 = vld [vmem:[%s12 + $0x2ec] sm:$0xf]
        %v2095 = vld [vmem:[%s12 + $0x2f0] sm:$0xf]
        %v2096 = vld [vmem:[%s12 + $0x2f4] sm:$0xf]
        %v2097 = vld [vmem:[%s12 + $0x2f8] sm:$0xf]
        %v2098 = vld [vmem:[%s12 + $0x2fc] sm:$0xf]
        %v2099 = vld [vmem:[%s12 + $0x300] sm:$0xf]
        %v2100 = vld [vmem:[%s12 + $0x304] sm:$0xf]
        %v2101 = vld [vmem:[%s12 + $0x308] sm:$0xf]
        %v2102 = vld [vmem:[%s12 + $0x30c] sm:$0xf]
        %v2103 = vld [vmem:[%s12 + $0x310] sm:$0xf]
        %v2104 = vld [vmem:[%s12 + $0x314] sm:$0xf]
        %v2105 = vld [vmem:[%s12 + $0x318] sm:$0xf]
        %v2106 = vld [vmem:[%s12 + $0x31c] sm:$0xf]
        %v2107 = vld [vmem:[%s12 + $0x320] sm:$0xf]
        %v2108 = vld [vmem:[%s12 + $0x324] sm:$0xf]
        %v2109 = vld [vmem:[%s12 + $0x328] sm:$0xf]
        %v2110 = vld [vmem:[%s12 + $0x32c] sm:$0xf]
        %v2111 = vld [vmem:[%s12 + $0x330] sm:$0xf]
        %v2112 = vld [vmem:[%s12 + $0x334] sm:$0xf]
        %v2113 = vld [vmem:[%s12 + $0x338] sm:$0xf]
        %v2114 = vld [vmem:[%s12 + $0x33c] sm:$0xf]
        %v2115 = vld [vmem:[%s12 + $0x340] sm:$0xf]
        %v2116 = vld [vmem:[%s12 + $0x344] sm:$0xf]
        %v2117 = vld [vmem:[%s12 + $0x348] sm:$0xf]
        %v2118 = vld [vmem:[%s12 + $0x34c] sm:$0xf]
        %v2119 = vld [vmem:[%s12 + $0x350] sm:$0xf]
        %v2120 = vld [vmem:[%s12 + $0x354] sm:$0xf]
        %v2121 = vld [vmem:[%s12 + $0x358] sm:$0xf]
        %v2122 = vld [vmem:[%s12 + $0x35c] sm:$0xf]
        %v2123 = vld [vmem:[%s12 + $0x360] sm:$0xf]
        %v2124 = vld [vmem:[%s12 + $0x364] sm:$0xf]
        %v2125 = vld [vmem:[%s12 + $0x368] sm:$0xf]
        %v2126 = vld [vmem:[%s12 + $0x36c] sm:$0xf]
        %v2127 = vld [vmem:[%s12 + $0x370] sm:$0xf]
        %v2128 = vld [vmem:[%s12 + $0x374] sm:$0xf]
        %v2129 = vld [vmem:[%s12 + $0x378] sm:$0xf]
        %v2130 = vld [vmem:[%s12 + $0x37c] sm:$0xf]
        %v2131 = vld [vmem:[%s12 + $0x380] sm:$0xf]
        %v2132 = vld [vmem:[%s12 + $0x384] sm:$0xf]
        %v2133 = vld [vmem:[%s12 + $0x388] sm:$0xf]
        %v2134 = vld [vmem:[%s12 + $0x38c] sm:$0xf]
        %v2135 = vld [vmem:[%s12 + $0x390] sm:$0xf]
        %v2136 = vld [vmem:[%s12 + $0x394] sm:$0xf]
        %v2137 = vld [vmem:[%s12 + $0x398] sm:$0xf]
        %v2138 = vld [vmem:[%s12 + $0x39c] sm:$0xf]
        %v2139 = vld [vmem:[%s12 + $0x3a0] sm:$0xf]
        %v2140 = vld [vmem:[%s12 + $0x3a4] sm:$0xf]
        %v2141 = vld [vmem:[%s12 + $0x3a8] sm:$0xf]
        %v2142 = vld [vmem:[%s12 + $0x3ac] sm:$0xf]
        %v2143 = vld [vmem:[%s12 + $0x3b0] sm:$0xf]
        %v2144 = vld [vmem:[%s12 + $0x3b4] sm:$0xf]
        %v2145 = vld [vmem:[%s12 + $0x3b8] sm:$0xf]
        %v2146 = vld [vmem:[%s12 + $0x3bc] sm:$0xf]
        %v2147 = vld [vmem:[%s12 + $0x3c0] sm:$0xf]
        %v2148 = vld [vmem:[%s12 + $0x3c4] sm:$0xf]
        %v2149 = vld [vmem:[%s12 + $0x3c8] sm:$0xf]
        %v2150 = vld [vmem:[%s12 + $0x3cc] sm:$0xf]
        %v2151 = vld [vmem:[%s12 + $0x3d0] sm:$0xf]
        %v2152 = vld [vmem:[%s12 + $0x3d4] sm:$0xf]
        %v2153 = vld [vmem:[%s12 + $0x3d8] sm:$0xf]
        %v2154 = vld [vmem:[%s12 + $0x3dc] sm:$0xf]
        %v2155 = vld [vmem:[%s12 + $0x3e0] sm:$0xf]
        %v2156 = vld [vmem:[%s12 + $0x3e4] sm:$0xf]
        %v2157 = vld [vmem:[%s12 + $0x3e8] sm:$0xf]
        %v2158 = vld [vmem:[%s12 + $0x3ec] sm:$0xf]
        %v2159 = vld [vmem:[%s12 + $0x3f0] sm:$0xf]
        %v2160 = vld [vmem:[%s12 + $0x3f4] sm:$0xf]
        %v2161 = vld [vmem:[%s12 + $0x3f8] sm:$0xf]
        %v2162 = vld [vmem:[%s12 + $0x3fc] sm:$0xf]
        %v2163 = vld [vmem:[%s13] sm:$0x1]
        %v2165 = vlaneseq
        %v2166 = vshrl.u32 %v2165, 7
        %v2167 = vsub.s32 0, %v2166
        %v2168 = vrot.slane %v2163, %v2167
        %v2426 = vunpack.c.l.b16 %v1907
        %v2427 = vunpack.c.l.b16 %v1908
        %v2428 = vunpack.c.l.b16 %v1909
        %v2429 = vunpack.c.l.b16 %v1910
        %v2430 = vunpack.c.l.b16 %v1911
        %v2431 = vunpack.c.l.b16 %v1912
        %v2432 = vunpack.c.l.b16 %v1913
        %v2433 = vunpack.c.l.b16 %v1914
        %v2434 = vunpack.c.l.b16 %v1915
        %v2435 = vunpack.c.l.b16 %v1916
        %v2436 = vunpack.c.l.b16 %v1917
        %v2437 = vunpack.c.l.b16 %v1918
        %v2438 = vunpack.c.l.b16 %v1919
        %v2439 = vunpack.c.l.b16 %v1920
        %v2440 = vunpack.c.l.b16 %v1921
        %v2441 = vunpack.c.l.b16 %v1922
        %v2442 = vunpack.c.l.b16 %v1923
        %v2443 = vunpack.c.l.b16 %v1924
        %v2444 = vunpack.c.l.b16 %v1925
        %v2445 = vunpack.c.l.b16 %v1926
        %v2446 = vunpack.c.l.b16 %v1927
        %v2447 = vunpack.c.l.b16 %v1928
        %v2448 = vunpack.c.l.b16 %v1929
        %v2449 = vunpack.c.l.b16 %v1930
        %v2450 = vunpack.c.l.b16 %v1931
        %v2451 = vunpack.c.l.b16 %v1932
        %v2452 = vunpack.c.l.b16 %v1933
        %v2453 = vunpack.c.l.b16 %v1934
        %v2454 = vunpack.c.l.b16 %v1935
        %v2455 = vunpack.c.l.b16 %v1936
        %v2456 = vunpack.c.l.b16 %v1937
        %v2457 = vunpack.c.l.b16 %v1938
        %v2458 = vunpack.c.l.b16 %v1939
        %v2459 = vunpack.c.l.b16 %v1940
        %v2460 = vunpack.c.l.b16 %v1941
        %v2461 = vunpack.c.l.b16 %v1942
        %v2462 = vunpack.c.l.b16 %v1943
        %v2463 = vunpack.c.l.b16 %v1944
        %v2464 = vunpack.c.l.b16 %v1945
        %v2465 = vunpack.c.l.b16 %v1946
        %v2466 = vunpack.c.l.b16 %v1947
        %v2467 = vunpack.c.l.b16 %v1948
        %v2468 = vunpack.c.l.b16 %v1949
        %v2469 = vunpack.c.l.b16 %v1950
        %v2470 = vunpack.c.l.b16 %v1951
        %v2471 = vunpack.c.l.b16 %v1952
        %v2472 = vunpack.c.l.b16 %v1953
        %v2473 = vunpack.c.l.b16 %v1954
        %v2474 = vunpack.c.l.b16 %v1955
        %v2475 = vunpack.c.l.b16 %v1956
        %v2476 = vunpack.c.l.b16 %v1957
        %v2477 = vunpack.c.l.b16 %v1958
        %v2478 = vunpack.c.l.b16 %v1959
        %v2479 = vunpack.c.l.b16 %v1960
        %v2480 = vunpack.c.l.b16 %v1961
        %v2481 = vunpack.c.l.b16 %v1962
        %v2482 = vunpack.c.l.b16 %v1963
        %v2483 = vunpack.c.l.b16 %v1964
        %v2484 = vunpack.c.l.b16 %v1965
        %v2485 = vunpack.c.l.b16 %v1966
        %v2486 = vunpack.c.l.b16 %v1967
        %v2487 = vunpack.c.l.b16 %v1968
        %v2488 = vunpack.c.l.b16 %v1969
        %v2489 = vunpack.c.l.b16 %v1970
        %v2490 = vunpack.c.l.b16 %v1971
        %v2491 = vunpack.c.l.b16 %v1972
        %v2492 = vunpack.c.l.b16 %v1973
        %v2493 = vunpack.c.l.b16 %v1974
        %v2494 = vunpack.c.l.b16 %v1975
        %v2495 = vunpack.c.l.b16 %v1976
        %v2496 = vunpack.c.l.b16 %v1977
        %v2497 = vunpack.c.l.b16 %v1978
        %v2498 = vunpack.c.l.b16 %v1979
        %v2499 = vunpack.c.l.b16 %v1980
        %v2500 = vunpack.c.l.b16 %v1981
        %v2501 = vunpack.c.l.b16 %v1982
        %v2502 = vunpack.c.l.b16 %v1983
        %v2503 = vunpack.c.l.b16 %v1984
        %v2504 = vunpack.c.l.b16 %v1985
        %v2505 = vunpack.c.l.b16 %v1986
        %v2506 = vunpack.c.l.b16 %v1987
        %v2507 = vunpack.c.l.b16 %v1988
        %v2508 = vunpack.c.l.b16 %v1989
        %v2509 = vunpack.c.l.b16 %v1990
        %v2510 = vunpack.c.l.b16 %v1991
        %v2511 = vunpack.c.l.b16 %v1992
        %v2512 = vunpack.c.l.b16 %v1993
        %v2513 = vunpack.c.l.b16 %v1994
        %v2514 = vunpack.c.l.b16 %v1995
        %v2515 = vunpack.c.l.b16 %v1996
        %v2516 = vunpack.c.l.b16 %v1997
        %v2517 = vunpack.c.l.b16 %v1998
        %v2518 = vunpack.c.l.b16 %v1999
        %v2519 = vunpack.c.l.b16 %v2000
        %v2520 = vunpack.c.l.b16 %v2001
        %v2521 = vunpack.c.l.b16 %v2002
        %v2522 = vunpack.c.l.b16 %v2003
        %v2523 = vunpack.c.l.b16 %v2004
        %v2524 = vunpack.c.l.b16 %v2005
        %v2525 = vunpack.c.l.b16 %v2006
        %v2526 = vunpack.c.l.b16 %v2007
        %v2527 = vunpack.c.l.b16 %v2008
        %v2528 = vunpack.c.l.b16 %v2009
        %v2529 = vunpack.c.l.b16 %v2010
        %v2530 = vunpack.c.l.b16 %v2011
        %v2531 = vunpack.c.l.b16 %v2012
        %v2532 = vunpack.c.l.b16 %v2013
        %v2533 = vunpack.c.l.b16 %v2014
        %v2534 = vunpack.c.l.b16 %v2015
        %v2535 = vunpack.c.l.b16 %v2016
        %v2536 = vunpack.c.l.b16 %v2017
        %v2537 = vunpack.c.l.b16 %v2018
        %v2538 = vunpack.c.l.b16 %v2019
        %v2539 = vunpack.c.l.b16 %v2020
        %v2540 = vunpack.c.l.b16 %v2021
        %v2541 = vunpack.c.l.b16 %v2022
        %v2542 = vunpack.c.l.b16 %v2023
        %v2543 = vunpack.c.l.b16 %v2024
        %v2544 = vunpack.c.l.b16 %v2025
        %v2545 = vunpack.c.l.b16 %v2026
        %v2546 = vunpack.c.l.b16 %v2027
        %v2547 = vunpack.c.l.b16 %v2028
        %v2548 = vunpack.c.l.b16 %v2029
        %v2549 = vunpack.c.l.b16 %v2030
        %v2550 = vunpack.c.l.b16 %v2031
        %v2551 = vunpack.c.l.b16 %v2032
        %v2552 = vunpack.c.l.b16 %v2033
        %v2553 = vunpack.c.l.b16 %v2034
        %v2554 = vunpack.c.l.b16 %v2035
        %v2555 = vunpack.c.l.b16 %v2036
        %v2556 = vunpack.c.l.b16 %v2037
        %v2557 = vunpack.c.l.b16 %v2038
        %v2558 = vunpack.c.l.b16 %v2039
        %v2559 = vunpack.c.l.b16 %v2040
        %v2560 = vunpack.c.l.b16 %v2041
        %v2561 = vunpack.c.l.b16 %v2042
        %v2562 = vunpack.c.l.b16 %v2043
        %v2563 = vunpack.c.l.b16 %v2044
        %v2564 = vunpack.c.l.b16 %v2045
        %v2565 = vunpack.c.l.b16 %v2046
        %v2566 = vunpack.c.l.b16 %v2047
        %v2567 = vunpack.c.l.b16 %v2048
        %v2568 = vunpack.c.l.b16 %v2049
        %v2569 = vunpack.c.l.b16 %v2050
        %v2570 = vunpack.c.l.b16 %v2051
        %v2571 = vunpack.c.l.b16 %v2052
        %v2572 = vunpack.c.l.b16 %v2053
        %v2573 = vunpack.c.l.b16 %v2054
        %v2574 = vunpack.c.l.b16 %v2055
        %v2575 = vunpack.c.l.b16 %v2056
        %v2576 = vunpack.c.l.b16 %v2057
        %v2577 = vunpack.c.l.b16 %v2058
        %v2578 = vunpack.c.l.b16 %v2059
        %v2579 = vunpack.c.l.b16 %v2060
        %v2580 = vunpack.c.l.b16 %v2061
        %v2581 = vunpack.c.l.b16 %v2062
        %v2582 = vunpack.c.l.b16 %v2063
        %v2583 = vunpack.c.l.b16 %v2064
        %v2584 = vunpack.c.l.b16 %v2065
        %v2585 = vunpack.c.l.b16 %v2066
        %v2586 = vunpack.c.l.b16 %v2067
        %v2587 = vunpack.c.l.b16 %v2068
        %v2588 = vunpack.c.l.b16 %v2069
        %v2589 = vunpack.c.l.b16 %v2070
        %v2590 = vunpack.c.l.b16 %v2071
        %v2591 = vunpack.c.l.b16 %v2072
        %v2592 = vunpack.c.l.b16 %v2073
        %v2593 = vunpack.c.l.b16 %v2074
        %v2594 = vunpack.c.l.b16 %v2075
        %v2595 = vunpack.c.l.b16 %v2076
        %v2596 = vunpack.c.l.b16 %v2077
        %v2597 = vunpack.c.l.b16 %v2078
        %v2598 = vunpack.c.l.b16 %v2079
        %v2599 = vunpack.c.l.b16 %v2080
        %v2600 = vunpack.c.l.b16 %v2081
        %v2601 = vunpack.c.l.b16 %v2082
        %v2602 = vunpack.c.l.b16 %v2083
        %v2603 = vunpack.c.l.b16 %v2084
        %v2604 = vunpack.c.l.b16 %v2085
        %v2605 = vunpack.c.l.b16 %v2086
        %v2606 = vunpack.c.l.b16 %v2087
        %v2607 = vunpack.c.l.b16 %v2088
        %v2608 = vunpack.c.l.b16 %v2089
        %v2609 = vunpack.c.l.b16 %v2090
        %v2610 = vunpack.c.l.b16 %v2091
        %v2611 = vunpack.c.l.b16 %v2092
        %v2612 = vunpack.c.l.b16 %v2093
        %v2613 = vunpack.c.l.b16 %v2094
        %v2614 = vunpack.c.l.b16 %v2095
        %v2615 = vunpack.c.l.b16 %v2096
        %v2616 = vunpack.c.l.b16 %v2097
        %v2617 = vunpack.c.l.b16 %v2098
        %v2618 = vunpack.c.l.b16 %v2099
        %v2619 = vunpack.c.l.b16 %v2100
        %v2620 = vunpack.c.l.b16 %v2101
        %v2621 = vunpack.c.l.b16 %v2102
        %v2622 = vunpack.c.l.b16 %v2103
        %v2623 = vunpack.c.l.b16 %v2104
        %v2624 = vunpack.c.l.b16 %v2105
        %v2625 = vunpack.c.l.b16 %v2106
        %v2626 = vunpack.c.l.b16 %v2107
        %v2627 = vunpack.c.l.b16 %v2108
        %v2628 = vunpack.c.l.b16 %v2109
        %v2629 = vunpack.c.l.b16 %v2110
        %v2630 = vunpack.c.l.b16 %v2111
        %v2631 = vunpack.c.l.b16 %v2112
        %v2632 = vunpack.c.l.b16 %v2113
        %v2633 = vunpack.c.l.b16 %v2114
        %v2634 = vunpack.c.l.b16 %v2115
        %v2635 = vunpack.c.l.b16 %v2116
        %v2636 = vunpack.c.l.b16 %v2117
        %v2637 = vunpack.c.l.b16 %v2118
        %v2638 = vunpack.c.l.b16 %v2119
        %v2639 = vunpack.c.l.b16 %v2120
        %v2640 = vunpack.c.l.b16 %v2121
        %v2641 = vunpack.c.l.b16 %v2122
        %v2642 = vunpack.c.l.b16 %v2123
        %v2643 = vunpack.c.l.b16 %v2124
        %v2644 = vunpack.c.l.b16 %v2125
        %v2645 = vunpack.c.l.b16 %v2126
        %v2646 = vunpack.c.l.b16 %v2127
        %v2647 = vunpack.c.l.b16 %v2128
        %v2648 = vunpack.c.l.b16 %v2129
        %v2649 = vunpack.c.l.b16 %v2130
        %v2650 = vunpack.c.l.b16 %v2131
        %v2651 = vunpack.c.l.b16 %v2132
        %v2652 = vunpack.c.l.b16 %v2133
        %v2653 = vunpack.c.l.b16 %v2134
        %v2654 = vunpack.c.l.b16 %v2135
        %v2655 = vunpack.c.l.b16 %v2136
        %v2656 = vunpack.c.l.b16 %v2137
        %v2657 = vunpack.c.l.b16 %v2138
        %v2658 = vunpack.c.l.b16 %v2139
        %v2659 = vunpack.c.l.b16 %v2140
        %v2660 = vunpack.c.l.b16 %v2141
        %v2661 = vunpack.c.l.b16 %v2142
        %v2662 = vunpack.c.l.b16 %v2143
        %v2663 = vunpack.c.l.b16 %v2144
        %v2664 = vunpack.c.l.b16 %v2145
        %v2665 = vunpack.c.l.b16 %v2146
        %v2666 = vunpack.c.l.b16 %v2147
        %v2667 = vunpack.c.l.b16 %v2148
        %v2668 = vunpack.c.l.b16 %v2149
        %v2669 = vunpack.c.l.b16 %v2150
        %v2670 = vunpack.c.l.b16 %v2151
        %v2671 = vunpack.c.l.b16 %v2152
        %v2672 = vunpack.c.l.b16 %v2153
        %v2673 = vunpack.c.l.b16 %v2154
        %v2674 = vunpack.c.l.b16 %v2155
        %v2675 = vunpack.c.l.b16 %v2156
        %v2676 = vunpack.c.l.b16 %v2157
        %v2677 = vunpack.c.l.b16 %v2158
        %v2678 = vunpack.c.l.b16 %v2159
        %v2679 = vunpack.c.l.b16 %v2160
        %v2680 = vunpack.c.l.b16 %v2161
        %v2681 = vunpack.c.l.b16 %v2162
        %v2682 = vpack.c.b16 %v2427, %v2426
        %v2683 = vpack.c.b16 %v2429, %v2428
        %v2684 = vpack.c.b16 %v2431, %v2430
        %v2685 = vpack.c.b16 %v2433, %v2432
        %v2686 = vpack.c.b16 %v2435, %v2434
        %v2687 = vpack.c.b16 %v2437, %v2436
        %v2688 = vpack.c.b16 %v2439, %v2438
        %v2689 = vpack.c.b16 %v2441, %v2440
        %v2690 = vpack.c.b16 %v2443, %v2442
        %v2691 = vpack.c.b16 %v2445, %v2444
        %v2692 = vpack.c.b16 %v2447, %v2446
        %v2693 = vpack.c.b16 %v2449, %v2448
        %v2694 = vpack.c.b16 %v2451, %v2450
        %v2695 = vpack.c.b16 %v2453, %v2452
        %v2696 = vpack.c.b16 %v2455, %v2454
        %v2697 = vpack.c.b16 %v2457, %v2456
        %v2698 = vpack.c.b16 %v2459, %v2458
        %v2699 = vpack.c.b16 %v2461, %v2460
        %v2700 = vpack.c.b16 %v2463, %v2462
        %v2701 = vpack.c.b16 %v2465, %v2464
        %v2702 = vpack.c.b16 %v2467, %v2466
        %v2703 = vpack.c.b16 %v2469, %v2468
        %v2704 = vpack.c.b16 %v2471, %v2470
        %v2705 = vpack.c.b16 %v2473, %v2472
        %v2706 = vpack.c.b16 %v2475, %v2474
        %v2707 = vpack.c.b16 %v2477, %v2476
        %v2708 = vpack.c.b16 %v2479, %v2478
        %v2709 = vpack.c.b16 %v2481, %v2480
        %v2710 = vpack.c.b16 %v2483, %v2482
        %v2711 = vpack.c.b16 %v2485, %v2484
        %v2712 = vpack.c.b16 %v2487, %v2486
        %v2713 = vpack.c.b16 %v2489, %v2488
        %v2714 = vpack.c.b16 %v2491, %v2490
        %v2715 = vpack.c.b16 %v2493, %v2492
        %v2716 = vpack.c.b16 %v2495, %v2494
        %v2717 = vpack.c.b16 %v2497, %v2496
        %v2718 = vpack.c.b16 %v2499, %v2498
        %v2719 = vpack.c.b16 %v2501, %v2500
        %v2720 = vpack.c.b16 %v2503, %v2502
        %v2721 = vpack.c.b16 %v2505, %v2504
        %v2722 = vpack.c.b16 %v2507, %v2506
        %v2723 = vpack.c.b16 %v2509, %v2508
        %v2724 = vpack.c.b16 %v2511, %v2510
        %v2725 = vpack.c.b16 %v2513, %v2512
        %v2726 = vpack.c.b16 %v2515, %v2514
        %v2727 = vpack.c.b16 %v2517, %v2516
        %v2728 = vpack.c.b16 %v2519, %v2518
        %v2729 = vpack.c.b16 %v2521, %v2520
        %v2730 = vpack.c.b16 %v2523, %v2522
        %v2731 = vpack.c.b16 %v2525, %v2524
        %v2732 = vpack.c.b16 %v2527, %v2526
        %v2733 = vpack.c.b16 %v2529, %v2528
        %v2734 = vpack.c.b16 %v2531, %v2530
        %v2735 = vpack.c.b16 %v2533, %v2532
        %v2736 = vpack.c.b16 %v2535, %v2534
        %v2737 = vpack.c.b16 %v2537, %v2536
        %v2738 = vpack.c.b16 %v2539, %v2538
        %v2739 = vpack.c.b16 %v2541, %v2540
        %v2740 = vpack.c.b16 %v2543, %v2542
        %v2741 = vpack.c.b16 %v2545, %v2544
        %v2742 = vpack.c.b16 %v2547, %v2546
        %v2743 = vpack.c.b16 %v2549, %v2548
        %v2744 = vpack.c.b16 %v2551, %v2550
        %v2745 = vpack.c.b16 %v2553, %v2552
        %v2746 = vpack.c.b16 %v2555, %v2554
        %v2747 = vpack.c.b16 %v2557, %v2556
        %v2748 = vpack.c.b16 %v2559, %v2558
        %v2749 = vpack.c.b16 %v2561, %v2560
        %v2750 = vpack.c.b16 %v2563, %v2562
        %v2751 = vpack.c.b16 %v2565, %v2564
        %v2752 = vpack.c.b16 %v2567, %v2566
        %v2753 = vpack.c.b16 %v2569, %v2568
        %v2754 = vpack.c.b16 %v2571, %v2570
        %v2755 = vpack.c.b16 %v2573, %v2572
        %v2756 = vpack.c.b16 %v2575, %v2574
        %v2757 = vpack.c.b16 %v2577, %v2576
        %v2758 = vpack.c.b16 %v2579, %v2578
        %v2759 = vpack.c.b16 %v2581, %v2580
        %v2760 = vpack.c.b16 %v2583, %v2582
        %v2761 = vpack.c.b16 %v2585, %v2584
        %v2762 = vpack.c.b16 %v2587, %v2586
        %v2763 = vpack.c.b16 %v2589, %v2588
        %v2764 = vpack.c.b16 %v2591, %v2590
        %v2765 = vpack.c.b16 %v2593, %v2592
        %v2766 = vpack.c.b16 %v2595, %v2594
        %v2767 = vpack.c.b16 %v2597, %v2596
        %v2768 = vpack.c.b16 %v2599, %v2598
        %v2769 = vpack.c.b16 %v2601, %v2600
        %v2770 = vpack.c.b16 %v2603, %v2602
        %v2771 = vpack.c.b16 %v2605, %v2604
        %v2772 = vpack.c.b16 %v2607, %v2606
        %v2773 = vpack.c.b16 %v2609, %v2608
        %v2774 = vpack.c.b16 %v2611, %v2610
        %v2775 = vpack.c.b16 %v2613, %v2612
        %v2776 = vpack.c.b16 %v2615, %v2614
        %v2777 = vpack.c.b16 %v2617, %v2616
        %v2778 = vpack.c.b16 %v2619, %v2618
        %v2779 = vpack.c.b16 %v2621, %v2620
        %v2780 = vpack.c.b16 %v2623, %v2622
        %v2781 = vpack.c.b16 %v2625, %v2624
        %v2782 = vpack.c.b16 %v2627, %v2626
        %v2783 = vpack.c.b16 %v2629, %v2628
        %v2784 = vpack.c.b16 %v2631, %v2630
        %v2785 = vpack.c.b16 %v2633, %v2632
        %v2786 = vpack.c.b16 %v2635, %v2634
        %v2787 = vpack.c.b16 %v2637, %v2636
        %v2788 = vpack.c.b16 %v2639, %v2638
        %v2789 = vpack.c.b16 %v2641, %v2640
        %v2790 = vpack.c.b16 %v2643, %v2642
        %v2791 = vpack.c.b16 %v2645, %v2644
        %v2792 = vpack.c.b16 %v2647, %v2646
        %v2793 = vpack.c.b16 %v2649, %v2648
        %v2794 = vpack.c.b16 %v2651, %v2650
        %v2795 = vpack.c.b16 %v2653, %v2652
        %v2796 = vpack.c.b16 %v2655, %v2654
        %v2797 = vpack.c.b16 %v2657, %v2656
        %v2798 = vpack.c.b16 %v2659, %v2658
        %v2799 = vpack.c.b16 %v2661, %v2660
        %v2800 = vpack.c.b16 %v2663, %v2662
        %v2801 = vpack.c.b16 %v2665, %v2664
        %v2802 = vpack.c.b16 %v2667, %v2666
        %v2803 = vpack.c.b16 %v2669, %v2668
        %v2804 = vpack.c.b16 %v2671, %v2670
        %v2805 = vpack.c.b16 %v2673, %v2672
        %v2806 = vpack.c.b16 %v2675, %v2674
        %v2807 = vpack.c.b16 %v2677, %v2676
        %v2808 = vpack.c.b16 %v2679, %v2678
        %v2809 = vpack.c.b16 %v2681, %v2680
        %2938 = vmatprep.subr.bf16.mxu0 0
        %2939 = vmatpush1.bf16.msra.mxu0 %v2682
        %2940 = vmatprep.subr.bf16.mxu0 0
        %2941 = vmatpush1.bf16.msra.mxu0 %v2683
        %2942 = vmatprep.subr.bf16.mxu0 0
        %2943 = vmatpush1.bf16.msra.mxu0 %v2684
        %2944 = vmatprep.subr.bf16.mxu0 0
        %2945 = vmatpush1.bf16.msra.mxu0 %v2685
        %2946 = vmatprep.subr.bf16.mxu0 0
        %2947 = vmatpush1.bf16.msra.mxu0 %v2686
        %2948 = vmatprep.subr.bf16.mxu0 0
        %2949 = vmatpush1.bf16.msra.mxu0 %v2687
        %2950 = vmatprep.subr.bf16.mxu0 0
        %2951 = vmatpush1.bf16.msra.mxu0 %v2688
        %2952 = vmatprep.subr.bf16.mxu0 0
        %2953 = vmatpush1.bf16.msra.mxu0 %v2689
        %2954 = vmatprep.subr.bf16.mxu0 0
        %2955 = vmatpush1.bf16.msra.mxu0 %v2690
        %2956 = vmatprep.subr.bf16.mxu0 0
        %2957 = vmatpush1.bf16.msra.mxu0 %v2691
        %2958 = vmatprep.subr.bf16.mxu0 0
        %2959 = vmatpush1.bf16.msra.mxu0 %v2692
        %2960 = vmatprep.subr.bf16.mxu0 0
        %2961 = vmatpush1.bf16.msra.mxu0 %v2693
        %2962 = vmatprep.subr.bf16.mxu0 0
        %2963 = vmatpush1.bf16.msra.mxu0 %v2694
        %2964 = vmatprep.subr.bf16.mxu0 0
        %2965 = vmatpush1.bf16.msra.mxu0 %v2695
        %2966 = vmatprep.subr.bf16.mxu0 0
        %2967 = vmatpush1.bf16.msra.mxu0 %v2696
        %2968 = vmatprep.subr.bf16.mxu0 0
        %2969 = vmatpush1.bf16.msra.mxu0 %v2697
        %2970 = vmatprep.mubr.bf16.mxu0 %v1892
        %2971 = vmatmul.mubr.bf16.gmra.mrb[0].mxu0 %v1891
        %v2972 = vpop.f32.mrb[0].mxu0
        %v2973 = vadd.f32 %v2168, %v2972
        %v2974 = vpop.f32.mrb[0].mxu0
        %v2975 = vpop.f32.mrb[0].mxu0
        %v2976 = vpop.f32.mrb[0].mxu0
        %2977 = vdwg.mxu0
        %2978 = vmatprep.subr.bf16.mxu0 0
        %2979 = vmatpush1.bf16.msra.mxu0 %v2698
        %2980 = vmatprep.subr.bf16.mxu0 0
        %2981 = vmatpush1.bf16.msra.mxu0 %v2699
        %2982 = vmatprep.subr.bf16.mxu0 0
        %2983 = vmatpush1.bf16.msra.mxu0 %v2700
        %2984 = vmatprep.subr.bf16.mxu0 0
        %2985 = vmatpush1.bf16.msra.mxu0 %v2701
        %2986 = vmatprep.subr.bf16.mxu0 0
        %2987 = vmatpush1.bf16.msra.mxu0 %v2702
        %2988 = vmatprep.subr.bf16.mxu0 0
        %2989 = vmatpush1.bf16.msra.mxu0 %v2703
        %2990 = vmatprep.subr.bf16.mxu0 0
        %2991 = vmatpush1.bf16.msra.mxu0 %v2704
        %2992 = vmatprep.subr.bf16.mxu0 0
        %2993 = vmatpush1.bf16.msra.mxu0 %v2705
        %2994 = vmatprep.subr.bf16.mxu0 0
        %2995 = vmatpush1.bf16.msra.mxu0 %v2706
        %2996 = vmatprep.subr.bf16.mxu0 0
        %2997 = vmatpush1.bf16.msra.mxu0 %v2707
        %2998 = vmatprep.subr.bf16.mxu0 0
        %2999 = vmatpush1.bf16.msra.mxu0 %v2708
        %3000 = vmatprep.subr.bf16.mxu0 0
        %3001 = vmatpush1.bf16.msra.mxu0 %v2709
        %3002 = vmatprep.subr.bf16.mxu0 0
        %3003 = vmatpush1.bf16.msra.mxu0 %v2710
        %3004 = vmatprep.subr.bf16.mxu0 0
        %3005 = vmatpush1.bf16.msra.mxu0 %v2711
        %3006 = vmatprep.subr.bf16.mxu0 0
        %3007 = vmatpush1.bf16.msra.mxu0 %v2712
        %3008 = vmatprep.subr.bf16.mxu0 0
        %3009 = vmatpush1.bf16.msra.mxu0 %v2713
        %3010 = vmatprep.mubr.bf16.mxu0 %v1894
        %3011 = vmatmul.mubr.bf16.gmra.mrb[0].mxu0 %v1893
        %v3012 = vpop.f32.mrb[0].mxu0
        %v3013 = vadd.f32 %v2973, %v3012
        %v3014 = vpop.f32.mrb[0].mxu0
        %v3015 = vpop.f32.mrb[0].mxu0
        %v3016 = vpop.f32.mrb[0].mxu0
        %3017 = vdwg.mxu0
        %3018 = vmatprep.subr.bf16.mxu0 0
        %3019 = vmatpush1.bf16.msra.mxu0 %v2714
        %3020 = vmatprep.subr.bf16.mxu0 0
        %3021 = vmatpush1.bf16.msra.mxu0 %v2715
        %3022 = vmatprep.subr.bf16.mxu0 0
        %3023 = vmatpush1.bf16.msra.mxu0 %v2716
        %3024 = vmatprep.subr.bf16.mxu0 0
        %3025 = vmatpush1.bf16.msra.mxu0 %v2717
        %3026 = vmatprep.subr.bf16.mxu0 0
        %3027 = vmatpush1.bf16.msra.mxu0 %v2718
        %3028 = vmatprep.subr.bf16.mxu0 0
        %3029 = vmatpush1.bf16.msra.mxu0 %v2719
        %3030 = vmatprep.subr.bf16.mxu0 0
        %3031 = vmatpush1.bf16.msra.mxu0 %v2720
        %3032 = vmatprep.subr.bf16.mxu0 0
        %3033 = vmatpush1.bf16.msra.mxu0 %v2721
        %3034 = vmatprep.subr.bf16.mxu0 0
        %3035 = vmatpush1.bf16.msra.mxu0 %v2722
        %3036 = vmatprep.subr.bf16.mxu0 0
        %3037 = vmatpush1.bf16.msra.mxu0 %v2723
        %3038 = vmatprep.subr.bf16.mxu0 0
        %3039 = vmatpush1.bf16.msra.mxu0 %v2724
        %3040 = vmatprep.subr.bf16.mxu0 0
        %3041 = vmatpush1.bf16.msra.mxu0 %v2725
        %3042 = vmatprep.subr.bf16.mxu0 0
        %3043 = vmatpush1.bf16.msra.mxu0 %v2726
        %3044 = vmatprep.subr.bf16.mxu0 0
        %3045 = vmatpush1.bf16.msra.mxu0 %v2727
        %3046 = vmatprep.subr.bf16.mxu0 0
        %3047 = vmatpush1.bf16.msra.mxu0 %v2728
        %3048 = vmatprep.subr.bf16.mxu0 0
        %3049 = vmatpush1.bf16.msra.mxu0 %v2729
        %3050 = vmatprep.mubr.bf16.mxu0 %v1896
        %3051 = vmatmul.mubr.bf16.gmra.mrb[0].mxu0 %v1895
        %v3052 = vpop.f32.mrb[0].mxu0
        %v3053 = vadd.f32 %v3013, %v3052
        %v3054 = vpop.f32.mrb[0].mxu0
        %v3055 = vpop.f32.mrb[0].mxu0
        %v3056 = vpop.f32.mrb[0].mxu0
        %3057 = vdwg.mxu0
        %3058 = vmatprep.subr.bf16.mxu0 0
        %3059 = vmatpush1.bf16.msra.mxu0 %v2730
        %3060 = vmatprep.subr.bf16.mxu0 0
        %3061 = vmatpush1.bf16.msra.mxu0 %v2731
        %3062 = vmatprep.subr.bf16.mxu0 0
        %3063 = vmatpush1.bf16.msra.mxu0 %v2732
        %3064 = vmatprep.subr.bf16.mxu0 0
        %3065 = vmatpush1.bf16.msra.mxu0 %v2733
        %3066 = vmatprep.subr.bf16.mxu0 0
        %3067 = vmatpush1.bf16.msra.mxu0 %v2734
        %3068 = vmatprep.subr.bf16.mxu0 0
        %3069 = vmatpush1.bf16.msra.mxu0 %v2735
        %3070 = vmatprep.subr.bf16.mxu0 0
        %3071 = vmatpush1.bf16.msra.mxu0 %v2736
        %3072 = vmatprep.subr.bf16.mxu0 0
        %3073 = vmatpush1.bf16.msra.mxu0 %v2737
        %3074 = vmatprep.subr.bf16.mxu0 0
        %3075 = vmatpush1.bf16.msra.mxu0 %v2738
        %3076 = vmatprep.subr.bf16.mxu0 0
        %3077 = vmatpush1.bf16.msra.mxu0 %v2739
        %3078 = vmatprep.subr.bf16.mxu0 0
        %3079 = vmatpush1.bf16.msra.mxu0 %v2740
        %3080 = vmatprep.subr.bf16.mxu0 0
        %3081 = vmatpush1.bf16.msra.mxu0 %v2741
        %3082 = vmatprep.subr.bf16.mxu0 0
        %3083 = vmatpush1.bf16.msra.mxu0 %v2742
        %3084 = vmatprep.subr.bf16.mxu0 0
        %3085 = vmatpush1.bf16.msra.mxu0 %v2743
        %3086 = vmatprep.subr.bf16.mxu0 0
        %3087 = vmatpush1.bf16.msra.mxu0 %v2744
        %3088 = vmatprep.subr.bf16.mxu0 0
        %3089 = vmatpush1.bf16.msra.mxu0 %v2745
        %3090 = vmatprep.mubr.bf16.mxu0 %v1898
        %3091 = vmatmul.mubr.bf16.gmra.mrb[0].mxu0 %v1897
        %v3092 = vpop.f32.mrb[0].mxu0
        %v3093 = vadd.f32 %v3053, %v3092
        %v3094 = vpop.f32.mrb[0].mxu0
        %v3095 = vpop.f32.mrb[0].mxu0
        %v3096 = vpop.f32.mrb[0].mxu0
        %3097 = vdwg.mxu0
        %3098 = vmatprep.subr.bf16.mxu0 0
        %3099 = vmatpush1.bf16.msra.mxu0 %v2746
        %3100 = vmatprep.subr.bf16.mxu0 0
        %3101 = vmatpush1.bf16.msra.mxu0 %v2747
        %3102 = vmatprep.subr.bf16.mxu0 0
        %3103 = vmatpush1.bf16.msra.mxu0 %v2748
        %3104 = vmatprep.subr.bf16.mxu0 0
        %3105 = vmatpush1.bf16.msra.mxu0 %v2749
        %3106 = vmatprep.subr.bf16.mxu0 0
        %3107 = vmatpush1.bf16.msra.mxu0 %v2750
        %3108 = vmatprep.subr.bf16.mxu0 0
        %3109 = vmatpush1.bf16.msra.mxu0 %v2751
        %3110 = vmatprep.subr.bf16.mxu0 0
        %3111 = vmatpush1.bf16.msra.mxu0 %v2752
        %3112 = vmatprep.subr.bf16.mxu0 0
        %3113 = vmatpush1.bf16.msra.mxu0 %v2753
        %3114 = vmatprep.subr.bf16.mxu0 0
        %3115 = vmatpush1.bf16.msra.mxu0 %v2754
        %3116 = vmatprep.subr.bf16.mxu0 0
        %3117 = vmatpush1.bf16.msra.mxu0 %v2755
        %3118 = vmatprep.subr.bf16.mxu0 0
        %3119 = vmatpush1.bf16.msra.mxu0 %v2756
        %3120 = vmatprep.subr.bf16.mxu0 0
        %3121 = vmatpush1.bf16.msra.mxu0 %v2757
        %3122 = vmatprep.subr.bf16.mxu0 0
        %3123 = vmatpush1.bf16.msra.mxu0 %v2758
        %3124 = vmatprep.subr.bf16.mxu0 0
        %3125 = vmatpush1.bf16.msra.mxu0 %v2759
        %3126 = vmatprep.subr.bf16.mxu0 0
        %3127 = vmatpush1.bf16.msra.mxu0 %v2760
        %3128 = vmatprep.subr.bf16.mxu0 0
        %3129 = vmatpush1.bf16.msra.mxu0 %v2761
        %3130 = vmatprep.mubr.bf16.mxu0 %v1900
        %3131 = vmatmul.mubr.bf16.gmra.mrb[0].mxu0 %v1899
        %v3132 = vpop.f32.mrb[0].mxu0
        %v3133 = vadd.f32 %v3093, %v3132
        %v3134 = vpop.f32.mrb[0].mxu0
        %v3135 = vpop.f32.mrb[0].mxu0
        %v3136 = vpop.f32.mrb[0].mxu0
        %3137 = vdwg.mxu0
        %3138 = vmatprep.subr.bf16.mxu0 0
        %3139 = vmatpush1.bf16.msra.mxu0 %v2762
        %3140 = vmatprep.subr.bf16.mxu0 0
        %3141 = vmatpush1.bf16.msra.mxu0 %v2763
        %3142 = vmatprep.subr.bf16.mxu0 0
        %3143 = vmatpush1.bf16.msra.mxu0 %v2764
        %3144 = vmatprep.subr.bf16.mxu0 0
        %3145 = vmatpush1.bf16.msra.mxu0 %v2765
        %3146 = vmatprep.subr.bf16.mxu0 0
        %3147 = vmatpush1.bf16.msra.mxu0 %v2766
        %3148 = vmatprep.subr.bf16.mxu0 0
        %3149 = vmatpush1.bf16.msra.mxu0 %v2767
        %3150 = vmatprep.subr.bf16.mxu0 0
        %3151 = vmatpush1.bf16.msra.mxu0 %v2768
        %3152 = vmatprep.subr.bf16.mxu0 0
        %3153 = vmatpush1.bf16.msra.mxu0 %v2769
        %3154 = vmatprep.subr.bf16.mxu0 0
        %3155 = vmatpush1.bf16.msra.mxu0 %v2770
        %3156 = vmatprep.subr.bf16.mxu0 0
        %3157 = vmatpush1.bf16.msra.mxu0 %v2771
        %3158 = vmatprep.subr.bf16.mxu0 0
        %3159 = vmatpush1.bf16.msra.mxu0 %v2772
        %3160 = vmatprep.subr.bf16.mxu0 0
        %3161 = vmatpush1.bf16.msra.mxu0 %v2773
        %3162 = vmatprep.subr.bf16.mxu0 0
        %3163 = vmatpush1.bf16.msra.mxu0 %v2774
        %3164 = vmatprep.subr.bf16.mxu0 0
        %3165 = vmatpush1.bf16.msra.mxu0 %v2775
        %3166 = vmatprep.subr.bf16.mxu0 0
        %3167 = vmatpush1.bf16.msra.mxu0 %v2776
        %3168 = vmatprep.subr.bf16.mxu0 0
        %3169 = vmatpush1.bf16.msra.mxu0 %v2777
        %3170 = vmatprep.mubr.bf16.mxu0 %v1902
        %3171 = vmatmul.mubr.bf16.gmra.mrb[0].mxu0 %v1901
        %v3172 = vpop.f32.mrb[0].mxu0
        %v3173 = vadd.f32 %v3133, %v3172
        %v3174 = vpop.f32.mrb[0].mxu0
        %v3175 = vpop.f32.mrb[0].mxu0
        %v3176 = vpop.f32.mrb[0].mxu0
        %3177 = vdwg.mxu0
        %3178 = vmatprep.subr.bf16.mxu0 0
        %3179 = vmatpush1.bf16.msra.mxu0 %v2778
        %3180 = vmatprep.subr.bf16.mxu0 0
        %3181 = vmatpush1.bf16.msra.mxu0 %v2779
        %3182 = vmatprep.subr.bf16.mxu0 0
        %3183 = vmatpush1.bf16.msra.mxu0 %v2780
        %3184 = vmatprep.subr.bf16.mxu0 0
        %3185 = vmatpush1.bf16.msra.mxu0 %v2781
        %3186 = vmatprep.subr.bf16.mxu0 0
        %3187 = vmatpush1.bf16.msra.mxu0 %v2782
        %3188 = vmatprep.subr.bf16.mxu0 0
        %3189 = vmatpush1.bf16.msra.mxu0 %v2783
        %3190 = vmatprep.subr.bf16.mxu0 0
        %3191 = vmatpush1.bf16.msra.mxu0 %v2784
        %3192 = vmatprep.subr.bf16.mxu0 0
        %3193 = vmatpush1.bf16.msra.mxu0 %v2785
        %3194 = vmatprep.subr.bf16.mxu0 0
        %3195 = vmatpush1.bf16.msra.mxu0 %v2786
        %3196 = vmatprep.subr.bf16.mxu0 0
        %3197 = vmatpush1.bf16.msra.mxu0 %v2787
        %3198 = vmatprep.subr.bf16.mxu0 0
        %3199 = vmatpush1.bf16.msra.mxu0 %v2788
        %3200 = vmatprep.subr.bf16.mxu0 0
        %3201 = vmatpush1.bf16.msra.mxu0 %v2789
        %3202 = vmatprep.subr.bf16.mxu0 0
        %3203 = vmatpush1.bf16.msra.mxu0 %v2790
        %3204 = vmatprep.subr.bf16.mxu0 0
        %3205 = vmatpush1.bf16.msra.mxu0 %v2791
        %3206 = vmatprep.subr.bf16.mxu0 0
        %3207 = vmatpush1.bf16.msra.mxu0 %v2792
        %3208 = vmatprep.subr.bf16.mxu0 0
        %3209 = vmatpush1.bf16.msra.mxu0 %v2793
        %3210 = vmatprep.mubr.bf16.mxu0 %v1904
        %3211 = vmatmul.mubr.bf16.gmra.mrb[0].mxu0 %v1903
        %v3212 = vpop.f32.mrb[0].mxu0
        %v3213 = vadd.f32 %v3173, %v3212
        %v3214 = vpop.f32.mrb[0].mxu0
        %v3215 = vpop.f32.mrb[0].mxu0
        %v3216 = vpop.f32.mrb[0].mxu0
        %3217 = vdwg.mxu0
        %3218 = vmatprep.subr.bf16.mxu0 0
        %3219 = vmatpush1.bf16.msra.mxu0 %v2794
        %3220 = vmatprep.subr.bf16.mxu0 0
        %3221 = vmatpush1.bf16.msra.mxu0 %v2795
        %3222 = vmatprep.subr.bf16.mxu0 0
        %3223 = vmatpush1.bf16.msra.mxu0 %v2796
        %3224 = vmatprep.subr.bf16.mxu0 0
        %3225 = vmatpush1.bf16.msra.mxu0 %v2797
        %3226 = vmatprep.subr.bf16.mxu0 0
        %3227 = vmatpush1.bf16.msra.mxu0 %v2798
        %3228 = vmatprep.subr.bf16.mxu0 0
        %3229 = vmatpush1.bf16.msra.mxu0 %v2799
        %3230 = vmatprep.subr.bf16.mxu0 0
        %3231 = vmatpush1.bf16.msra.mxu0 %v2800
        %3232 = vmatprep.subr.bf16.mxu0 0
        %3233 = vmatpush1.bf16.msra.mxu0 %v2801
        %3234 = vmatprep.subr.bf16.mxu0 0
        %3235 = vmatpush1.bf16.msra.mxu0 %v2802
        %3236 = vmatprep.subr.bf16.mxu0 0
        %3237 = vmatpush1.bf16.msra.mxu0 %v2803
        %3238 = vmatprep.subr.bf16.mxu0 0
        %3239 = vmatpush1.bf16.msra.mxu0 %v2804
        %3240 = vmatprep.subr.bf16.mxu0 0
        %3241 = vmatpush1.bf16.msra.mxu0 %v2805
        %3242 = vmatprep.subr.bf16.mxu0 0
        %3243 = vmatpush1.bf16.msra.mxu0 %v2806
        %3244 = vmatprep.subr.bf16.mxu0 0
        %3245 = vmatpush1.bf16.msra.mxu0 %v2807
        %3246 = vmatprep.subr.bf16.mxu0 0
        %3247 = vmatpush1.bf16.msra.mxu0 %v2808
        %3248 = vmatprep.subr.bf16.mxu0 0
        %3249 = vmatpush1.bf16.msra.mxu0 %v2809
        %3250 = vmatprep.mubr.bf16.mxu0 %v1906
        %3251 = vmatmul.mubr.bf16.gmra.mrb[0].mxu0 %v1905
        %v3252 = vpop.f32.mrb[0].mxu0
        %v3253 = vadd.f32 %v3213, %v3252
        %v3254 = vpop.f32.mrb[0].mxu0
        %v3255 = vpop.f32.mrb[0].mxu0
        %v3256 = vpop.f32.mrb[0].mxu0
        %3257 = vdwg.mxu0
        %v3258 = vadd.f32 %v1237, %v3253
        %3259 = vst.msk [vmem:[%s471] sm:$0xff] %vm482, %v3258
        %s3260 = sand.u32 %s340, 1
        %s3261 = scalar_lea.sflag [#allocation3], %s3260
        %s3262 = sand.u32 %s340, 1
        %s3263 = smul.addr %s3262, 8
        %s3264 = scalar_lea.vmem [#allocation2], %s3263
        // Predicated region
        $region77: #{encoder_layer_forward.1} parent=75 // pred_check
          %p3265 = pneg %p350
        $region78: #{encoder_layer_forward.1} parent=75 // pred_check_branch
          %3267 = sbr.rel (%p3265) target = $region80
        $region79: #{encoder_layer_forward.1} parent=75 // pred_region
          %s3269 = ssub.s32 128, 128
          %3270 = vsyncadd %s3261, %s3269
          %s3271 = smul.addr %s28, 128
          %s3272 = scalar_lea.hbm %s14, %s3271
          %s3274 = sshll.u32 %s3264, 4
          %s3275 = int_to_ptr.vmem [resolvable:$true] %s3274
          %3277 = dma.vmem_to_hbm [thread:$0]  %s3275, 128, %s3272, %s3261
        $region80: #{encoder_layer_forward.1} parent=75 // pred_fallthru
          _
      $region76: #{encoder_layer_forward.1} parent=5 // pred_fallthru
        _
      %p3278 = scmp.le.s32.totalorder 2, %s23
      // Predicated region
      $region81: #{encoder_layer_forward.1} parent=5 // pred_check
        %p3279 = pneg %p3278
      $region82: #{encoder_layer_forward.1} parent=5 // pred_check_branch
        %3281 = sbr.rel (%p3279) target = $region84
      $region83: #{encoder_layer_forward.1} parent=5 // pred_region
        %s3282 = ssub.s32 %s23, 2
        // Predicated region
        $region85: #{encoder_layer_forward.1} parent=83 // pred_check
          %p3283 = pneg %p356
        $region86: #{encoder_layer_forward.1} parent=83 // pred_check_branch
          %3285 = sbr.rel (%p3283) target = $region88
        $region87: #{encoder_layer_forward.1} parent=83 // pred_region
          %s3286 = sand.u32 %s341, 1
          %s3287 = scalar_lea.sflag [#allocation3], %s3286
          %s3288 = sand.u32 %s341, 1
          %s3289 = smul.addr %s3288, 8
          %s3290 = scalar_lea.vmem [#allocation2], %s3289
          %3291 = dma.done %s3287, 128
        $region88: #{encoder_layer_forward.1} parent=83 // pred_fallthru
          _
      $region84: #{encoder_layer_forward.1} parent=5 // pred_fallthru
        _
    $region6: #{encoder_layer_forward.1} parent=1 // loop_footer
      %s27 = sadd.s32 1, %s23
    $region7: #{encoder_layer_forward.1} parent=1 // loop_footer_branch
      %22 = sbr.rel target = $region3
    $region8: #{encoder_layer_forward.1} parent=1 // loop_exit
      _
    %3292 = vsyncpa [#allocation3], 1
    %s3293 = scalar_lea.sflag [#allocation3], 1
    %3294 = vsyncpa %s3293, 1

</llo_original>
